<compile_context>
chip_gen: v5e
topology: v5e:2x2
jax: 0.10.0
libtpu: 0.0.40
codegen_flags: <defaults>
</compile_context>

<pallas_src>
import functools
import math

import numpy as np

import jax
import jax.numpy as jnp
from jax.experimental import pallas as pl
from jax.experimental.pallas import tpu as pltpu


RMS_EPS = 1e-6   # RMSNorm eps (torch module)
LN_EPS = 1e-5    # nn.LayerNorm default eps


def _sigmoid(x):
    return 1.0 / (1.0 + jnp.exp(-x))


# ----------------------------------------------------------------------------
# Kernel 1: RMSNorm + v + fused q/k position-embedding + q/k LayerNorm
# ----------------------------------------------------------------------------

def qkv_pos_kernel(x_ref, vemb_ref, wrms_ref, ppos_ref, pproj_ref,
                   wih_ref, whh_ref, wlpos_ref, wlproj_ref, lnw_ref, lnb_ref,
                   q_ref, k_ref, v_ref, gi_s, gru_s, *, dp):
    T = x_ref.shape[1]
    E = x_ref.shape[2]

    x = x_ref[0]                                                # (T, E)
    var = jnp.mean(x * x, axis=-1, keepdims=True)
    xn = x * jax.lax.rsqrt(var + RMS_EPS) * wrms_ref[...]
    v_ref[0] = jnp.tanh(xn) * vemb_ref[0]

    # Adaptive avg pools as matmuls (shared by q_pos and k_pos).
    pos_in = jnp.dot(xn, ppos_ref[...], preferred_element_type=jnp.float32)   # (T, dp)
    proj = jnp.dot(xn, pproj_ref[...], preferred_element_type=jnp.float32)    # (T, E-dp)

    # GRU input-side projections for both GRUs, all timesteps, hoisted out of
    # the recurrence.  Column layout: [r_q, r_k, z_q, z_k, n_q, n_k] (dp each).
    gi_s[...] = jnp.dot(pos_in, wih_ref[...], preferred_element_type=jnp.float32)

    def step(t, h):                       # h: (1, 2dp) packed [h_q | h_k]
        gh = jnp.dot(h, whh_ref[...], preferred_element_type=jnp.float32)     # (1, 6dp)
        gi = gi_s[pl.ds(t, 1), :]
        g = gi + gh
        r = _sigmoid(g[:, 0:2 * dp])
        z = _sigmoid(g[:, 2 * dp:4 * dp])
        n = jnp.tanh(gi[:, 4 * dp:6 * dp] + r * gh[:, 4 * dp:6 * dp])
        h_new = (1.0 - z) * n + z * h
        gru_s[pl.ds(t, 1), :] = h_new
        return h_new

    h0 = jnp.zeros((1, 2 * dp), jnp.float32)
    if T <= 32:                            # small static T: fully unroll
        h = h0
        for t in range(T):
            h = step(t, h)
    else:
        jax.lax.fori_loop(0, T, step, h0)

    # linear(cat([gru_out, proj])) for q and k fused into two wide matmuls
    # (block-diagonal / column-concatenated weights), then + residual xn.
    pe = (jnp.dot(gru_s[...], wlpos_ref[...], preferred_element_type=jnp.float32)
          + jnp.dot(proj, wlproj_ref[...], preferred_element_type=jnp.float32))   # (T, 2E)

    def layernorm(z, w, b):
        m = jnp.mean(z, axis=-1, keepdims=True)
        c = z - m
        v2 = jnp.mean(c * c, axis=-1, keepdims=True)
        return c * jax.lax.rsqrt(v2 + LN_EPS) * w + b

    q_ref[0] = layernorm(pe[:, :E] + xn, lnw_ref[0:1, :], lnb_ref[0:1, :])
    k_ref[0] = layernorm(pe[:, E:] + xn, lnw_ref[1:2, :], lnb_ref[1:2, :])


# ----------------------------------------------------------------------------
# Kernel 2: causal attention (all heads) + out_proj + residual + FFN + residual
# ----------------------------------------------------------------------------

def attn_ffn_kernel(q_ref, k_ref, v_ref, x_ref, demb_ref,
                    wout_ref, aattn_ref, wrms_ref, wup_ref, wgate_ref,
                    wdown_ref, affn_ref, o_ref, *, n_heads, d_head, scale):
    T = q_ref.shape[1]
    q = q_ref[0]                                                # (T, E)
    k = k_ref[0]
    v = v_ref[0]

    row = jax.lax.broadcasted_iota(jnp.int32, (T, T), 0)
    col = jax.lax.broadcasted_iota(jnp.int32, (T, T), 1)
    causal = col <= row

    # Heads are contiguous lane slices of the E axis (matches the torch view()).
    head_outs = []
    for h in range(n_heads):
        lo = h * d_head
        qh = q[:, lo:lo + d_head]
        kh = k[:, lo:lo + d_head]
        vh = v[:, lo:lo + d_head]
        s = jax.lax.dot_general(qh, kh, (((1,), (1,)), ((), ())),
                                preferred_element_type=jnp.float32) * scale
        # reference does attn += attn.masked_fill(mask, -inf): 2x kept positions
        # (folded into `scale`), -inf on future ones.
        s = jnp.where(causal, s, -1e30)
        m = jnp.max(s, axis=-1, keepdims=True)
        p = jnp.exp(s - m)
        denom = jnp.sum(p, axis=-1, keepdims=True)
        p = p * pl.reciprocal(denom, approx=True)
        head_outs.append(jnp.dot(p, vh, preferred_element_type=jnp.float32))
    attn = jnp.concatenate(head_outs, axis=-1)                  # (T, E)

    x = x_ref[0]
    x1 = (jnp.dot(attn, wout_ref[...], preferred_element_type=jnp.float32)
          + x * aattn_ref[...])

    # pre_ffn RMSNorm + FFN, x1 stays in VMEM.
    var = jnp.mean(x1 * x1, axis=-1, keepdims=True)
    xn2 = x1 * jax.lax.rsqrt(var + RMS_EPS) * wrms_ref[...]
    up = jnp.dot(xn2, wup_ref[...], preferred_element_type=jnp.float32)       # (T, DI)
    gate = jnp.dot(xn2, wgate_ref[...], preferred_element_type=jnp.float32)   # (T, DI)
    hft = up * (jnp.tanh(jnp.exp(gate)) * gate)                 # up * telu(gate)
    y = jnp.dot(hft, wdown_ref[...], preferred_element_type=jnp.float32)      # (T, E)
    o_ref[0] = y * demb_ref[0] + x1 * affn_ref[...]


# ----------------------------------------------------------------------------
# Weight packing + pallas_call wrappers
# ----------------------------------------------------------------------------

def _row_spec(T, E):
    return pl.BlockSpec((1, T, E), lambda b: (b, 0, 0))


def _full_spec(shape):
    return pl.BlockSpec(shape, lambda b: (0,) * len(shape))


def _pack_gru_ih(w_ih_q, w_ih_k, dp):
    """(dp, 6dp) with column blocks [r_q, r_k, z_q, z_k, n_q, n_k]."""
    cols = []
    for g in range(3):
        cols.append(w_ih_q[g * dp:(g + 1) * dp].T)
        cols.append(w_ih_k[g * dp:(g + 1) * dp].T)
    return jnp.concatenate(cols, axis=1)


def _pack_gru_hh(w_hh_q, w_hh_k, dp):
    """(2dp, 6dp) block-diagonal so [h_q | h_k] @ W gives both GRUs' gates."""
    w = jnp.zeros((2 * dp, 6 * dp), jnp.float32)
    for g in range(3):
        w = w.at[:dp, (2 * g) * dp:(2 * g + 1) * dp].set(w_hh_q[g * dp:(g + 1) * dp].T)
        w = w.at[dp:, (2 * g + 1) * dp:(2 * g + 2) * dp].set(w_hh_k[g * dp:(g + 1) * dp].T)
    return w


def _pack_linear_pos(wlin_q, wlin_k, dp, E):
    """(2dp, 2E) block-diagonal: gru_q -> q columns, gru_k -> k columns."""
    w = jnp.zeros((2 * dp, 2 * E), jnp.float32)
    w = w.at[:dp, :E].set(wlin_q[:, :dp].T)
    w = w.at[dp:, E:].set(wlin_k[:, :dp].T)
    return w


def qkv_pos_call(x, vemb, w_rms, q_pos, k_pos, q_ln_w, q_ln_b, k_ln_w, k_ln_b,
                 P_pos, P_proj):
    B, T, E = x.shape
    dp = P_pos.shape[1]

    wih = _pack_gru_ih(q_pos['gru_w_ih'], k_pos['gru_w_ih'], dp)
    whh = _pack_gru_hh(q_pos['gru_w_hh'], k_pos['gru_w_hh'], dp)
    wlpos = _pack_linear_pos(q_pos['linear_w'], k_pos['linear_w'], dp, E)
    wlproj = jnp.concatenate([q_pos['linear_w'][:, dp:].T,
                              k_pos['linear_w'][:, dp:].T], axis=1)   # (E-dp, 2E)
    lnw = jnp.stack([q_ln_w, k_ln_w], axis=0)                          # (2, E)
    lnb = jnp.stack([q_ln_b, k_ln_b], axis=0)

    kernel = functools.partial(qkv_pos_kernel, dp=dp)
    return pl.pallas_call(
        kernel,
        out_shape=tuple(jax.ShapeDtypeStruct((B, T, E), jnp.float32)
                        for _ in range(3)),
        grid=(B,),
        in_specs=[_row_spec(T, E), _row_spec(T, E),
                  _full_spec((1, E)), _full_spec((E, dp)), _full_spec((E, E - dp)),
                  _full_spec((dp, 6 * dp)), _full_spec((2 * dp, 6 * dp)),
                  _full_spec((2 * dp, 2 * E)), _full_spec((E - dp, 2 * E)),
                  _full_spec((2, E)), _full_spec((2, E))],
        out_specs=tuple(_row_spec(T, E) for _ in range(3)),
        scratch_shapes=[pltpu.VMEM((T, 6 * dp), jnp.float32),
                        pltpu.VMEM((T, 2 * dp), jnp.float32)],
        compiler_params=pltpu.CompilerParams(
            dimension_semantics=("parallel",),
            vmem_limit_bytes=64 * 1024 * 1024),
    )(x, vemb, w_rms.reshape(1, E), P_pos, P_proj, wih, whh, wlpos, wlproj,
      lnw, lnb)


def attn_ffn_call(q, k, v, x, demb, w_out_t, attn_alpha, w_rms2,
                  w_up_t, w_gate_t, w_down_t, ffn_alpha, n_heads, d_head):
    B, T, E = x.shape
    DI = w_up_t.shape[1]
    scale = 2.0 / math.sqrt(d_head)
    kernel = functools.partial(attn_ffn_kernel, n_heads=n_heads, d_head=d_head,
                               scale=scale)
    flops = B * (4 * T * T * E + 2 * T * E * E + 6 * T * E * DI)
    return pl.pallas_call(
        kernel,
        out_shape=jax.ShapeDtypeStruct((B, T, E), jnp.float32),
        grid=(B,),
        in_specs=[_row_spec(T, E) for _ in range(5)] + [
            _full_spec((E, E)), _full_spec((1, 1)), _full_spec((1, E)),
            _full_spec((E, DI)), _full_spec((E, DI)), _full_spec((DI, E)),
            _full_spec((1, 1))],
        out_specs=_row_spec(T, E),
        compiler_params=pltpu.CompilerParams(
            dimension_semantics=("parallel",),
            vmem_limit_bytes=64 * 1024 * 1024),
        cost_estimate=pl.CostEstimate(
            flops=int(flops),
            transcendentals=int(B * (n_heads * T * T + 2 * T * DI)),
            bytes_accessed=int(4 * (6 * B * T * E + 2 * E * E + 3 * E * DI))),
    )(q, k, v, x, demb, w_out_t, attn_alpha.reshape(1, 1),
      w_rms2.reshape(1, E), w_up_t, w_gate_t, w_down_t, ffn_alpha.reshape(1, 1))


# ----------------------------------------------------------------------------
# Full decoder-layer forward (Pallas) and pure-JAX reference
# ----------------------------------------------------------------------------

def adaptive_pool_matrix(L_in, L_out):
    """AdaptiveAvgPool1d(L_out) over the last axis as an (L_in, L_out) matrix."""
    P = np.zeros((L_in, L_out), dtype=np.float32)
    for i in range(L_out):
        s = (i * L_in) // L_out
        e = -((-(i + 1) * L_in) // L_out)     # ceil((i+1)*L_in/L_out)
        P[s:e, i] = 1.0 / (e - s)
    return jnp.asarray(P)


def decoder_layer_pallas(params, x, token_ids, cfg, pools):
    B, T, E = x.shape
    H, hd = cfg['n_heads'], cfg['d_head']
    assert H * hd == E
    P_pos, P_proj = pools

    # TODO(synk): gather v_emb / deep_emb rows in-kernel (scalar-prefetch token
    # ids + pl.Element row gather) to avoid these (B,T,E) HBM temporaries.
    vemb = params['v_emb'][token_ids]
    demb = params['deep_emb'][token_ids]

    q, k, v = qkv_pos_call(x, vemb, params['pre_attn_norm_w'],
                           params['q_pos'], params['k_pos'],
                           params['q_ln_w'], params['q_ln_b'],
                           params['k_ln_w'], params['k_ln_b'],
                           P_pos, P_proj)

    out = attn_ffn_call(q, k, v, x, demb,
                        params['out_proj_w'].T, params['attn_alpha'],
                        params['pre_ffn_norm_w'],
                        params['up_proj_w'].T, params['gate_proj_w'].T,
                        params['down_proj_w'].T, params['ffn_alpha'],
                        H, hd)
    return out


def decoder_layer_ref(params, x, token_ids, cfg, pools):
    """Pure-JAX reference faithful to the PyTorch module (eval mode)."""
    P_pos, P_proj = pools
    B, T, E = x.shape
    H, hd = cfg['n_heads'], cfg['d_head']
    HP = jax.lax.Precision.HIGHEST
    mm = functools.partial(jnp.matmul, precision=HP)

    def rmsnorm(z, w):
        var = jnp.mean(z * z, axis=-1, keepdims=True)
        return w * (z * jax.lax.rsqrt(var + RMS_EPS))

    def layernorm(z, w, b):
        m = jnp.mean(z, axis=-1, keepdims=True)
        c = z - m
        v = jnp.mean(c * c, axis=-1, keepdims=True)
        return c * jax.lax.rsqrt(v + LN_EPS) * w + b

    def gru(seq, w_ih, w_hh):
        di = w_hh.shape[1]
        W_ir, W_iz, W_in = w_ih[:di], w_ih[di:2 * di], w_ih[2 * di:]
        W_hr, W_hz, W_hn = w_hh[:di], w_hh[di:2 * di], w_hh[2 * di:]
        h = jnp.zeros((seq.shape[0], di), jnp.float32)
        outs = []
        for t in range(seq.shape[1]):
            xt = seq[:, t, :]
            r = _sigmoid(mm(xt, W_ir.T) + mm(h, W_hr.T))
            zg = _sigmoid(mm(xt, W_iz.T) + mm(h, W_hz.T))
            n = jnp.tanh(mm(xt, W_in.T) + r * mm(h, W_hn.T))
            h = (1.0 - zg) * n + zg * h
            outs.append(h)
        return jnp.stack(outs, axis=1)

    def pos_embed(z, p):
        res = z
        pos = mm(z, P_pos)
        proj = mm(z, P_proj)
        pos = gru(pos, p['gru_w_ih'], p['gru_w_hh'])
        cat = jnp.concatenate([pos, proj], axis=-1)
        return mm(cat, p['linear_w'].T) + res

    res = x
    xn = rmsnorm(x, params['pre_attn_norm_w'])
    q = layernorm(pos_embed(xn, params['q_pos']), params['q_ln_w'], params['q_ln_b'])
    k = layernorm(pos_embed(xn, params['k_pos']), params['k_ln_w'], params['k_ln_b'])
    v = jnp.tanh(xn) * params['v_emb'][token_ids]

    def heads(t):
        return t.reshape(B, T, H, hd).transpose(0, 2, 1, 3)

    qh, kh, vh = heads(q), heads(k), heads(v)
    s = jnp.einsum('bhtd,bhsd->bhts', qh, kh, precision=HP) / math.sqrt(hd)
    ii = jnp.arange(T)[:, None]
    jj = jnp.arange(T)[None, :]
    # attn_weights += attn_weights.masked_fill(mask, -inf) => 2x allowed, -inf future
    s = jnp.where(jj <= ii, 2.0 * s, -jnp.inf)
    a = jax.nn.softmax(s, axis=-1)
    o = jnp.einsum('bhts,bhsd->bhtd', a, vh, precision=HP)
    o = o.transpose(0, 2, 1, 3).reshape(B, T, E)
    o = mm(o, params['out_proj_w'].T)
    x1 = o + res * params['attn_alpha']

    res = x1
    xn2 = rmsnorm(x1, params['pre_ffn_norm_w'])
    up = mm(xn2, params['up_proj_w'].T)
    gate = mm(xn2, params['gate_proj_w'].T)
    h = up * (jnp.tanh(jnp.exp(gate)) * gate)
    y = mm(h, params['down_proj_w'].T)
    y = y * params['deep_emb'][token_ids]
    return y + res * params['ffn_alpha']


def make_params(key, cfg):
    E, DI, V = cfg['d_model'], cfg['d_inner'], cfg['vocab_size']
    dpos = E // 16
    ks = jax.random.split(key, 18)

    def nrm(k, shape, std):
        return std * jax.random.normal(k, shape, jnp.float32)

    return {
        'pre_attn_norm_w': 1.0 + nrm(ks[0], (E,), 0.1),
        'pre_ffn_norm_w': 1.0 + nrm(ks[1], (E,), 0.1),
        'attn_alpha': jnp.asarray(0.8, dtype=jnp.float32),
        'ffn_alpha': jnp.asarray(1.2, dtype=jnp.float32),
        'q_pos': {
            'gru_w_ih': nrm(ks[2], (3 * dpos, dpos), 0.3),
            'gru_w_hh': nrm(ks[3], (3 * dpos, dpos), 0.3),
            'linear_w': nrm(ks[4], (E, E), math.sqrt(2.0 / E)),
        },
        'k_pos': {
            'gru_w_ih': nrm(ks[5], (3 * dpos, dpos), 0.3),
            'gru_w_hh': nrm(ks[6], (3 * dpos, dpos), 0.3),
            'linear_w': nrm(ks[7], (E, E), math.sqrt(2.0 / E)),
        },
        'q_ln_w': 1.0 + nrm(ks[8], (E,), 0.1),
        'q_ln_b': nrm(ks[9], (E,), 0.1),
        'k_ln_w': 1.0 + nrm(ks[10], (E,), 0.1),
        'k_ln_b': nrm(ks[11], (E,), 0.1),
        'v_emb': 1.0 + nrm(ks[12], (V, E), 0.1),
        'out_proj_w': nrm(ks[13], (E, E), math.sqrt(2.0 / E)),
        'up_proj_w': nrm(ks[14], (DI, E), math.sqrt(2.0 / E)),
        'gate_proj_w': nrm(ks[15], (DI, E), math.sqrt(2.0 / E)),
        'down_proj_w': nrm(ks[16], (E, DI), math.sqrt(2.0 / DI)),
        'deep_emb': 1.0 + nrm(ks[17], (V, E), 0.1),
    }


if __name__ == "__main__":
    cfg = dict(d_model=64, d_inner=128, n_heads=2, d_head=32, vocab_size=97)
    B, T = 2, 8
    E = cfg['d_model']
    dpos = E // 16

    key = jax.random.PRNGKey(0)
    k_params, k_x, k_tok = jax.random.split(key, 3)
    params = make_params(k_params, cfg)
    x = jax.random.normal(k_x, (B, T, E), jnp.float32)
    token_ids = jax.random.randint(k_tok, (B, T), 0, cfg['vocab_size'])

    pools = (adaptive_pool_matrix(E, dpos), adaptive_pool_matrix(E, E - dpos))

    fwd = jax.jit(functools.partial(decoder_layer_pallas, cfg=cfg, pools=pools))
    out = jax.block_until_ready(fwd(params, x, token_ids))

    ref = decoder_layer_ref(params, x, token_ids, cfg, pools)
    err = float(jnp.max(jnp.abs(out - ref)))
    assert out.shape == (B, T, E)
    assert jnp.allclose(out, ref, atol=2e-2, rtol=2e-2), f"max abs err {err}"
    print("KERNEL_OK")
</pallas_src>

<mosaic_0001>
module attributes {stable_mosaic.version = 11 : i64} {
  func.func @qkv_pos_kernel(%arg0: i32, %arg1: memref<1x8x64xf32, #tpu.memory_space<vmem>>, %arg2: memref<1x8x64xf32, #tpu.memory_space<vmem>>, %arg3: memref<1x64xf32, #tpu.memory_space<vmem>>, %arg4: memref<64x4xf32, #tpu.memory_space<vmem>>, %arg5: memref<64x60xf32, #tpu.memory_space<vmem>>, %arg6: memref<4x24xf32, #tpu.memory_space<vmem>>, %arg7: memref<8x24xf32, #tpu.memory_space<vmem>>, %arg8: memref<8x128xf32, #tpu.memory_space<vmem>>, %arg9: memref<60x128xf32, #tpu.memory_space<vmem>>, %arg10: memref<2x64xf32, #tpu.memory_space<vmem>>, %arg11: memref<2x64xf32, #tpu.memory_space<vmem>>, %arg12: memref<1x8x64xf32, #tpu.memory_space<vmem>>, %arg13: memref<1x8x64xf32, #tpu.memory_space<vmem>>, %arg14: memref<1x8x64xf32, #tpu.memory_space<vmem>>, %arg15: memref<8x24xf32, #tpu.memory_space<vmem>>, %arg16: memref<8x8xf32, #tpu.memory_space<vmem>>) attributes {dimension_semantics = [#tpu.dimension_semantics<parallel>], iteration_bounds = array<i64: 2>, scalar_prefetch = 0 : i64, scratch_operands = 2 : i64, tpu.core_type = #tpu.core_type<tc>, window_params = [{transform_indices = @transform_0, window_bounds = array<i64: 1, 8, 64>}, {transform_indices = @transform_1, window_bounds = array<i64: 1, 8, 64>}, {pipeline_mode = #tpu.pipeline_mode<synchronous>, transform_indices = @transform_2, window_bounds = array<i64: 1, 64>}, {pipeline_mode = #tpu.pipeline_mode<synchronous>, transform_indices = @transform_3, window_bounds = array<i64: 64, 4>}, {pipeline_mode = #tpu.pipeline_mode<synchronous>, transform_indices = @transform_4, window_bounds = array<i64: 64, 60>}, {pipeline_mode = #tpu.pipeline_mode<synchronous>, transform_indices = @transform_5, window_bounds = array<i64: 4, 24>}, {pipeline_mode = #tpu.pipeline_mode<synchronous>, transform_indices = @transform_6, window_bounds = array<i64: 8, 24>}, {pipeline_mode = #tpu.pipeline_mode<synchronous>, transform_indices = @transform_7, window_bounds = array<i64: 8, 128>}, {pipeline_mode = #tpu.pipeline_mode<synchronous>, transform_indices = @transform_8, window_bounds = array<i64: 60, 128>}, {pipeline_mode = #tpu.pipeline_mode<synchronous>, transform_indices = @transform_9, window_bounds = array<i64: 2, 64>}, {pipeline_mode = #tpu.pipeline_mode<synchronous>, transform_indices = @transform_10, window_bounds = array<i64: 2, 64>}, {transform_indices = @transform_11, window_bounds = array<i64: 1, 8, 64>}, {transform_indices = @transform_12, window_bounds = array<i64: 1, 8, 64>}, {transform_indices = @transform_13, window_bounds = array<i64: 1, 8, 64>}]} {
    %c0 = arith.constant 0 : index
    %c0_0 = arith.constant 0 : index
    %c0_1 = arith.constant 0 : index
    %0 = vector.load %arg1[%c0, %c0_0, %c0_1] : memref<1x8x64xf32, #tpu.memory_space<vmem>>, vector<1x8x64xf32>
    %1 = vector.shape_cast %0 : vector<1x8x64xf32> to vector<8x64xf32>
    %2 = arith.mulf %1, %1 : vector<8x64xf32>
    %cst = arith.constant dense<0.000000e+00> : vector<8xf32>
    %3 = vector.multi_reduction <add>, %2, %cst [1] : vector<8x64xf32> to vector<8xf32>
    %4 = vector.shape_cast %3 : vector<8xf32> to vector<8x1xf32>
    %cst_2 = arith.constant 6.400000e+01 : f32
    %5 = vector.broadcast %cst_2 : f32 to vector<8x1xf32>
    %6 = arith.divf %4, %5 : vector<8x1xf32>
    %cst_3 = arith.constant 9.99999997E-7 : f32
    %7 = vector.broadcast %cst_3 : f32 to vector<8x1xf32>
    %8 = arith.addf %6, %7 : vector<8x1xf32>
    %9 = math.rsqrt %8 : vector<8x1xf32>
    %10 = vector.broadcast %9 : vector<8x1xf32> to vector<8x64xf32>
    %11 = arith.mulf %1, %10 : vector<8x64xf32>
    %c0_4 = arith.constant 0 : index
    %c0_5 = arith.constant 0 : index
    %12 = vector.load %arg3[%c0_4, %c0_5] : memref<1x64xf32, #tpu.memory_space<vmem>>, vector<1x64xf32>
    %13 = vector.broadcast %12 : vector<1x64xf32> to vector<8x64xf32>
    %14 = arith.mulf %11, %13 : vector<8x64xf32>
    %15 = math.tanh %14 : vector<8x64xf32>
    %c0_6 = arith.constant 0 : index
    %c0_7 = arith.constant 0 : index
    %c0_8 = arith.constant 0 : index
    %16 = vector.load %arg2[%c0_6, %c0_7, %c0_8] : memref<1x8x64xf32, #tpu.memory_space<vmem>>, vector<1x8x64xf32>
    %17 = vector.shape_cast %16 : vector<1x8x64xf32> to vector<8x64xf32>
    %18 = arith.mulf %15, %17 : vector<8x64xf32>
    %c0_9 = arith.constant 0 : index
    %c0_10 = arith.constant 0 : index
    %c0_11 = arith.constant 0 : index
    %19 = vector.load %arg14[%c0_9, %c0_10, %c0_11] : memref<1x8x64xf32, #tpu.memory_space<vmem>>, vector<1x8x64xf32>
    %20 = vector.shape_cast %19 : vector<1x8x64xf32> to vector<8x64xf32>
    %21 = vector.shape_cast %18 : vector<8x64xf32> to vector<1x8x64xf32>
    tpu.vector_store %arg14[%c0_9, %c0_10, %c0_11], %21 {strides = array<i32>} : memref<1x8x64xf32, #tpu.memory_space<vmem>>, vector<1x8x64xf32>,
    %c0_12 = arith.constant 0 : index
    %c0_13 = arith.constant 0 : index
    %22 = vector.load %arg4[%c0_12, %c0_13] : memref<64x4xf32, #tpu.memory_space<vmem>>, vector<64x4xf32>
    %cst_14 = arith.constant dense<0.000000e+00> : vector<8x4xf32>
    %23 = tpu.matmul %14, %22, %cst_14 {dimension_numbers = #tpu.dot_dimension_numbers<[1], [0], [0], [1], [0, 0, 1, 1], [], []>} : vector<8x64xf32>, vector<64x4xf32>, vector<8x4xf32> -> vector<8x4xf32>
    %c0_15 = arith.constant 0 : index
    %c0_16 = arith.constant 0 : index
    %24 = vector.load %arg5[%c0_15, %c0_16] : memref<64x60xf32, #tpu.memory_space<vmem>>, vector<64x60xf32>
    %cst_17 = arith.constant dense<0.000000e+00> : vector<8x60xf32>
    %25 = tpu.matmul %14, %24, %cst_17 {dimension_numbers = #tpu.dot_dimension_numbers<[1], [0], [0], [1], [0, 0, 1, 1], [], []>} : vector<8x64xf32>, vector<64x60xf32>, vector<8x60xf32> -> vector<8x60xf32>
    %c0_18 = arith.constant 0 : index
    %c0_19 = arith.constant 0 : index
    %26 = vector.load %arg6[%c0_18, %c0_19] : memref<4x24xf32, #tpu.memory_space<vmem>>, vector<4x24xf32>
    %cst_20 = arith.constant dense<0.000000e+00> : vector<8x24xf32>
    %27 = tpu.matmul %23, %26, %cst_20 {dimension_numbers = #tpu.dot_dimension_numbers<[1], [0], [0], [1], [0, 0, 1, 1], [], []>} : vector<8x4xf32>, vector<4x24xf32>, vector<8x24xf32> -> vector<8x24xf32>
    %c0_21 = arith.constant 0 : index
    %c0_22 = arith.constant 0 : index
    %28 = vector.load %arg15[%c0_21, %c0_22] : memref<8x24xf32, #tpu.memory_space<vmem>>, vector<8x24xf32>
    tpu.vector_store %arg15[%c0_21, %c0_22], %27 {strides = array<i32>} : memref<8x24xf32, #tpu.memory_space<vmem>>, vector<8x24xf32>,
    %cst_23 = arith.constant 0.000000e+00 : f32
    %29 = vector.broadcast %cst_23 : f32 to vector<1x8xf32>
    %c0_24 = arith.constant 0 : index
    %c0_25 = arith.constant 0 : index
    %30 = vector.load %arg7[%c0_24, %c0_25] : memref<8x24xf32, #tpu.memory_space<vmem>>, vector<8x24xf32>
    %cst_26 = arith.constant dense<0.000000e+00> : vector<1x24xf32>
    %31 = tpu.matmul %29, %30, %cst_26 {dimension_numbers = #tpu.dot_dimension_numbers<[1], [0], [0], [1], [0, 0, 1, 1], [], []>} : vector<1x8xf32>, vector<8x24xf32>, vector<1x24xf32> -> vector<1x24xf32>
    %c0_27 = arith.constant 0 : index
    %c0_28 = arith.constant 0 : index
    %32 = vector.load %arg15[%c0_27, %c0_28] : memref<8x24xf32, #tpu.memory_space<vmem>>, vector<1x24xf32>
    %33 = arith.addf %32, %31 : vector<1x24xf32>
    %34 = vector.extract_strided_slice %33 {offsets = [0, 0], sizes = [1, 8], strides = [1, 1]} : vector<1x24xf32> to vector<1x8xf32>
    %cst_29 = arith.constant 0.000000e+00 : f32
    %35 = vector.broadcast %cst_29 : f32 to vector<1x8xf32>
    %36 = arith.subf %35, %34 : vector<1x8xf32>
    %37 = math.exp %36 : vector<1x8xf32>
    %cst_30 = arith.constant 1.000000e+00 : f32
    %38 = vector.broadcast %cst_30 : f32 to vector<1x8xf32>
    %39 = arith.addf %38, %37 : vector<1x8xf32>
    %cst_31 = arith.constant 1.000000e+00 : f32
    %40 = vector.broadcast %cst_31 : f32 to vector<1x8xf32>
    %41 = arith.divf %40, %39 : vector<1x8xf32>
    %42 = vector.extract_strided_slice %33 {offsets = [0, 8], sizes = [1, 8], strides = [1, 1]} : vector<1x24xf32> to vector<1x8xf32>
    %cst_32 = arith.constant 0.000000e+00 : f32
    %43 = vector.broadcast %cst_32 : f32 to vector<1x8xf32>
    %44 = arith.subf %43, %42 : vector<1x8xf32>
    %45 = math.exp %44 : vector<1x8xf32>
    %cst_33 = arith.constant 1.000000e+00 : f32
    %46 = vector.broadcast %cst_33 : f32 to vector<1x8xf32>
    %47 = arith.addf %46, %45 : vector<1x8xf32>
    %cst_34 = arith.constant 1.000000e+00 : f32
    %48 = vector.broadcast %cst_34 : f32 to vector<1x8xf32>
    %49 = arith.divf %48, %47 : vector<1x8xf32>
    %50 = vector.extract_strided_slice %32 {offsets = [0, 16], sizes = [1, 8], strides = [1, 1]} : vector<1x24xf32> to vector<1x8xf32>
    %51 = vector.extract_strided_slice %31 {offsets = [0, 16], sizes = [1, 8], strides = [1, 1]} : vector<1x24xf32> to vector<1x8xf32>
    %52 = arith.mulf %41, %51 : vector<1x8xf32>
    %53 = arith.addf %50, %52 : vector<1x8xf32>
    %54 = math.tanh %53 : vector<1x8xf32>
    %cst_35 = arith.constant 1.000000e+00 : f32
    %55 = vector.broadcast %cst_35 : f32 to vector<1x8xf32>
    %56 = arith.subf %55, %49 : vector<1x8xf32>
    %57 = arith.mulf %56, %54 : vector<1x8xf32>
    %58 = arith.mulf %49, %29 : vector<1x8xf32>
    %59 = arith.addf %57, %58 : vector<1x8xf32>
    %c0_36 = arith.constant 0 : index
    %c0_37 = arith.constant 0 : index
    %60 = vector.load %arg16[%c0_36, %c0_37] : memref<8x8xf32, #tpu.memory_space<vmem>>, vector<1x8xf32>
    tpu.vector_store %arg16[%c0_36, %c0_37], %59 {strides = array<i32>} : memref<8x8xf32, #tpu.memory_space<vmem>>, vector<1x8xf32>,
    %c0_38 = arith.constant 0 : index
    %c0_39 = arith.constant 0 : index
    %61 = vector.load %arg7[%c0_38, %c0_39] : memref<8x24xf32, #tpu.memory_space<vmem>>, vector<8x24xf32>
    %cst_40 = arith.constant dense<0.000000e+00> : vector<1x24xf32>
    %62 = tpu.matmul %59, %61, %cst_40 {dimension_numbers = #tpu.dot_dimension_numbers<[1], [0], [0], [1], [0, 0, 1, 1], [], []>} : vector<1x8xf32>, vector<8x24xf32>, vector<1x24xf32> -> vector<1x24xf32>
    %c1 = arith.constant 1 : index
    %c0_41 = arith.constant 0 : index
    %63 = vector.load %arg15[%c1, %c0_41] : memref<8x24xf32, #tpu.memory_space<vmem>>, vector<1x24xf32>
    %64 = arith.addf %63, %62 : vector<1x24xf32>
    %65 = vector.extract_strided_slice %64 {offsets = [0, 0], sizes = [1, 8], strides = [1, 1]} : vector<1x24xf32> to vector<1x8xf32>
    %cst_42 = arith.constant 0.000000e+00 : f32
    %66 = vector.broadcast %cst_42 : f32 to vector<1x8xf32>
    %67 = arith.subf %66, %65 : vector<1x8xf32>
    %68 = math.exp %67 : vector<1x8xf32>
    %cst_43 = arith.constant 1.000000e+00 : f32
    %69 = vector.broadcast %cst_43 : f32 to vector<1x8xf32>
    %70 = arith.addf %69, %68 : vector<1x8xf32>
    %cst_44 = arith.constant 1.000000e+00 : f32
    %71 = vector.broadcast %cst_44 : f32 to vector<1x8xf32>
    %72 = arith.divf %71, %70 : vector<1x8xf32>
    %73 = vector.extract_strided_slice %64 {offsets = [0, 8], sizes = [1, 8], strides = [1, 1]} : vector<1x24xf32> to vector<1x8xf32>
    %cst_45 = arith.constant 0.000000e+00 : f32
    %74 = vector.broadcast %cst_45 : f32 to vector<1x8xf32>
    %75 = arith.subf %74, %73 : vector<1x8xf32>
    %76 = math.exp %75 : vector<1x8xf32>
    %cst_46 = arith.constant 1.000000e+00 : f32
    %77 = vector.broadcast %cst_46 : f32 to vector<1x8xf32>
    %78 = arith.addf %77, %76 : vector<1x8xf32>
    %cst_47 = arith.constant 1.000000e+00 : f32
    %79 = vector.broadcast %cst_47 : f32 to vector<1x8xf32>
    %80 = arith.divf %79, %78 : vector<1x8xf32>
    %81 = vector.extract_strided_slice %63 {offsets = [0, 16], sizes = [1, 8], strides = [1, 1]} : vector<1x24xf32> to vector<1x8xf32>
    %82 = vector.extract_strided_slice %62 {offsets = [0, 16], sizes = [1, 8], strides = [1, 1]} : vector<1x24xf32> to vector<1x8xf32>
    %83 = arith.mulf %72, %82 : vector<1x8xf32>
    %84 = arith.addf %81, %83 : vector<1x8xf32>
    %85 = math.tanh %84 : vector<1x8xf32>
    %cst_48 = arith.constant 1.000000e+00 : f32
    %86 = vector.broadcast %cst_48 : f32 to vector<1x8xf32>
    %87 = arith.subf %86, %80 : vector<1x8xf32>
    %88 = arith.mulf %87, %85 : vector<1x8xf32>
    %89 = arith.mulf %80, %59 : vector<1x8xf32>
    %90 = arith.addf %88, %89 : vector<1x8xf32>
    %c1_49 = arith.constant 1 : index
    %c0_50 = arith.constant 0 : index
    %91 = vector.load %arg16[%c1_49, %c0_50] : memref<8x8xf32, #tpu.memory_space<vmem>>, vector<1x8xf32>
    tpu.vector_store %arg16[%c1_49, %c0_50], %90 {strides = array<i32>} : memref<8x8xf32, #tpu.memory_space<vmem>>, vector<1x8xf32>,
    %c0_51 = arith.constant 0 : index
    %c0_52 = arith.constant 0 : index
    %92 = vector.load %arg7[%c0_51, %c0_52] : memref<8x24xf32, #tpu.memory_space<vmem>>, vector<8x24xf32>
    %cst_53 = arith.constant dense<0.000000e+00> : vector<1x24xf32>
    %93 = tpu.matmul %90, %92, %cst_53 {dimension_numbers = #tpu.dot_dimension_numbers<[1], [0], [0], [1], [0, 0, 1, 1], [], []>} : vector<1x8xf32>, vector<8x24xf32>, vector<1x24xf32> -> vector<1x24xf32>
    %c2 = arith.constant 2 : index
    %c0_54 = arith.constant 0 : index
    %94 = vector.load %arg15[%c2, %c0_54] : memref<8x24xf32, #tpu.memory_space<vmem>>, vector<1x24xf32>
    %95 = arith.addf %94, %93 : vector<1x24xf32>
    %96 = vector.extract_strided_slice %95 {offsets = [0, 0], sizes = [1, 8], strides = [1, 1]} : vector<1x24xf32> to vector<1x8xf32>
    %cst_55 = arith.constant 0.000000e+00 : f32
    %97 = vector.broadcast %cst_55 : f32 to vector<1x8xf32>
    %98 = arith.subf %97, %96 : vector<1x8xf32>
    %99 = math.exp %98 : vector<1x8xf32>
    %cst_56 = arith.constant 1.000000e+00 : f32
    %100 = vector.broadcast %cst_56 : f32 to vector<1x8xf32>
    %101 = arith.addf %100, %99 : vector<1x8xf32>
    %cst_57 = arith.constant 1.000000e+00 : f32
    %102 = vector.broadcast %cst_57 : f32 to vector<1x8xf32>
    %103 = arith.divf %102, %101 : vector<1x8xf32>
    %104 = vector.extract_strided_slice %95 {offsets = [0, 8], sizes = [1, 8], strides = [1, 1]} : vector<1x24xf32> to vector<1x8xf32>
    %cst_58 = arith.constant 0.000000e+00 : f32
    %105 = vector.broadcast %cst_58 : f32 to vector<1x8xf32>
    %106 = arith.subf %105, %104 : vector<1x8xf32>
    %107 = math.exp %106 : vector<1x8xf32>
    %cst_59 = arith.constant 1.000000e+00 : f32
    %108 = vector.broadcast %cst_59 : f32 to vector<1x8xf32>
    %109 = arith.addf %108, %107 : vector<1x8xf32>
    %cst_60 = arith.constant 1.000000e+00 : f32
    %110 = vector.broadcast %cst_60 : f32 to vector<1x8xf32>
    %111 = arith.divf %110, %109 : vector<1x8xf32>
    %112 = vector.extract_strided_slice %94 {offsets = [0, 16], sizes = [1, 8], strides = [1, 1]} : vector<1x24xf32> to vector<1x8xf32>
    %113 = vector.extract_strided_slice %93 {offsets = [0, 16], sizes = [1, 8], strides = [1, 1]} : vector<1x24xf32> to vector<1x8xf32>
    %114 = arith.mulf %103, %113 : vector<1x8xf32>
    %115 = arith.addf %112, %114 : vector<1x8xf32>
    %116 = math.tanh %115 : vector<1x8xf32>
    %cst_61 = arith.constant 1.000000e+00 : f32
    %117 = vector.broadcast %cst_61 : f32 to vector<1x8xf32>
    %118 = arith.subf %117, %111 : vector<1x8xf32>
    %119 = arith.mulf %118, %116 : vector<1x8xf32>
    %120 = arith.mulf %111, %90 : vector<1x8xf32>
    %121 = arith.addf %119, %120 : vector<1x8xf32>
    %c2_62 = arith.constant 2 : index
    %c0_63 = arith.constant 0 : index
    %122 = vector.load %arg16[%c2_62, %c0_63] : memref<8x8xf32, #tpu.memory_space<vmem>>, vector<1x8xf32>
    tpu.vector_store %arg16[%c2_62, %c0_63], %121 {strides = array<i32>} : memref<8x8xf32, #tpu.memory_space<vmem>>, vector<1x8xf32>,
    %c0_64 = arith.constant 0 : index
    %c0_65 = arith.constant 0 : index
    %123 = vector.load %arg7[%c0_64, %c0_65] : memref<8x24xf32, #tpu.memory_space<vmem>>, vector<8x24xf32>
    %cst_66 = arith.constant dense<0.000000e+00> : vector<1x24xf32>
    %124 = tpu.matmul %121, %123, %cst_66 {dimension_numbers = #tpu.dot_dimension_numbers<[1], [0], [0], [1], [0, 0, 1, 1], [], []>} : vector<1x8xf32>, vector<8x24xf32>, vector<1x24xf32> -> vector<1x24xf32>
    %c3 = arith.constant 3 : index
    %c0_67 = arith.constant 0 : index
    %125 = vector.load %arg15[%c3, %c0_67] : memref<8x24xf32, #tpu.memory_space<vmem>>, vector<1x24xf32>
    %126 = arith.addf %125, %124 : vector<1x24xf32>
    %127 = vector.extract_strided_slice %126 {offsets = [0, 0], sizes = [1, 8], strides = [1, 1]} : vector<1x24xf32> to vector<1x8xf32>
    %cst_68 = arith.constant 0.000000e+00 : f32
    %128 = vector.broadcast %cst_68 : f32 to vector<1x8xf32>
    %129 = arith.subf %128, %127 : vector<1x8xf32>
    %130 = math.exp %129 : vector<1x8xf32>
    %cst_69 = arith.constant 1.000000e+00 : f32
    %131 = vector.broadcast %cst_69 : f32 to vector<1x8xf32>
    %132 = arith.addf %131, %130 : vector<1x8xf32>
    %cst_70 = arith.constant 1.000000e+00 : f32
    %133 = vector.broadcast %cst_70 : f32 to vector<1x8xf32>
    %134 = arith.divf %133, %132 : vector<1x8xf32>
    %135 = vector.extract_strided_slice %126 {offsets = [0, 8], sizes = [1, 8], strides = [1, 1]} : vector<1x24xf32> to vector<1x8xf32>
    %cst_71 = arith.constant 0.000000e+00 : f32
    %136 = vector.broadcast %cst_71 : f32 to vector<1x8xf32>
    %137 = arith.subf %136, %135 : vector<1x8xf32>
    %138 = math.exp %137 : vector<1x8xf32>
    %cst_72 = arith.constant 1.000000e+00 : f32
    %139 = vector.broadcast %cst_72 : f32 to vector<1x8xf32>
    %140 = arith.addf %139, %138 : vector<1x8xf32>
    %cst_73 = arith.constant 1.000000e+00 : f32
    %141 = vector.broadcast %cst_73 : f32 to vector<1x8xf32>
    %142 = arith.divf %141, %140 : vector<1x8xf32>
    %143 = vector.extract_strided_slice %125 {offsets = [0, 16], sizes = [1, 8], strides = [1, 1]} : vector<1x24xf32> to vector<1x8xf32>
    %144 = vector.extract_strided_slice %124 {offsets = [0, 16], sizes = [1, 8], strides = [1, 1]} : vector<1x24xf32> to vector<1x8xf32>
    %145 = arith.mulf %134, %144 : vector<1x8xf32>
    %146 = arith.addf %143, %145 : vector<1x8xf32>
    %147 = math.tanh %146 : vector<1x8xf32>
    %cst_74 = arith.constant 1.000000e+00 : f32
    %148 = vector.broadcast %cst_74 : f32 to vector<1x8xf32>
    %149 = arith.subf %148, %142 : vector<1x8xf32>
    %150 = arith.mulf %149, %147 : vector<1x8xf32>
    %151 = arith.mulf %142, %121 : vector<1x8xf32>
    %152 = arith.addf %150, %151 : vector<1x8xf32>
    %c3_75 = arith.constant 3 : index
    %c0_76 = arith.constant 0 : index
    %153 = vector.load %arg16[%c3_75, %c0_76] : memref<8x8xf32, #tpu.memory_space<vmem>>, vector<1x8xf32>
    tpu.vector_store %arg16[%c3_75, %c0_76], %152 {strides = array<i32>} : memref<8x8xf32, #tpu.memory_space<vmem>>, vector<1x8xf32>,
    %c0_77 = arith.constant 0 : index
    %c0_78 = arith.constant 0 : index
    %154 = vector.load %arg7[%c0_77, %c0_78] : memref<8x24xf32, #tpu.memory_space<vmem>>, vector<8x24xf32>
    %cst_79 = arith.constant dense<0.000000e+00> : vector<1x24xf32>
    %155 = tpu.matmul %152, %154, %cst_79 {dimension_numbers = #tpu.dot_dimension_numbers<[1], [0], [0], [1], [0, 0, 1, 1], [], []>} : vector<1x8xf32>, vector<8x24xf32>, vector<1x24xf32> -> vector<1x24xf32>
    %c4 = arith.constant 4 : index
    %c0_80 = arith.constant 0 : index
    %156 = vector.load %arg15[%c4, %c0_80] : memref<8x24xf32, #tpu.memory_space<vmem>>, vector<1x24xf32>
    %157 = arith.addf %156, %155 : vector<1x24xf32>
    %158 = vector.extract_strided_slice %157 {offsets = [0, 0], sizes = [1, 8], strides = [1, 1]} : vector<1x24xf32> to vector<1x8xf32>
    %cst_81 = arith.constant 0.000000e+00 : f32
    %159 = vector.broadcast %cst_81 : f32 to vector<1x8xf32>
    %160 = arith.subf %159, %158 : vector<1x8xf32>
    %161 = math.exp %160 : vector<1x8xf32>
    %cst_82 = arith.constant 1.000000e+00 : f32
    %162 = vector.broadcast %cst_82 : f32 to vector<1x8xf32>
    %163 = arith.addf %162, %161 : vector<1x8xf32>
    %cst_83 = arith.constant 1.000000e+00 : f32
    %164 = vector.broadcast %cst_83 : f32 to vector<1x8xf32>
    %165 = arith.divf %164, %163 : vector<1x8xf32>
    %166 = vector.extract_strided_slice %157 {offsets = [0, 8], sizes = [1, 8], strides = [1, 1]} : vector<1x24xf32> to vector<1x8xf32>
    %cst_84 = arith.constant 0.000000e+00 : f32
    %167 = vector.broadcast %cst_84 : f32 to vector<1x8xf32>
    %168 = arith.subf %167, %166 : vector<1x8xf32>
    %169 = math.exp %168 : vector<1x8xf32>
    %cst_85 = arith.constant 1.000000e+00 : f32
    %170 = vector.broadcast %cst_85 : f32 to vector<1x8xf32>
    %171 = arith.addf %170, %169 : vector<1x8xf32>
    %cst_86 = arith.constant 1.000000e+00 : f32
    %172 = vector.broadcast %cst_86 : f32 to vector<1x8xf32>
    %173 = arith.divf %172, %171 : vector<1x8xf32>
    %174 = vector.extract_strided_slice %156 {offsets = [0, 16], sizes = [1, 8], strides = [1, 1]} : vector<1x24xf32> to vector<1x8xf32>
    %175 = vector.extract_strided_slice %155 {offsets = [0, 16], sizes = [1, 8], strides = [1, 1]} : vector<1x24xf32> to vector<1x8xf32>
    %176 = arith.mulf %165, %175 : vector<1x8xf32>
    %177 = arith.addf %174, %176 : vector<1x8xf32>
    %178 = math.tanh %177 : vector<1x8xf32>
    %cst_87 = arith.constant 1.000000e+00 : f32
    %179 = vector.broadcast %cst_87 : f32 to vector<1x8xf32>
    %180 = arith.subf %179, %173 : vector<1x8xf32>
    %181 = arith.mulf %180, %178 : vector<1x8xf32>
    %182 = arith.mulf %173, %152 : vector<1x8xf32>
    %183 = arith.addf %181, %182 : vector<1x8xf32>
    %c4_88 = arith.constant 4 : index
    %c0_89 = arith.constant 0 : index
    %184 = vector.load %arg16[%c4_88, %c0_89] : memref<8x8xf32, #tpu.memory_space<vmem>>, vector<1x8xf32>
    tpu.vector_store %arg16[%c4_88, %c0_89], %183 {strides = array<i32>} : memref<8x8xf32, #tpu.memory_space<vmem>>, vector<1x8xf32>,
    %c0_90 = arith.constant 0 : index
    %c0_91 = arith.constant 0 : index
    %185 = vector.load %arg7[%c0_90, %c0_91] : memref<8x24xf32, #tpu.memory_space<vmem>>, vector<8x24xf32>
    %cst_92 = arith.constant dense<0.000000e+00> : vector<1x24xf32>
    %186 = tpu.matmul %183, %185, %cst_92 {dimension_numbers = #tpu.dot_dimension_numbers<[1], [0], [0], [1], [0, 0, 1, 1], [], []>} : vector<1x8xf32>, vector<8x24xf32>, vector<1x24xf32> -> vector<1x24xf32>
    %c5 = arith.constant 5 : index
    %c0_93 = arith.constant 0 : index
    %187 = vector.load %arg15[%c5, %c0_93] : memref<8x24xf32, #tpu.memory_space<vmem>>, vector<1x24xf32>
    %188 = arith.addf %187, %186 : vector<1x24xf32>
    %189 = vector.extract_strided_slice %188 {offsets = [0, 0], sizes = [1, 8], strides = [1, 1]} : vector<1x24xf32> to vector<1x8xf32>
    %cst_94 = arith.constant 0.000000e+00 : f32
    %190 = vector.broadcast %cst_94 : f32 to vector<1x8xf32>
    %191 = arith.subf %190, %189 : vector<1x8xf32>
    %192 = math.exp %191 : vector<1x8xf32>
    %cst_95 = arith.constant 1.000000e+00 : f32
    %193 = vector.broadcast %cst_95 : f32 to vector<1x8xf32>
    %194 = arith.addf %193, %192 : vector<1x8xf32>
    %cst_96 = arith.constant 1.000000e+00 : f32
    %195 = vector.broadcast %cst_96 : f32 to vector<1x8xf32>
    %196 = arith.divf %195, %194 : vector<1x8xf32>
    %197 = vector.extract_strided_slice %188 {offsets = [0, 8], sizes = [1, 8], strides = [1, 1]} : vector<1x24xf32> to vector<1x8xf32>
    %cst_97 = arith.constant 0.000000e+00 : f32
    %198 = vector.broadcast %cst_97 : f32 to vector<1x8xf32>
    %199 = arith.subf %198, %197 : vector<1x8xf32>
    %200 = math.exp %199 : vector<1x8xf32>
    %cst_98 = arith.constant 1.000000e+00 : f32
    %201 = vector.broadcast %cst_98 : f32 to vector<1x8xf32>
    %202 = arith.addf %201, %200 : vector<1x8xf32>
    %cst_99 = arith.constant 1.000000e+00 : f32
    %203 = vector.broadcast %cst_99 : f32 to vector<1x8xf32>
    %204 = arith.divf %203, %202 : vector<1x8xf32>
    %205 = vector.extract_strided_slice %187 {offsets = [0, 16], sizes = [1, 8], strides = [1, 1]} : vector<1x24xf32> to vector<1x8xf32>
    %206 = vector.extract_strided_slice %186 {offsets = [0, 16], sizes = [1, 8], strides = [1, 1]} : vector<1x24xf32> to vector<1x8xf32>
    %207 = arith.mulf %196, %206 : vector<1x8xf32>
    %208 = arith.addf %205, %207 : vector<1x8xf32>
    %209 = math.tanh %208 : vector<1x8xf32>
    %cst_100 = arith.constant 1.000000e+00 : f32
    %210 = vector.broadcast %cst_100 : f32 to vector<1x8xf32>
    %211 = arith.subf %210, %204 : vector<1x8xf32>
    %212 = arith.mulf %211, %209 : vector<1x8xf32>
    %213 = arith.mulf %204, %183 : vector<1x8xf32>
    %214 = arith.addf %212, %213 : vector<1x8xf32>
    %c5_101 = arith.constant 5 : index
    %c0_102 = arith.constant 0 : index
    %215 = vector.load %arg16[%c5_101, %c0_102] : memref<8x8xf32, #tpu.memory_space<vmem>>, vector<1x8xf32>
    tpu.vector_store %arg16[%c5_101, %c0_102], %214 {strides = array<i32>} : memref<8x8xf32, #tpu.memory_space<vmem>>, vector<1x8xf32>,
    %c0_103 = arith.constant 0 : index
    %c0_104 = arith.constant 0 : index
    %216 = vector.load %arg7[%c0_103, %c0_104] : memref<8x24xf32, #tpu.memory_space<vmem>>, vector<8x24xf32>
    %cst_105 = arith.constant dense<0.000000e+00> : vector<1x24xf32>
    %217 = tpu.matmul %214, %216, %cst_105 {dimension_numbers = #tpu.dot_dimension_numbers<[1], [0], [0], [1], [0, 0, 1, 1], [], []>} : vector<1x8xf32>, vector<8x24xf32>, vector<1x24xf32> -> vector<1x24xf32>
    %c6 = arith.constant 6 : index
    %c0_106 = arith.constant 0 : index
    %218 = vector.load %arg15[%c6, %c0_106] : memref<8x24xf32, #tpu.memory_space<vmem>>, vector<1x24xf32>
    %219 = arith.addf %218, %217 : vector<1x24xf32>
    %220 = vector.extract_strided_slice %219 {offsets = [0, 0], sizes = [1, 8], strides = [1, 1]} : vector<1x24xf32> to vector<1x8xf32>
    %cst_107 = arith.constant 0.000000e+00 : f32
    %221 = vector.broadcast %cst_107 : f32 to vector<1x8xf32>
    %222 = arith.subf %221, %220 : vector<1x8xf32>
    %223 = math.exp %222 : vector<1x8xf32>
    %cst_108 = arith.constant 1.000000e+00 : f32
    %224 = vector.broadcast %cst_108 : f32 to vector<1x8xf32>
    %225 = arith.addf %224, %223 : vector<1x8xf32>
    %cst_109 = arith.constant 1.000000e+00 : f32
    %226 = vector.broadcast %cst_109 : f32 to vector<1x8xf32>
    %227 = arith.divf %226, %225 : vector<1x8xf32>
    %228 = vector.extract_strided_slice %219 {offsets = [0, 8], sizes = [1, 8], strides = [1, 1]} : vector<1x24xf32> to vector<1x8xf32>
    %cst_110 = arith.constant 0.000000e+00 : f32
    %229 = vector.broadcast %cst_110 : f32 to vector<1x8xf32>
    %230 = arith.subf %229, %228 : vector<1x8xf32>
    %231 = math.exp %230 : vector<1x8xf32>
    %cst_111 = arith.constant 1.000000e+00 : f32
    %232 = vector.broadcast %cst_111 : f32 to vector<1x8xf32>
    %233 = arith.addf %232, %231 : vector<1x8xf32>
    %cst_112 = arith.constant 1.000000e+00 : f32
    %234 = vector.broadcast %cst_112 : f32 to vector<1x8xf32>
    %235 = arith.divf %234, %233 : vector<1x8xf32>
    %236 = vector.extract_strided_slice %218 {offsets = [0, 16], sizes = [1, 8], strides = [1, 1]} : vector<1x24xf32> to vector<1x8xf32>
    %237 = vector.extract_strided_slice %217 {offsets = [0, 16], sizes = [1, 8], strides = [1, 1]} : vector<1x24xf32> to vector<1x8xf32>
    %238 = arith.mulf %227, %237 : vector<1x8xf32>
    %239 = arith.addf %236, %238 : vector<1x8xf32>
    %240 = math.tanh %239 : vector<1x8xf32>
    %cst_113 = arith.constant 1.000000e+00 : f32
    %241 = vector.broadcast %cst_113 : f32 to vector<1x8xf32>
    %242 = arith.subf %241, %235 : vector<1x8xf32>
    %243 = arith.mulf %242, %240 : vector<1x8xf32>
    %244 = arith.mulf %235, %214 : vector<1x8xf32>
    %245 = arith.addf %243, %244 : vector<1x8xf32>
    %c6_114 = arith.constant 6 : index
    %c0_115 = arith.constant 0 : index
    %246 = vector.load %arg16[%c6_114, %c0_115] : memref<8x8xf32, #tpu.memory_space<vmem>>, vector<1x8xf32>
    tpu.vector_store %arg16[%c6_114, %c0_115], %245 {strides = array<i32>} : memref<8x8xf32, #tpu.memory_space<vmem>>, vector<1x8xf32>,
    %c0_116 = arith.constant 0 : index
    %c0_117 = arith.constant 0 : index
    %247 = vector.load %arg7[%c0_116, %c0_117] : memref<8x24xf32, #tpu.memory_space<vmem>>, vector<8x24xf32>
    %cst_118 = arith.constant dense<0.000000e+00> : vector<1x24xf32>
    %248 = tpu.matmul %245, %247, %cst_118 {dimension_numbers = #tpu.dot_dimension_numbers<[1], [0], [0], [1], [0, 0, 1, 1], [], []>} : vector<1x8xf32>, vector<8x24xf32>, vector<1x24xf32> -> vector<1x24xf32>
    %c7 = arith.constant 7 : index
    %c0_119 = arith.constant 0 : index
    %249 = vector.load %arg15[%c7, %c0_119] : memref<8x24xf32, #tpu.memory_space<vmem>>, vector<1x24xf32>
    %250 = arith.addf %249, %248 : vector<1x24xf32>
    %251 = vector.extract_strided_slice %250 {offsets = [0, 0], sizes = [1, 8], strides = [1, 1]} : vector<1x24xf32> to vector<1x8xf32>
    %cst_120 = arith.constant 0.000000e+00 : f32
    %252 = vector.broadcast %cst_120 : f32 to vector<1x8xf32>
    %253 = arith.subf %252, %251 : vector<1x8xf32>
    %254 = math.exp %253 : vector<1x8xf32>
    %cst_121 = arith.constant 1.000000e+00 : f32
    %255 = vector.broadcast %cst_121 : f32 to vector<1x8xf32>
    %256 = arith.addf %255, %254 : vector<1x8xf32>
    %cst_122 = arith.constant 1.000000e+00 : f32
    %257 = vector.broadcast %cst_122 : f32 to vector<1x8xf32>
    %258 = arith.divf %257, %256 : vector<1x8xf32>
    %259 = vector.extract_strided_slice %250 {offsets = [0, 8], sizes = [1, 8], strides = [1, 1]} : vector<1x24xf32> to vector<1x8xf32>
    %cst_123 = arith.constant 0.000000e+00 : f32
    %260 = vector.broadcast %cst_123 : f32 to vector<1x8xf32>
    %261 = arith.subf %260, %259 : vector<1x8xf32>
    %262 = math.exp %261 : vector<1x8xf32>
    %cst_124 = arith.constant 1.000000e+00 : f32
    %263 = vector.broadcast %cst_124 : f32 to vector<1x8xf32>
    %264 = arith.addf %263, %262 : vector<1x8xf32>
    %cst_125 = arith.constant 1.000000e+00 : f32
    %265 = vector.broadcast %cst_125 : f32 to vector<1x8xf32>
    %266 = arith.divf %265, %264 : vector<1x8xf32>
    %267 = vector.extract_strided_slice %249 {offsets = [0, 16], sizes = [1, 8], strides = [1, 1]} : vector<1x24xf32> to vector<1x8xf32>
    %268 = vector.extract_strided_slice %248 {offsets = [0, 16], sizes = [1, 8], strides = [1, 1]} : vector<1x24xf32> to vector<1x8xf32>
    %269 = arith.mulf %258, %268 : vector<1x8xf32>
    %270 = arith.addf %267, %269 : vector<1x8xf32>
    %271 = math.tanh %270 : vector<1x8xf32>
    %cst_126 = arith.constant 1.000000e+00 : f32
    %272 = vector.broadcast %cst_126 : f32 to vector<1x8xf32>
    %273 = arith.subf %272, %266 : vector<1x8xf32>
    %274 = arith.mulf %273, %271 : vector<1x8xf32>
    %275 = arith.mulf %266, %245 : vector<1x8xf32>
    %276 = arith.addf %274, %275 : vector<1x8xf32>
    %c7_127 = arith.constant 7 : index
    %c0_128 = arith.constant 0 : index
    %277 = vector.load %arg16[%c7_127, %c0_128] : memref<8x8xf32, #tpu.memory_space<vmem>>, vector<1x8xf32>
    tpu.vector_store %arg16[%c7_127, %c0_128], %276 {strides = array<i32>} : memref<8x8xf32, #tpu.memory_space<vmem>>, vector<1x8xf32>,
    %c0_129 = arith.constant 0 : index
    %c0_130 = arith.constant 0 : index
    %278 = vector.load %arg16[%c0_129, %c0_130] : memref<8x8xf32, #tpu.memory_space<vmem>>, vector<8x8xf32>
    %c0_131 = arith.constant 0 : index
    %c0_132 = arith.constant 0 : index
    %279 = vector.load %arg8[%c0_131, %c0_132] : memref<8x128xf32, #tpu.memory_space<vmem>>, vector<8x128xf32>
    %cst_133 = arith.constant dense<0.000000e+00> : vector<8x128xf32>
    %280 = tpu.matmul %278, %279, %cst_133 {dimension_numbers = #tpu.dot_dimension_numbers<[1], [0], [0], [1], [0, 0, 1, 1], [], []>} : vector<8x8xf32>, vector<8x128xf32>, vector<8x128xf32> -> vector<8x128xf32>
    %c0_134 = arith.constant 0 : index
    %c0_135 = arith.constant 0 : index
    %281 = vector.load %arg9[%c0_134, %c0_135] : memref<60x128xf32, #tpu.memory_space<vmem>>, vector<60x128xf32>
    %cst_136 = arith.constant dense<0.000000e+00> : vector<8x128xf32>
    %282 = tpu.matmul %25, %281, %cst_136 {dimension_numbers = #tpu.dot_dimension_numbers<[1], [0], [0], [1], [0, 0, 1, 1], [], []>} : vector<8x60xf32>, vector<60x128xf32>, vector<8x128xf32> -> vector<8x128xf32>
    %283 = arith.addf %280, %282 : vector<8x128xf32>
    %284 = vector.extract_strided_slice %283 {offsets = [0, 0], sizes = [8, 64], strides = [1, 1]} : vector<8x128xf32> to vector<8x64xf32>
    %285 = arith.addf %284, %14 : vector<8x64xf32>
    %c0_137 = arith.constant 0 : index
    %c0_138 = arith.constant 0 : index
    %286 = vector.load %arg10[%c0_137, %c0_138] : memref<2x64xf32, #tpu.memory_space<vmem>>, vector<1x64xf32>
    %c0_139 = arith.constant 0 : index
    %c0_140 = arith.constant 0 : index
    %287 = vector.load %arg11[%c0_139, %c0_140] : memref<2x64xf32, #tpu.memory_space<vmem>>, vector<1x64xf32>
    %cst_141 = arith.constant dense<0.000000e+00> : vector<8xf32>
    %288 = vector.multi_reduction <add>, %285, %cst_141 [1] : vector<8x64xf32> to vector<8xf32>
    %289 = vector.shape_cast %288 : vector<8xf32> to vector<8x1xf32>
    %cst_142 = arith.constant 6.400000e+01 : f32
    %290 = vector.broadcast %cst_142 : f32 to vector<8x1xf32>
    %291 = arith.divf %289, %290 : vector<8x1xf32>
    %292 = vector.broadcast %291 : vector<8x1xf32> to vector<8x64xf32>
    %293 = arith.subf %285, %292 : vector<8x64xf32>
    %294 = arith.mulf %293, %293 : vector<8x64xf32>
    %cst_143 = arith.constant dense<0.000000e+00> : vector<8xf32>
    %295 = vector.multi_reduction <add>, %294, %cst_143 [1] : vector<8x64xf32> to vector<8xf32>
    %296 = vector.shape_cast %295 : vector<8xf32> to vector<8x1xf32>
    %cst_144 = arith.constant 6.400000e+01 : f32
    %297 = vector.broadcast %cst_144 : f32 to vector<8x1xf32>
    %298 = arith.divf %296, %297 : vector<8x1xf32>
    %cst_145 = arith.constant 9.99999974E-6 : f32
    %299 = vector.broadcast %cst_145 : f32 to vector<8x1xf32>
    %300 = arith.addf %298, %299 : vector<8x1xf32>
    %301 = math.rsqrt %300 : vector<8x1xf32>
    %302 = vector.broadcast %301 : vector<8x1xf32> to vector<8x64xf32>
    %303 = arith.mulf %293, %302 : vector<8x64xf32>
    %304 = vector.broadcast %286 : vector<1x64xf32> to vector<8x64xf32>
    %305 = arith.mulf %303, %304 : vector<8x64xf32>
    %306 = vector.broadcast %287 : vector<1x64xf32> to vector<8x64xf32>
    %307 = arith.addf %305, %306 : vector<8x64xf32>
    %c0_146 = arith.constant 0 : index
    %c0_147 = arith.constant 0 : index
    %c0_148 = arith.constant 0 : index
    %308 = vector.load %arg12[%c0_146, %c0_147, %c0_148] : memref<1x8x64xf32, #tpu.memory_space<vmem>>, vector<1x8x64xf32>
    %309 = vector.shape_cast %308 : vector<1x8x64xf32> to vector<8x64xf32>
    %310 = vector.shape_cast %307 : vector<8x64xf32> to vector<1x8x64xf32>
    tpu.vector_store %arg12[%c0_146, %c0_147, %c0_148], %310 {strides = array<i32>} : memref<1x8x64xf32, #tpu.memory_space<vmem>>, vector<1x8x64xf32>,
    %311 = vector.extract_strided_slice %283 {offsets = [0, 64], sizes = [8, 64], strides = [1, 1]} : vector<8x128xf32> to vector<8x64xf32>
    %312 = arith.addf %311, %14 : vector<8x64xf32>
    %c1_149 = arith.constant 1 : index
    %c0_150 = arith.constant 0 : index
    %313 = vector.load %arg10[%c1_149, %c0_150] : memref<2x64xf32, #tpu.memory_space<vmem>>, vector<1x64xf32>
    %c1_151 = arith.constant 1 : index
    %c0_152 = arith.constant 0 : index
    %314 = vector.load %arg11[%c1_151, %c0_152] : memref<2x64xf32, #tpu.memory_space<vmem>>, vector<1x64xf32>
    %cst_153 = arith.constant dense<0.000000e+00> : vector<8xf32>
    %315 = vector.multi_reduction <add>, %312, %cst_153 [1] : vector<8x64xf32> to vector<8xf32>
    %316 = vector.shape_cast %315 : vector<8xf32> to vector<8x1xf32>
    %cst_154 = arith.constant 6.400000e+01 : f32
    %317 = vector.broadcast %cst_154 : f32 to vector<8x1xf32>
    %318 = arith.divf %316, %317 : vector<8x1xf32>
    %319 = vector.broadcast %318 : vector<8x1xf32> to vector<8x64xf32>
    %320 = arith.subf %312, %319 : vector<8x64xf32>
    %321 = arith.mulf %320, %320 : vector<8x64xf32>
    %cst_155 = arith.constant dense<0.000000e+00> : vector<8xf32>
    %322 = vector.multi_reduction <add>, %321, %cst_155 [1] : vector<8x64xf32> to vector<8xf32>
    %323 = vector.shape_cast %322 : vector<8xf32> to vector<8x1xf32>
    %cst_156 = arith.constant 6.400000e+01 : f32
    %324 = vector.broadcast %cst_156 : f32 to vector<8x1xf32>
    %325 = arith.divf %323, %324 : vector<8x1xf32>
    %cst_157 = arith.constant 9.99999974E-6 : f32
    %326 = vector.broadcast %cst_157 : f32 to vector<8x1xf32>
    %327 = arith.addf %325, %326 : vector<8x1xf32>
    %328 = math.rsqrt %327 : vector<8x1xf32>
    %329 = vector.broadcast %328 : vector<8x1xf32> to vector<8x64xf32>
    %330 = arith.mulf %320, %329 : vector<8x64xf32>
    %331 = vector.broadcast %313 : vector<1x64xf32> to vector<8x64xf32>
    %332 = arith.mulf %330, %331 : vector<8x64xf32>
    %333 = vector.broadcast %314 : vector<1x64xf32> to vector<8x64xf32>
    %334 = arith.addf %332, %333 : vector<8x64xf32>
    %c0_158 = arith.constant 0 : index
    %c0_159 = arith.constant 0 : index
    %c0_160 = arith.constant 0 : index
    %335 = vector.load %arg13[%c0_158, %c0_159, %c0_160] : memref<1x8x64xf32, #tpu.memory_space<vmem>>, vector<1x8x64xf32>
    %336 = vector.shape_cast %335 : vector<1x8x64xf32> to vector<8x64xf32>
    %337 = vector.shape_cast %334 : vector<8x64xf32> to vector<1x8x64xf32>
    tpu.vector_store %arg13[%c0_158, %c0_159, %c0_160], %337 {strides = array<i32>} : memref<1x8x64xf32, #tpu.memory_space<vmem>>, vector<1x8x64xf32>,
    return
  }
  func.func @transform_0(%arg0: i32) -> (i32, i32, i32) {
    %c0_i32 = arith.constant 0 : i32
    %c0_i32_0 = arith.constant 0 : i32
    %c0_i32_1 = arith.constant 0 : i32
    return %arg0, %c0_i32, %c0_i32_0 : i32, i32, i32
  }
  func.func @transform_1(%arg0: i32) -> (i32, i32, i32) {
    %c0_i32 = arith.constant 0 : i32
    %c0_i32_0 = arith.constant 0 : i32
    %c0_i32_1 = arith.constant 0 : i32
    return %arg0, %c0_i32, %c0_i32_0 : i32, i32, i32
  }
  func.func @transform_2(%arg0: i32) -> (i32, i32) {
    %c0_i32 = arith.constant 0 : i32
    %c0_i32_0 = arith.constant 0 : i32
    %c0_i32_1 = arith.constant 0 : i32
    return %c0_i32, %c0_i32_0 : i32, i32
  }
  func.func @transform_3(%arg0: i32) -> (i32, i32) {
    %c0_i32 = arith.constant 0 : i32
    %c0_i32_0 = arith.constant 0 : i32
    %c0_i32_1 = arith.constant 0 : i32
    return %c0_i32, %c0_i32_0 : i32, i32
  }
  func.func @transform_4(%arg0: i32) -> (i32, i32) {
    %c0_i32 = arith.constant 0 : i32
    %c0_i32_0 = arith.constant 0 : i32
    %c0_i32_1 = arith.constant 0 : i32
    return %c0_i32, %c0_i32_0 : i32, i32
  }
  func.func @transform_5(%arg0: i32) -> (i32, i32) {
    %c0_i32 = arith.constant 0 : i32
    %c0_i32_0 = arith.constant 0 : i32
    %c0_i32_1 = arith.constant 0 : i32
    return %c0_i32, %c0_i32_0 : i32, i32
  }
  func.func @transform_6(%arg0: i32) -> (i32, i32) {
    %c0_i32 = arith.constant 0 : i32
    %c0_i32_0 = arith.constant 0 : i32
    %c0_i32_1 = arith.constant 0 : i32
    return %c0_i32, %c0_i32_0 : i32, i32
  }
  func.func @transform_7(%arg0: i32) -> (i32, i32) {
    %c0_i32 = arith.constant 0 : i32
    %c0_i32_0 = arith.constant 0 : i32
    %c0_i32_1 = arith.constant 0 : i32
    return %c0_i32, %c0_i32_0 : i32, i32
  }
  func.func @transform_8(%arg0: i32) -> (i32, i32) {
    %c0_i32 = arith.constant 0 : i32
    %c0_i32_0 = arith.constant 0 : i32
    %c0_i32_1 = arith.constant 0 : i32
    return %c0_i32, %c0_i32_0 : i32, i32
  }
  func.func @transform_9(%arg0: i32) -> (i32, i32) {
    %c0_i32 = arith.constant 0 : i32
    %c0_i32_0 = arith.constant 0 : i32
    %c0_i32_1 = arith.constant 0 : i32
    return %c0_i32, %c0_i32_0 : i32, i32
  }
  func.func @transform_10(%arg0: i32) -> (i32, i32) {
    %c0_i32 = arith.constant 0 : i32
    %c0_i32_0 = arith.constant 0 : i32
    %c0_i32_1 = arith.constant 0 : i32
    return %c0_i32, %c0_i32_0 : i32, i32
  }
  func.func @transform_11(%arg0: i32) -> (i32, i32, i32) {
    %c0_i32 = arith.constant 0 : i32
    %c0_i32_0 = arith.constant 0 : i32
    %c0_i32_1 = arith.constant 0 : i32
    return %arg0, %c0_i32, %c0_i32_0 : i32, i32, i32
  }
  func.func @transform_12(%arg0: i32) -> (i32, i32, i32) {
    %c0_i32 = arith.constant 0 : i32
    %c0_i32_0 = arith.constant 0 : i32
    %c0_i32_1 = arith.constant 0 : i32
    return %arg0, %c0_i32, %c0_i32_0 : i32, i32, i32
  }
  func.func @transform_13(%arg0: i32) -> (i32, i32, i32) {
    %c0_i32 = arith.constant 0 : i32
    %c0_i32_0 = arith.constant 0 : i32
    %c0_i32_1 = arith.constant 0 : i32
    return %arg0, %c0_i32, %c0_i32_0 : i32, i32, i32
  }
}

module attributes {stable_mosaic.version = 11 : i64} {
  func.func @attn_ffn_kernel(%arg0: i32, %arg1: memref<1x8x64xf32, #tpu.memory_space<vmem>>, %arg2: memref<1x8x64xf32, #tpu.memory_space<vmem>>, %arg3: memref<1x8x64xf32, #tpu.memory_space<vmem>>, %arg4: memref<1x8x64xf32, #tpu.memory_space<vmem>>, %arg5: memref<1x8x64xf32, #tpu.memory_space<vmem>>, %arg6: memref<64x64xf32, #tpu.memory_space<vmem>>, %arg7: memref<1x1xf32, #tpu.memory_space<vmem>>, %arg8: memref<1x64xf32, #tpu.memory_space<vmem>>, %arg9: memref<64x128xf32, #tpu.memory_space<vmem>>, %arg10: memref<64x128xf32, #tpu.memory_space<vmem>>, %arg11: memref<128x64xf32, #tpu.memory_space<vmem>>, %arg12: memref<1x1xf32, #tpu.memory_space<vmem>>, %arg13: memref<1x8x64xf32, #tpu.memory_space<vmem>>) attributes {dimension_semantics = [#tpu.dimension_semantics<parallel>], iteration_bounds = array<i64: 2>, scalar_prefetch = 0 : i64, scratch_operands = 0 : i64, tpu.core_type = #tpu.core_type<tc>, window_params = [{transform_indices = @transform_0, window_bounds = array<i64: 1, 8, 64>}, {transform_indices = @transform_1, window_bounds = array<i64: 1, 8, 64>}, {transform_indices = @transform_2, window_bounds = array<i64: 1, 8, 64>}, {transform_indices = @transform_3, window_bounds = array<i64: 1, 8, 64>}, {transform_indices = @transform_4, window_bounds = array<i64: 1, 8, 64>}, {pipeline_mode = #tpu.pipeline_mode<synchronous>, transform_indices = @transform_5, window_bounds = array<i64: 64, 64>}, {pipeline_mode = #tpu.pipeline_mode<synchronous>, transform_indices = @transform_6, window_bounds = array<i64: 1, 1>}, {pipeline_mode = #tpu.pipeline_mode<synchronous>, transform_indices = @transform_7, window_bounds = array<i64: 1, 64>}, {pipeline_mode = #tpu.pipeline_mode<synchronous>, transform_indices = @transform_8, window_bounds = array<i64: 64, 128>}, {pipeline_mode = #tpu.pipeline_mode<synchronous>, transform_indices = @transform_9, window_bounds = array<i64: 64, 128>}, {pipeline_mode = #tpu.pipeline_mode<synchronous>, transform_indices = @transform_10, window_bounds = array<i64: 128, 64>}, {pipeline_mode = #tpu.pipeline_mode<synchronous>, transform_indices = @transform_11, window_bounds = array<i64: 1, 1>}, {transform_indices = @transform_12, window_bounds = array<i64: 1, 8, 64>}]} {
    %c0 = arith.constant 0 : index
    %c0_0 = arith.constant 0 : index
    %c0_1 = arith.constant 0 : index
    %0 = vector.load %arg1[%c0, %c0_0, %c0_1] : memref<1x8x64xf32, #tpu.memory_space<vmem>>, vector<1x8x64xf32>
    %1 = vector.shape_cast %0 : vector<1x8x64xf32> to vector<8x64xf32>
    %c0_2 = arith.constant 0 : index
    %c0_3 = arith.constant 0 : index
    %c0_4 = arith.constant 0 : index
    %2 = vector.load %arg2[%c0_2, %c0_3, %c0_4] : memref<1x8x64xf32, #tpu.memory_space<vmem>>, vector<1x8x64xf32>
    %3 = vector.shape_cast %2 : vector<1x8x64xf32> to vector<8x64xf32>
    %c0_5 = arith.constant 0 : index
    %c0_6 = arith.constant 0 : index
    %c0_7 = arith.constant 0 : index
    %4 = vector.load %arg3[%c0_5, %c0_6, %c0_7] : memref<1x8x64xf32, #tpu.memory_space<vmem>>, vector<1x8x64xf32>
    %5 = vector.shape_cast %4 : vector<1x8x64xf32> to vector<8x64xf32>
    %6 = tpu.iota {dimensions = array<i32: 0>} : vector<8x8xi32>
    %7 = tpu.iota {dimensions = array<i32: 1>} : vector<8x8xi32>
    %8 = arith.cmpi sle, %7, %6 : vector<8x8xi32>
    %9 = vector.extract_strided_slice %1 {offsets = [0, 0], sizes = [8, 32], strides = [1, 1]} : vector<8x64xf32> to vector<8x32xf32>
    %10 = vector.extract_strided_slice %3 {offsets = [0, 0], sizes = [8, 32], strides = [1, 1]} : vector<8x64xf32> to vector<8x32xf32>
    %11 = vector.extract_strided_slice %5 {offsets = [0, 0], sizes = [8, 32], strides = [1, 1]} : vector<8x64xf32> to vector<8x32xf32>
    %cst = arith.constant dense<0.000000e+00> : vector<8x8xf32>
    %12 = tpu.matmul %9, %10, %cst {dimension_numbers = #tpu.dot_dimension_numbers<[1], [1], [0], [0], [0, 0, 1, 0], [], []>} : vector<8x32xf32>, vector<8x32xf32>, vector<8x8xf32> -> vector<8x8xf32>
    %cst_8 = arith.constant 0.353553385 : f32
    %13 = vector.broadcast %cst_8 : f32 to vector<8x8xf32>
    %14 = arith.mulf %12, %13 : vector<8x8xf32>
    %cst_9 = arith.constant -1.000000e+30 : f32
    %15 = vector.broadcast %cst_9 : f32 to vector<8x8xf32>
    %16 = arith.select %8, %14, %15 : vector<8x8xi1>, vector<8x8xf32>
    %cst_10 = arith.constant dense<0xFF800000> : vector<8xf32>
    %17 = vector.multi_reduction <maximumf>, %16, %cst_10 [1] : vector<8x8xf32> to vector<8xf32>
    %18 = vector.shape_cast %17 : vector<8xf32> to vector<8x1xf32>
    %19 = vector.broadcast %18 : vector<8x1xf32> to vector<8x8xf32>
    %20 = arith.subf %16, %19 : vector<8x8xf32>
    %21 = math.exp %20 : vector<8x8xf32>
    %cst_11 = arith.constant dense<0.000000e+00> : vector<8xf32>
    %22 = vector.multi_reduction <add>, %21, %cst_11 [1] : vector<8x8xf32> to vector<8xf32>
    %23 = vector.shape_cast %22 : vector<8xf32> to vector<8x1xf32>
    %24 = tpu.reciprocal %23 {approx = true} : vector<8x1xf32> -> vector<8x1xf32>
    %25 = vector.broadcast %24 : vector<8x1xf32> to vector<8x8xf32>
    %26 = arith.mulf %21, %25 : vector<8x8xf32>
    %cst_12 = arith.constant dense<0.000000e+00> : vector<8x32xf32>
    %27 = tpu.matmul %26, %11, %cst_12 {dimension_numbers = #tpu.dot_dimension_numbers<[1], [0], [0], [1], [0, 0, 1, 1], [], []>} : vector<8x8xf32>, vector<8x32xf32>, vector<8x32xf32> -> vector<8x32xf32>
    %28 = vector.extract_strided_slice %1 {offsets = [0, 32], sizes = [8, 32], strides = [1, 1]} : vector<8x64xf32> to vector<8x32xf32>
    %29 = vector.extract_strided_slice %3 {offsets = [0, 32], sizes = [8, 32], strides = [1, 1]} : vector<8x64xf32> to vector<8x32xf32>
    %30 = vector.extract_strided_slice %5 {offsets = [0, 32], sizes = [8, 32], strides = [1, 1]} : vector<8x64xf32> to vector<8x32xf32>
    %cst_13 = arith.constant dense<0.000000e+00> : vector<8x8xf32>
    %31 = tpu.matmul %28, %29, %cst_13 {dimension_numbers = #tpu.dot_dimension_numbers<[1], [1], [0], [0], [0, 0, 1, 0], [], []>} : vector<8x32xf32>, vector<8x32xf32>, vector<8x8xf32> -> vector<8x8xf32>
    %cst_14 = arith.constant 0.353553385 : f32
    %32 = vector.broadcast %cst_14 : f32 to vector<8x8xf32>
    %33 = arith.mulf %31, %32 : vector<8x8xf32>
    %cst_15 = arith.constant -1.000000e+30 : f32
    %34 = vector.broadcast %cst_15 : f32 to vector<8x8xf32>
    %35 = arith.select %8, %33, %34 : vector<8x8xi1>, vector<8x8xf32>
    %cst_16 = arith.constant dense<0xFF800000> : vector<8xf32>
    %36 = vector.multi_reduction <maximumf>, %35, %cst_16 [1] : vector<8x8xf32> to vector<8xf32>
    %37 = vector.shape_cast %36 : vector<8xf32> to vector<8x1xf32>
    %38 = vector.broadcast %37 : vector<8x1xf32> to vector<8x8xf32>
    %39 = arith.subf %35, %38 : vector<8x8xf32>
    %40 = math.exp %39 : vector<8x8xf32>
    %cst_17 = arith.constant dense<0.000000e+00> : vector<8xf32>
    %41 = vector.multi_reduction <add>, %40, %cst_17 [1] : vector<8x8xf32> to vector<8xf32>
    %42 = vector.shape_cast %41 : vector<8xf32> to vector<8x1xf32>
    %43 = tpu.reciprocal %42 {approx = true} : vector<8x1xf32> -> vector<8x1xf32>
    %44 = vector.broadcast %43 : vector<8x1xf32> to vector<8x8xf32>
    %45 = arith.mulf %40, %44 : vector<8x8xf32>
    %cst_18 = arith.constant dense<0.000000e+00> : vector<8x32xf32>
    %46 = tpu.matmul %45, %30, %cst_18 {dimension_numbers = #tpu.dot_dimension_numbers<[1], [0], [0], [1], [0, 0, 1, 1], [], []>} : vector<8x8xf32>, vector<8x32xf32>, vector<8x32xf32> -> vector<8x32xf32>
    %47 = tpu.concatenate %27, %46 in 1 : vector<8x32xf32>, vector<8x32xf32> -> vector<8x64xf32>
    %c0_19 = arith.constant 0 : index
    %c0_20 = arith.constant 0 : index
    %c0_21 = arith.constant 0 : index
    %48 = vector.load %arg4[%c0_19, %c0_20, %c0_21] : memref<1x8x64xf32, #tpu.memory_space<vmem>>, vector<1x8x64xf32>
    %49 = vector.shape_cast %48 : vector<1x8x64xf32> to vector<8x64xf32>
    %c0_22 = arith.constant 0 : index
    %c0_23 = arith.constant 0 : index
    %50 = vector.load %arg6[%c0_22, %c0_23] : memref<64x64xf32, #tpu.memory_space<vmem>>, vector<64x64xf32>
    %cst_24 = arith.constant dense<0.000000e+00> : vector<8x64xf32>
    %51 = tpu.matmul %47, %50, %cst_24 {dimension_numbers = #tpu.dot_dimension_numbers<[1], [0], [0], [1], [0, 0, 1, 1], [], []>} : vector<8x64xf32>, vector<64x64xf32>, vector<8x64xf32> -> vector<8x64xf32>
    %c0_25 = arith.constant 0 : index
    %c0_26 = arith.constant 0 : index
    %52 = vector.load %arg7[%c0_25, %c0_26] : memref<1x1xf32, #tpu.memory_space<vmem>>, vector<1x1xf32>
    %53 = vector.broadcast %52 : vector<1x1xf32> to vector<8x64xf32>
    %54 = arith.mulf %49, %53 : vector<8x64xf32>
    %55 = arith.addf %51, %54 : vector<8x64xf32>
    %56 = arith.mulf %55, %55 : vector<8x64xf32>
    %cst_27 = arith.constant dense<0.000000e+00> : vector<8xf32>
    %57 = vector.multi_reduction <add>, %56, %cst_27 [1] : vector<8x64xf32> to vector<8xf32>
    %58 = vector.shape_cast %57 : vector<8xf32> to vector<8x1xf32>
    %cst_28 = arith.constant 6.400000e+01 : f32
    %59 = vector.broadcast %cst_28 : f32 to vector<8x1xf32>
    %60 = arith.divf %58, %59 : vector<8x1xf32>
    %cst_29 = arith.constant 9.99999997E-7 : f32
    %61 = vector.broadcast %cst_29 : f32 to vector<8x1xf32>
    %62 = arith.addf %60, %61 : vector<8x1xf32>
    %63 = math.rsqrt %62 : vector<8x1xf32>
    %64 = vector.broadcast %63 : vector<8x1xf32> to vector<8x64xf32>
    %65 = arith.mulf %55, %64 : vector<8x64xf32>
    %c0_30 = arith.constant 0 : index
    %c0_31 = arith.constant 0 : index
    %66 = vector.load %arg8[%c0_30, %c0_31] : memref<1x64xf32, #tpu.memory_space<vmem>>, vector<1x64xf32>
    %67 = vector.broadcast %66 : vector<1x64xf32> to vector<8x64xf32>
    %68 = arith.mulf %65, %67 : vector<8x64xf32>
    %c0_32 = arith.constant 0 : index
    %c0_33 = arith.constant 0 : index
    %69 = vector.load %arg9[%c0_32, %c0_33] : memref<64x128xf32, #tpu.memory_space<vmem>>, vector<64x128xf32>
    %cst_34 = arith.constant dense<0.000000e+00> : vector<8x128xf32>
    %70 = tpu.matmul %68, %69, %cst_34 {dimension_numbers = #tpu.dot_dimension_numbers<[1], [0], [0], [1], [0, 0, 1, 1], [], []>} : vector<8x64xf32>, vector<64x128xf32>, vector<8x128xf32> -> vector<8x128xf32>
    %c0_35 = arith.constant 0 : index
    %c0_36 = arith.constant 0 : index
    %71 = vector.load %arg10[%c0_35, %c0_36] : memref<64x128xf32, #tpu.memory_space<vmem>>, vector<64x128xf32>
    %cst_37 = arith.constant dense<0.000000e+00> : vector<8x128xf32>
    %72 = tpu.matmul %68, %71, %cst_37 {dimension_numbers = #tpu.dot_dimension_numbers<[1], [0], [0], [1], [0, 0, 1, 1], [], []>} : vector<8x64xf32>, vector<64x128xf32>, vector<8x128xf32> -> vector<8x128xf32>
    %73 = math.exp %72 : vector<8x128xf32>
    %74 = math.tanh %73 : vector<8x128xf32>
    %75 = arith.mulf %74, %72 : vector<8x128xf32>
    %76 = arith.mulf %70, %75 : vector<8x128xf32>
    %c0_38 = arith.constant 0 : index
    %c0_39 = arith.constant 0 : index
    %77 = vector.load %arg11[%c0_38, %c0_39] : memref<128x64xf32, #tpu.memory_space<vmem>>, vector<128x64xf32>
    %cst_40 = arith.constant dense<0.000000e+00> : vector<8x64xf32>
    %78 = tpu.matmul %76, %77, %cst_40 {dimension_numbers = #tpu.dot_dimension_numbers<[1], [0], [0], [1], [0, 0, 1, 1], [], []>} : vector<8x128xf32>, vector<128x64xf32>, vector<8x64xf32> -> vector<8x64xf32>
    %c0_41 = arith.constant 0 : index
    %c0_42 = arith.constant 0 : index
    %c0_43 = arith.constant 0 : index
    %79 = vector.load %arg5[%c0_41, %c0_42, %c0_43] : memref<1x8x64xf32, #tpu.memory_space<vmem>>, vector<1x8x64xf32>
    %80 = vector.shape_cast %79 : vector<1x8x64xf32> to vector<8x64xf32>
    %81 = arith.mulf %78, %80 : vector<8x64xf32>
    %c0_44 = arith.constant 0 : index
    %c0_45 = arith.constant 0 : index
    %82 = vector.load %arg12[%c0_44, %c0_45] : memref<1x1xf32, #tpu.memory_space<vmem>>, vector<1x1xf32>
    %83 = vector.broadcast %82 : vector<1x1xf32> to vector<8x64xf32>
    %84 = arith.mulf %55, %83 : vector<8x64xf32>
    %85 = arith.addf %81, %84 : vector<8x64xf32>
    %c0_46 = arith.constant 0 : index
    %c0_47 = arith.constant 0 : index
    %c0_48 = arith.constant 0 : index
    %86 = vector.load %arg13[%c0_46, %c0_47, %c0_48] : memref<1x8x64xf32, #tpu.memory_space<vmem>>, vector<1x8x64xf32>
    %87 = vector.shape_cast %86 : vector<1x8x64xf32> to vector<8x64xf32>
    %88 = vector.shape_cast %85 : vector<8x64xf32> to vector<1x8x64xf32>
    tpu.vector_store %arg13[%c0_46, %c0_47, %c0_48], %88 {strides = array<i32>} : memref<1x8x64xf32, #tpu.memory_space<vmem>>, vector<1x8x64xf32>,
    return
  }
  func.func @transform_0(%arg0: i32) -> (i32, i32, i32) {
    %c0_i32 = arith.constant 0 : i32
    %c0_i32_0 = arith.constant 0 : i32
    %c0_i32_1 = arith.constant 0 : i32
    return %arg0, %c0_i32, %c0_i32_0 : i32, i32, i32
  }
  func.func @transform_1(%arg0: i32) -> (i32, i32, i32) {
    %c0_i32 = arith.constant 0 : i32
    %c0_i32_0 = arith.constant 0 : i32
    %c0_i32_1 = arith.constant 0 : i32
    return %arg0, %c0_i32, %c0_i32_0 : i32, i32, i32
  }
  func.func @transform_2(%arg0: i32) -> (i32, i32, i32) {
    %c0_i32 = arith.constant 0 : i32
    %c0_i32_0 = arith.constant 0 : i32
    %c0_i32_1 = arith.constant 0 : i32
    return %arg0, %c0_i32, %c0_i32_0 : i32, i32, i32
  }
  func.func @transform_3(%arg0: i32) -> (i32, i32, i32) {
    %c0_i32 = arith.constant 0 : i32
    %c0_i32_0 = arith.constant 0 : i32
    %c0_i32_1 = arith.constant 0 : i32
    return %arg0, %c0_i32, %c0_i32_0 : i32, i32, i32
  }
  func.func @transform_4(%arg0: i32) -> (i32, i32, i32) {
    %c0_i32 = arith.constant 0 : i32
    %c0_i32_0 = arith.constant 0 : i32
    %c0_i32_1 = arith.constant 0 : i32
    return %arg0, %c0_i32, %c0_i32_0 : i32, i32, i32
  }
  func.func @transform_5(%arg0: i32) -> (i32, i32) {
    %c0_i32 = arith.constant 0 : i32
    %c0_i32_0 = arith.constant 0 : i32
    %c0_i32_1 = arith.constant 0 : i32
    return %c0_i32, %c0_i32_0 : i32, i32
  }
  func.func @transform_6(%arg0: i32) -> (i32, i32) {
    %c0_i32 = arith.constant 0 : i32
    %c0_i32_0 = arith.constant 0 : i32
    %c0_i32_1 = arith.constant 0 : i32
    return %c0_i32, %c0_i32_0 : i32, i32
  }
  func.func @transform_7(%arg0: i32) -> (i32, i32) {
    %c0_i32 = arith.constant 0 : i32
    %c0_i32_0 = arith.constant 0 : i32
    %c0_i32_1 = arith.constant 0 : i32
    return %c0_i32, %c0_i32_0 : i32, i32
  }
  func.func @transform_8(%arg0: i32) -> (i32, i32) {
    %c0_i32 = arith.constant 0 : i32
    %c0_i32_0 = arith.constant 0 : i32
    %c0_i32_1 = arith.constant 0 : i32
    return %c0_i32, %c0_i32_0 : i32, i32
  }
  func.func @transform_9(%arg0: i32) -> (i32, i32) {
    %c0_i32 = arith.constant 0 : i32
    %c0_i32_0 = arith.constant 0 : i32
    %c0_i32_1 = arith.constant 0 : i32
    return %c0_i32, %c0_i32_0 : i32, i32
  }
  func.func @transform_10(%arg0: i32) -> (i32, i32) {
    %c0_i32 = arith.constant 0 : i32
    %c0_i32_0 = arith.constant 0 : i32
    %c0_i32_1 = arith.constant 0 : i32
    return %c0_i32, %c0_i32_0 : i32, i32
  }
  func.func @transform_11(%arg0: i32) -> (i32, i32) {
    %c0_i32 = arith.constant 0 : i32
    %c0_i32_0 = arith.constant 0 : i32
    %c0_i32_1 = arith.constant 0 : i32
    return %c0_i32, %c0_i32_0 : i32, i32
  }
  func.func @transform_12(%arg0: i32) -> (i32, i32, i32) {
    %c0_i32 = arith.constant 0 : i32
    %c0_i32_0 = arith.constant 0 : i32
    %c0_i32_1 = arith.constant 0 : i32
    return %arg0, %c0_i32, %c0_i32_0 : i32, i32, i32
  }
}

</mosaic_0001>

<llo_original>
// kernel: decoder_layer_pallas.3
$region0: #{decoder_layer_pallas.3}
  #allocation0 [shape = 'u32[]', space=smem, size = 0x4, offset = 0x4, fixed_abs, tag = 'smem constant byte address 0x4 - core index']
  #allocation1 [shape = 'u32[72,128]{1,0:T(1,128)}', space=vmem, size = 0x9000, scoped, tag = 'internal scratch']
  #allocation2 [shape = 'f32[1,1]{1,0:T(1,128)S(1)}', space=vmem, size = 0x200, scoped, tag = 'scoped memory for decoder_layer_pallas.3']
  #allocation3 [shape = 'f32[1,1]{1,0:T(1,128)S(1)}', space=vmem, size = 0x200, scoped, tag = 'scoped memory for decoder_layer_pallas.3']
  %s0 = inlined_call_operand.vmem [shape: f32[2,8,64], index: 0, kind: input, shape index: {}]
  %s1 = inlined_call_operand.vmem [shape: f32[2,8,64], index: 1, kind: input, shape index: {}]
  %s2 = inlined_call_operand.vmem [shape: f32[2,8,64], index: 2, kind: input, shape index: {}]
  %s3 = inlined_call_operand.vmem [shape: f32[2,8,64], index: 3, kind: input, shape index: {}]
  %s4 = inlined_call_operand.vmem [shape: f32[2,8,64], index: 4, kind: input, shape index: {}]
  %s5 = inlined_call_operand.vmem [shape: f32[64,64], index: 5, kind: input, shape index: {}]
  %s6 = inlined_call_operand.<no memory space> [shape: f32[1,1], index: 6, kind: input, shape index: {}]
  %s7 = inlined_call_operand.vmem [shape: f32[1,64], index: 7, kind: input, shape index: {}]
  %s8 = inlined_call_operand.vmem [shape: f32[64,128], index: 8, kind: input, shape index: {}]
  %s9 = inlined_call_operand.vmem [shape: f32[64,128], index: 9, kind: input, shape index: {}]
  %s10 = inlined_call_operand.vmem [shape: f32[128,64], index: 10, kind: input, shape index: {}]
  %s11 = inlined_call_operand.<no memory space> [shape: f32[1,1], index: 11, kind: input, shape index: {}]
  %s12 = inlined_call_operand.hbm [shape: f32[2,8,64], index: 12, kind: output, shape index: {}]
  %s13 = sld [smem:[#allocation0]]
  $region81: #{decoder_layer_pallas.3} parent=0
    _
  %s15 = ssub.s32 1, %s13
  %s16 = scalar_select 0, %s15, %s13
  %v17 = vstv %s6
  %18 = vst [vmem:[#allocation2] sm:$0x1] %v17
  %v19 = vstv %s11
  %20 = vst [vmem:[#allocation3] sm:$0x1] %v19
  $region1: #{decoder_layer_pallas.3} parent=0
    #allocation4 [shape = 'u8[8192]{0}', space=vmem, size = 0x2000, scoped, tag = 'output window, operand 0']
    #allocation5 [shape = 's32[2]{0}', space=sflag, size = 0x8, scoped, tag = 'scoped memory for decoder_layer_pallas.3']
    %21 = vsyncpa [#allocation5], 0
    %s22 = scalar_lea.sflag [#allocation5], 1
    %23 = vsyncpa %s22, 0
    loop: start=0, step=1, limit=4
    $region2: #{decoder_layer_pallas.3} parent=1 // loop_pre_header
      _
    $region3: #{decoder_layer_pallas.3} parent=1 // loop_header
      %s25 = sphi 0, %s29
      %p26 = scmp.ge.s32.totalorder %s25, 4
      %s35 = sphi 0, %s37
      %s38 = sphi 0, %s35
      %s39 = sphi 0, %s38
      %s55 = sphi 0, %s39
      %s61 = sphi 0, %s63
      %s64 = sphi 0, %s61
      %s65 = sphi 0, %s64
      %s81 = sphi 0, %s65
      %s87 = sphi 0, %s89
      %s90 = sphi 0, %s87
      %s91 = sphi 0, %s90
      %s107 = sphi 0, %s91
      %s113 = sphi 0, %s115
      %s116 = sphi 0, %s113
      %s117 = sphi 0, %s116
      %s133 = sphi 0, %s117
      %s139 = sphi 0, %s141
      %s142 = sphi 0, %s139
      %s143 = sphi 0, %s142
      %s159 = sphi 0, %s143
      %s163 = sphi 0, %s163
      %s165 = sphi 0, %s163
      %s166 = sphi 0, %s165
      %s180 = sphi 0, %s166
      %s184 = sphi 0, %s184
      %s186 = sphi 0, %s184
      %s187 = sphi 0, %s186
      %s201 = sphi 0, %s187
      %s205 = sphi 0, %s205
      %s207 = sphi 0, %s205
      %s208 = sphi 0, %s207
      %s222 = sphi 0, %s208
      %s226 = sphi 0, %s226
      %s228 = sphi 0, %s226
      %s229 = sphi 0, %s228
      %s243 = sphi 0, %s229
      %s247 = sphi 0, %s247
      %s249 = sphi 0, %s247
      %s250 = sphi 0, %s249
      %s264 = sphi 0, %s250
      %s268 = sphi 0, %s268
      %s270 = sphi 0, %s268
      %s271 = sphi 0, %s270
      %s285 = sphi 0, %s271
      %s289 = sphi 0, %s289
      %s291 = sphi 0, %s289
      %s292 = sphi 0, %s291
      %s306 = sphi 0, %s292
      %s312 = sphi 0, %s314
      %s315 = sphi 0, %s312
      %s316 = sphi 0, %s315
      %s332 = sphi 0, %s316
    $region4: #{decoder_layer_pallas.3} parent=1 // loop_header_branch
      %28 = sbr.rel (%p26) target = $region8
    $region5: #{decoder_layer_pallas.3} parent=1 // loop_body
      %s30 = ssub.s32 %s25, 1
      %s31 = ssub.s32 %s25, 2
      %s32 = sadd.s32 %s25, 1
      %s33 = ssub.s32 %s25, %s32
      %p34 = scmp.eq.s32.totalorder %s33, 0
      %s36 = sadd.s32 %s35, 1
      %s37 = scalar_select %p34, %s35, %s36
      %p40 = pneg %p34
      %p41 = scmp.eq.s32.totalorder %s25, 1
      %p42 = por %p40, %p41
      %p43 = scmp.ne.s32.totalorder %s35, %s38
      %p44 = scmp.eq.s32.totalorder %s25, 0
      %p45 = por %p43, %p44
      %p46 = scmp.ne.s32.totalorder %s35, %s38
      %p47 = scmp.eq.s32.totalorder %s30, 1
      %p48 = por %p46, %p47
      %p49 = scmp.ne.s32.totalorder %s38, %s39
      %p50 = scmp.eq.s32.totalorder %s30, 0
      %p51 = por %p49, %p50
      %p52 = scmp.ne.s32.totalorder %s38, %s39
      %p53 = scmp.eq.s32.totalorder %s31, 1
      %p54 = por %p52, %p53
      %p56 = scmp.ne.s32.totalorder %s39, %s55
      %p57 = scmp.eq.s32.totalorder %s31, 0
      %p58 = por %p56, %p57
      %s59 = ssub.s32 %s25, %s32
      %p60 = scmp.eq.s32.totalorder %s59, 0
      %s62 = sadd.s32 %s61, 1
      %s63 = scalar_select %p60, %s61, %s62
      %p66 = pneg %p60
      %p67 = scmp.eq.s32.totalorder %s25, 1
      %p68 = por %p66, %p67
      %p69 = scmp.ne.s32.totalorder %s61, %s64
      %p70 = scmp.eq.s32.totalorder %s25, 0
      %p71 = por %p69, %p70
      %p72 = scmp.ne.s32.totalorder %s61, %s64
      %p73 = scmp.eq.s32.totalorder %s30, 1
      %p74 = por %p72, %p73
      %p75 = scmp.ne.s32.totalorder %s64, %s65
      %p76 = scmp.eq.s32.totalorder %s30, 0
      %p77 = por %p75, %p76
      %p78 = scmp.ne.s32.totalorder %s64, %s65
      %p79 = scmp.eq.s32.totalorder %s31, 1
      %p80 = por %p78, %p79
      %p82 = scmp.ne.s32.totalorder %s65, %s81
      %p83 = scmp.eq.s32.totalorder %s31, 0
      %p84 = por %p82, %p83
      %s85 = ssub.s32 %s25, %s32
      %p86 = scmp.eq.s32.totalorder %s85, 0
      %s88 = sadd.s32 %s87, 1
      %s89 = scalar_select %p86, %s87, %s88
      %p92 = pneg %p86
      %p93 = scmp.eq.s32.totalorder %s25, 1
      %p94 = por %p92, %p93
      %p95 = scmp.ne.s32.totalorder %s87, %s90
      %p96 = scmp.eq.s32.totalorder %s25, 0
      %p97 = por %p95, %p96
      %p98 = scmp.ne.s32.totalorder %s87, %s90
      %p99 = scmp.eq.s32.totalorder %s30, 1
      %p100 = por %p98, %p99
      %p101 = scmp.ne.s32.totalorder %s90, %s91
      %p102 = scmp.eq.s32.totalorder %s30, 0
      %p103 = por %p101, %p102
      %p104 = scmp.ne.s32.totalorder %s90, %s91
      %p105 = scmp.eq.s32.totalorder %s31, 1
      %p106 = por %p104, %p105
      %p108 = scmp.ne.s32.totalorder %s91, %s107
      %p109 = scmp.eq.s32.totalorder %s31, 0
      %p110 = por %p108, %p109
      %s111 = ssub.s32 %s25, %s32
      %p112 = scmp.eq.s32.totalorder %s111, 0
      %s114 = sadd.s32 %s113, 1
      %s115 = scalar_select %p112, %s113, %s114
      %p118 = pneg %p112
      %p119 = scmp.eq.s32.totalorder %s25, 1
      %p120 = por %p118, %p119
      %p121 = scmp.ne.s32.totalorder %s113, %s116
      %p122 = scmp.eq.s32.totalorder %s25, 0
      %p123 = por %p121, %p122
      %p124 = scmp.ne.s32.totalorder %s113, %s116
      %p125 = scmp.eq.s32.totalorder %s30, 1
      %p126 = por %p124, %p125
      %p127 = scmp.ne.s32.totalorder %s116, %s117
      %p128 = scmp.eq.s32.totalorder %s30, 0
      %p129 = por %p127, %p128
      %p130 = scmp.ne.s32.totalorder %s116, %s117
      %p131 = scmp.eq.s32.totalorder %s31, 1
      %p132 = por %p130, %p131
      %p134 = scmp.ne.s32.totalorder %s117, %s133
      %p135 = scmp.eq.s32.totalorder %s31, 0
      %p136 = por %p134, %p135
      %s137 = ssub.s32 %s25, %s32
      %p138 = scmp.eq.s32.totalorder %s137, 0
      %s140 = sadd.s32 %s139, 1
      %s141 = scalar_select %p138, %s139, %s140
      %p144 = pneg %p138
      %p145 = scmp.eq.s32.totalorder %s25, 1
      %p146 = por %p144, %p145
      %p147 = scmp.ne.s32.totalorder %s139, %s142
      %p148 = scmp.eq.s32.totalorder %s25, 0
      %p149 = por %p147, %p148
      %p150 = scmp.ne.s32.totalorder %s139, %s142
      %p151 = scmp.eq.s32.totalorder %s30, 1
      %p152 = por %p150, %p151
      %p153 = scmp.ne.s32.totalorder %s142, %s143
      %p154 = scmp.eq.s32.totalorder %s30, 0
      %p155 = por %p153, %p154
      %p156 = scmp.ne.s32.totalorder %s142, %s143
      %p157 = scmp.eq.s32.totalorder %s31, 1
      %p158 = por %p156, %p157
      %p160 = scmp.ne.s32.totalorder %s143, %s159
      %p161 = scmp.eq.s32.totalorder %s31, 0
      %p162 = por %p160, %p161
      %s164 = sadd.s32 %s163, 1
      %p167 = scmp.eq.s32.totalorder %s25, 1
      %p168 = scmp.ne.s32.totalorder %s163, %s165
      %p169 = scmp.eq.s32.totalorder %s25, 0
      %p170 = por %p168, %p169
      %p171 = scmp.ne.s32.totalorder %s163, %s165
      %p172 = scmp.eq.s32.totalorder %s30, 1
      %p173 = por %p171, %p172
      %p174 = scmp.ne.s32.totalorder %s165, %s166
      %p175 = scmp.eq.s32.totalorder %s30, 0
      %p176 = por %p174, %p175
      %p177 = scmp.ne.s32.totalorder %s165, %s166
      %p178 = scmp.eq.s32.totalorder %s31, 1
      %p179 = por %p177, %p178
      %p181 = scmp.ne.s32.totalorder %s166, %s180
      %p182 = scmp.eq.s32.totalorder %s31, 0
      %p183 = por %p181, %p182
      %s185 = sadd.s32 %s184, 1
      %p188 = scmp.eq.s32.totalorder %s25, 1
      %p189 = scmp.ne.s32.totalorder %s184, %s186
      %p190 = scmp.eq.s32.totalorder %s25, 0
      %p191 = por %p189, %p190
      %p192 = scmp.ne.s32.totalorder %s184, %s186
      %p193 = scmp.eq.s32.totalorder %s30, 1
      %p194 = por %p192, %p193
      %p195 = scmp.ne.s32.totalorder %s186, %s187
      %p196 = scmp.eq.s32.totalorder %s30, 0
      %p197 = por %p195, %p196
      %p198 = scmp.ne.s32.totalorder %s186, %s187
      %p199 = scmp.eq.s32.totalorder %s31, 1
      %p200 = por %p198, %p199
      %p202 = scmp.ne.s32.totalorder %s187, %s201
      %p203 = scmp.eq.s32.totalorder %s31, 0
      %p204 = por %p202, %p203
      %s206 = sadd.s32 %s205, 1
      %p209 = scmp.eq.s32.totalorder %s25, 1
      %p210 = scmp.ne.s32.totalorder %s205, %s207
      %p211 = scmp.eq.s32.totalorder %s25, 0
      %p212 = por %p210, %p211
      %p213 = scmp.ne.s32.totalorder %s205, %s207
      %p214 = scmp.eq.s32.totalorder %s30, 1
      %p215 = por %p213, %p214
      %p216 = scmp.ne.s32.totalorder %s207, %s208
      %p217 = scmp.eq.s32.totalorder %s30, 0
      %p218 = por %p216, %p217
      %p219 = scmp.ne.s32.totalorder %s207, %s208
      %p220 = scmp.eq.s32.totalorder %s31, 1
      %p221 = por %p219, %p220
      %p223 = scmp.ne.s32.totalorder %s208, %s222
      %p224 = scmp.eq.s32.totalorder %s31, 0
      %p225 = por %p223, %p224
      %s227 = sadd.s32 %s226, 1
      %p230 = scmp.eq.s32.totalorder %s25, 1
      %p231 = scmp.ne.s32.totalorder %s226, %s228
      %p232 = scmp.eq.s32.totalorder %s25, 0
      %p233 = por %p231, %p232
      %p234 = scmp.ne.s32.totalorder %s226, %s228
      %p235 = scmp.eq.s32.totalorder %s30, 1
      %p236 = por %p234, %p235
      %p237 = scmp.ne.s32.totalorder %s228, %s229
      %p238 = scmp.eq.s32.totalorder %s30, 0
      %p239 = por %p237, %p238
      %p240 = scmp.ne.s32.totalorder %s228, %s229
      %p241 = scmp.eq.s32.totalorder %s31, 1
      %p242 = por %p240, %p241
      %p244 = scmp.ne.s32.totalorder %s229, %s243
      %p245 = scmp.eq.s32.totalorder %s31, 0
      %p246 = por %p244, %p245
      %s248 = sadd.s32 %s247, 1
      %p251 = scmp.eq.s32.totalorder %s25, 1
      %p252 = scmp.ne.s32.totalorder %s247, %s249
      %p253 = scmp.eq.s32.totalorder %s25, 0
      %p254 = por %p252, %p253
      %p255 = scmp.ne.s32.totalorder %s247, %s249
      %p256 = scmp.eq.s32.totalorder %s30, 1
      %p257 = por %p255, %p256
      %p258 = scmp.ne.s32.totalorder %s249, %s250
      %p259 = scmp.eq.s32.totalorder %s30, 0
      %p260 = por %p258, %p259
      %p261 = scmp.ne.s32.totalorder %s249, %s250
      %p262 = scmp.eq.s32.totalorder %s31, 1
      %p263 = por %p261, %p262
      %p265 = scmp.ne.s32.totalorder %s250, %s264
      %p266 = scmp.eq.s32.totalorder %s31, 0
      %p267 = por %p265, %p266
      %s269 = sadd.s32 %s268, 1
      %p272 = scmp.eq.s32.totalorder %s25, 1
      %p273 = scmp.ne.s32.totalorder %s268, %s270
      %p274 = scmp.eq.s32.totalorder %s25, 0
      %p275 = por %p273, %p274
      %p276 = scmp.ne.s32.totalorder %s268, %s270
      %p277 = scmp.eq.s32.totalorder %s30, 1
      %p278 = por %p276, %p277
      %p279 = scmp.ne.s32.totalorder %s270, %s271
      %p280 = scmp.eq.s32.totalorder %s30, 0
      %p281 = por %p279, %p280
      %p282 = scmp.ne.s32.totalorder %s270, %s271
      %p283 = scmp.eq.s32.totalorder %s31, 1
      %p284 = por %p282, %p283
      %p286 = scmp.ne.s32.totalorder %s271, %s285
      %p287 = scmp.eq.s32.totalorder %s31, 0
      %p288 = por %p286, %p287
      %s290 = sadd.s32 %s289, 1
      %p293 = scmp.eq.s32.totalorder %s25, 1
      %p294 = scmp.ne.s32.totalorder %s289, %s291
      %p295 = scmp.eq.s32.totalorder %s25, 0
      %p296 = por %p294, %p295
      %p297 = scmp.ne.s32.totalorder %s289, %s291
      %p298 = scmp.eq.s32.totalorder %s30, 1
      %p299 = por %p297, %p298
      %p300 = scmp.ne.s32.totalorder %s291, %s292
      %p301 = scmp.eq.s32.totalorder %s30, 0
      %p302 = por %p300, %p301
      %p303 = scmp.ne.s32.totalorder %s291, %s292
      %p304 = scmp.eq.s32.totalorder %s31, 1
      %p305 = por %p303, %p304
      %p307 = scmp.ne.s32.totalorder %s292, %s306
      %p308 = scmp.eq.s32.totalorder %s31, 0
      %p309 = por %p307, %p308
      %s310 = ssub.s32 %s25, %s32
      %p311 = scmp.eq.s32.totalorder %s310, 0
      %s313 = sadd.s32 %s312, 1
      %s314 = scalar_select %p311, %s312, %s313
      %p317 = pneg %p311
      %p318 = scmp.eq.s32.totalorder %s25, 1
      %p319 = por %p317, %p318
      %p320 = scmp.ne.s32.totalorder %s312, %s315
      %p321 = scmp.eq.s32.totalorder %s25, 0
      %p322 = por %p320, %p321
      %p323 = scmp.ne.s32.totalorder %s312, %s315
      %p324 = scmp.eq.s32.totalorder %s30, 1
      %p325 = por %p323, %p324
      %p326 = scmp.ne.s32.totalorder %s315, %s316
      %p327 = scmp.eq.s32.totalorder %s30, 0
      %p328 = por %p326, %p327
      %p329 = scmp.ne.s32.totalorder %s315, %s316
      %p330 = scmp.eq.s32.totalorder %s31, 1
      %p331 = por %p329, %p330
      %p333 = scmp.ne.s32.totalorder %s316, %s332
      %p334 = scmp.eq.s32.totalorder %s31, 0
      %p335 = por %p333, %p334
      %p336 = scmp.le.s32.totalorder 1, %s25
      %p337 = scmp.lt.s32.totalorder %s25, 3
      %p338 = pnand %p336, %p337
      %p339 = pneg %p338
      // Predicated region
      $region9: #{decoder_layer_pallas.3} parent=5 // pred_check
        _
      $region10: #{decoder_layer_pallas.3} parent=5 // pred_check_branch
        %341 = sbr.rel (%p338) target = $region12
      $region11: #{decoder_layer_pallas.3} parent=5 // pred_region
        %s342 = ssub.s32 %s25, 1
        // Predicated region
        $region13: #{decoder_layer_pallas.3} parent=11 // pred_check
          %p343 = pneg %p176
        $region14: #{decoder_layer_pallas.3} parent=11 // pred_check_branch
          %345 = sbr.rel (%p343) target = $region16
        $region15: #{decoder_layer_pallas.3} parent=11 // pred_region
          _
        $region16: #{decoder_layer_pallas.3} parent=11 // pred_fallthru
          _
        // Predicated region
        $region17: #{decoder_layer_pallas.3} parent=11 // pred_check
          %p346 = pneg %p197
        $region18: #{decoder_layer_pallas.3} parent=11 // pred_check_branch
          %348 = sbr.rel (%p346) target = $region20
        $region19: #{decoder_layer_pallas.3} parent=11 // pred_region
          _
        $region20: #{decoder_layer_pallas.3} parent=11 // pred_fallthru
          _
        // Predicated region
        $region21: #{decoder_layer_pallas.3} parent=11 // pred_check
          %p349 = pneg %p218
        $region22: #{decoder_layer_pallas.3} parent=11 // pred_check_branch
          %351 = sbr.rel (%p349) target = $region24
        $region23: #{decoder_layer_pallas.3} parent=11 // pred_region
          _
        $region24: #{decoder_layer_pallas.3} parent=11 // pred_fallthru
          _
        // Predicated region
        $region25: #{decoder_layer_pallas.3} parent=11 // pred_check
          %p352 = pneg %p239
        $region26: #{decoder_layer_pallas.3} parent=11 // pred_check_branch
          %354 = sbr.rel (%p352) target = $region28
        $region27: #{decoder_layer_pallas.3} parent=11 // pred_region
          _
        $region28: #{decoder_layer_pallas.3} parent=11 // pred_fallthru
          _
        // Predicated region
        $region29: #{decoder_layer_pallas.3} parent=11 // pred_check
          %p355 = pneg %p260
        $region30: #{decoder_layer_pallas.3} parent=11 // pred_check_branch
          %357 = sbr.rel (%p355) target = $region32
        $region31: #{decoder_layer_pallas.3} parent=11 // pred_region
          _
        $region32: #{decoder_layer_pallas.3} parent=11 // pred_fallthru
          _
        // Predicated region
        $region33: #{decoder_layer_pallas.3} parent=11 // pred_check
          %p358 = pneg %p281
        $region34: #{decoder_layer_pallas.3} parent=11 // pred_check_branch
          %360 = sbr.rel (%p358) target = $region36
        $region35: #{decoder_layer_pallas.3} parent=11 // pred_region
          _
        $region36: #{decoder_layer_pallas.3} parent=11 // pred_fallthru
          _
        // Predicated region
        $region37: #{decoder_layer_pallas.3} parent=11 // pred_check
          %p361 = pneg %p302
        $region38: #{decoder_layer_pallas.3} parent=11 // pred_check_branch
          %363 = sbr.rel (%p361) target = $region40
        $region39: #{decoder_layer_pallas.3} parent=11 // pred_region
          _
        $region40: #{decoder_layer_pallas.3} parent=11 // pred_fallthru
          _
      $region12: #{decoder_layer_pallas.3} parent=5 // pred_fallthru
        _
      %p364 = scmp.lt.s32.totalorder %s25, 2
      // Predicated region
      $region41: #{decoder_layer_pallas.3} parent=5 // pred_check
        %p365 = pneg %p364
      $region42: #{decoder_layer_pallas.3} parent=5 // pred_check_branch
        %367 = sbr.rel (%p365) target = $region44
      $region43: #{decoder_layer_pallas.3} parent=5 // pred_region
        // Predicated region
        $region45: #{decoder_layer_pallas.3} parent=43 // pred_check
          %p368 = pneg %p45
        $region46: #{decoder_layer_pallas.3} parent=43 // pred_check_branch
          %370 = sbr.rel (%p368) target = $region48
        $region47: #{decoder_layer_pallas.3} parent=43 // pred_region
          %p371 = scmp.lt.s32.totalorder %s25, 1
          %s372 = scalar_select %p371, %s25, 1
          %s373 = smul.addr %s372, 8
          %s374 = scalar_lea.vmem %s0, %s373
        $region48: #{decoder_layer_pallas.3} parent=43 // pred_fallthru
          _
        // Predicated region
        $region49: #{decoder_layer_pallas.3} parent=43 // pred_check
          %p375 = pneg %p71
        $region50: #{decoder_layer_pallas.3} parent=43 // pred_check_branch
          %377 = sbr.rel (%p375) target = $region52
        $region51: #{decoder_layer_pallas.3} parent=43 // pred_region
          %p378 = scmp.lt.s32.totalorder %s25, 1
          %s379 = scalar_select %p378, %s25, 1
          %s380 = smul.addr %s379, 8
          %s381 = scalar_lea.vmem %s1, %s380
        $region52: #{decoder_layer_pallas.3} parent=43 // pred_fallthru
          _
        // Predicated region
        $region53: #{decoder_layer_pallas.3} parent=43 // pred_check
          %p382 = pneg %p97
        $region54: #{decoder_layer_pallas.3} parent=43 // pred_check_branch
          %384 = sbr.rel (%p382) target = $region56
        $region55: #{decoder_layer_pallas.3} parent=43 // pred_region
          %p385 = scmp.lt.s32.totalorder %s25, 1
          %s386 = scalar_select %p385, %s25, 1
          %s387 = smul.addr %s386, 8
          %s388 = scalar_lea.vmem %s2, %s387
        $region56: #{decoder_layer_pallas.3} parent=43 // pred_fallthru
          _
        // Predicated region
        $region57: #{decoder_layer_pallas.3} parent=43 // pred_check
          %p389 = pneg %p123
        $region58: #{decoder_layer_pallas.3} parent=43 // pred_check_branch
          %391 = sbr.rel (%p389) target = $region60
        $region59: #{decoder_layer_pallas.3} parent=43 // pred_region
          %p392 = scmp.lt.s32.totalorder %s25, 1
          %s393 = scalar_select %p392, %s25, 1
          %s394 = smul.addr %s393, 8
          %s395 = scalar_lea.vmem %s3, %s394
        $region60: #{decoder_layer_pallas.3} parent=43 // pred_fallthru
          _
        // Predicated region
        $region61: #{decoder_layer_pallas.3} parent=43 // pred_check
          %p396 = pneg %p149
        $region62: #{decoder_layer_pallas.3} parent=43 // pred_check_branch
          %398 = sbr.rel (%p396) target = $region64
        $region63: #{decoder_layer_pallas.3} parent=43 // pred_region
          %p399 = scmp.lt.s32.totalorder %s25, 1
          %s400 = scalar_select %p399, %s25, 1
          %s401 = smul.addr %s400, 8
          %s402 = scalar_lea.vmem %s4, %s401
        $region64: #{decoder_layer_pallas.3} parent=43 // pred_fallthru
          _
      $region44: #{decoder_layer_pallas.3} parent=5 // pred_fallthru
        _
      %p403 = scmp.le.s32.totalorder 1, %s25
      %p404 = scmp.lt.s32.totalorder %s25, 3
      %p405 = pnand %p403, %p404
      %p406 = pneg %p405
      // Predicated region
      $region65: #{decoder_layer_pallas.3} parent=5 // pred_check
        _
      $region66: #{decoder_layer_pallas.3} parent=5 // pred_check_branch
        %408 = sbr.rel (%p405) target = $region68
      $region67: #{decoder_layer_pallas.3} parent=5 // pred_region
        %s409 = ssub.s32 %s25, 1
        %p410 = scmp.lt.s32.totalorder %s30, 1
        %s411 = scalar_select %p410, %s30, 1
        %s412 = smul.addr %s411, 8
        %s413 = scalar_lea.vmem %s0, %s412
        %p414 = pneg %p51
        %p415 = pneg %p48
        %p416 = scmp.lt.s32.totalorder %s30, 1
        %s417 = scalar_select %p416, %s30, 1
        %s418 = smul.addr %s417, 8
        %s419 = scalar_lea.vmem %s1, %s418
        %p420 = pneg %p77
        %p421 = pneg %p74
        %p422 = scmp.lt.s32.totalorder %s30, 1
        %s423 = scalar_select %p422, %s30, 1
        %s424 = smul.addr %s423, 8
        %s425 = scalar_lea.vmem %s2, %s424
        %p426 = pneg %p103
        %p427 = pneg %p100
        %p428 = scmp.lt.s32.totalorder %s30, 1
        %s429 = scalar_select %p428, %s30, 1
        %s430 = smul.addr %s429, 8
        %s431 = scalar_lea.vmem %s3, %s430
        %p432 = pneg %p129
        %p433 = pneg %p126
        %p434 = scmp.lt.s32.totalorder %s30, 1
        %s435 = scalar_select %p434, %s30, 1
        %s436 = smul.addr %s435, 8
        %s437 = scalar_lea.vmem %s4, %s436
        %p438 = pneg %p155
        %p439 = pneg %p152
        %p440 = pneg %p176
        %p441 = pneg %p173
        %p442 = pneg %p197
        %p443 = pneg %p194
        %p444 = pneg %p218
        %p445 = pneg %p215
        %p446 = pneg %p239
        %p447 = pneg %p236
        %p448 = pneg %p260
        %p449 = pneg %p257
        %p450 = pneg %p281
        %p451 = pneg %p278
        %p452 = pneg %p302
        %p453 = pneg %p299
        %p454 = pneg %p328
        %p455 = pneg %p325
        %s456 = sand.u32 %s315, 1
        %s457 = scalar_lea.sflag [#allocation5], %s456
        %s458 = sand.u32 %s315, 1
        %s459 = smul.addr %s458, 8
        %s460 = scalar_lea.vmem [#allocation4], %s459
        %p461 = scmp.lt.s32.totalorder %s30, 1
        %s462 = scalar_select %p461, %s30, 1
        %s463 = smul.addr %s462, 8
        %s464 = scalar_lea.vmem %s0, %s463
        %p465 = scmp.lt.s32.totalorder %s30, 1
        %s466 = scalar_select %p465, %s30, 1
        %s467 = smul.addr %s466, 8
        %s468 = scalar_lea.vmem %s1, %s467
        %p469 = scmp.lt.s32.totalorder %s30, 1
        %s470 = scalar_select %p469, %s30, 1
        %s471 = smul.addr %s470, 8
        %s472 = scalar_lea.vmem %s2, %s471
        %p473 = scmp.lt.s32.totalorder %s30, 1
        %s474 = scalar_select %p473, %s30, 1
        %s475 = smul.addr %s474, 8
        %s476 = scalar_lea.vmem %s3, %s475
        %p477 = scmp.lt.s32.totalorder %s30, 1
        %s478 = scalar_select %p477, %s30, 1
        %s479 = smul.addr %s478, 8
        %s480 = scalar_lea.vmem %s4, %s479
        %v481 = vld [vmem:[%s464] sm:$0xff]
        %v482 = vld [vmem:[%s468] sm:$0xff]
        %v483 = vld [vmem:[%s472] sm:$0xff]
        %v484 = vlaneseq
        %v485 = vshrl.u32 %v484, 7
        %v486 = vlaneseq
        %v487 = vand.u32 %v486, 127
        %vm488 = vcmp.le.s32.totalorder %v487, %v485
        %vm489 = vcmask 261120
        %v491 = vsel %vm489, %v481, 0
        %v494 = vsel %vm489, %v482, 0
        %496 = vmatpush.xpose.msra.mxu0 0.0
        %497 = vmatpush.xpose.msra.mxu0 0.0
        %498 = vmatpush.xpose.msra.mxu0 0.0
        %499 = vmatpush.xpose.msra.mxu0 0.0
        %500 = vmatpush.xpose.msra.mxu0 0.0
        %501 = vmatpush.xpose.msra.mxu0 0.0
        %502 = vmatpush.xpose.msra.mxu0 0.0
        %503 = vmatpush.xpose.msra.mxu0 0.0
        %504 = vmatpush.xpose.msra.mxu0 0.0
        %505 = vmatpush.xpose.msra.mxu0 0.0
        %506 = vmatpush.xpose.msra.mxu0 0.0
        %507 = vmatpush.xpose.msra.mxu0 0.0
        %508 = vmatpush.xpose.msra.mxu0 0.0
        %509 = vmatpush.xpose.msra.mxu0 0.0
        %510 = vmatpush.xpose.msra.mxu0 0.0
        %511 = vmatpush.xpose.msra.mxu0 %v494
        %512 = vmatmul.f32.gmra.mxu0 %v491
        %v513 = vpop.f32.mrf.mxu0
        %v514 = vadd.f32 0.0, %v513
        %515 = vdwg.mxu0
        %v516 = vmul.f32 %v514, 0.35355338
        %v517 = vsel %vm488, %v516, -1e+30
        %vm518 = vcmask 64512
        %v519 = vsel %vm518, %v517, -inf
        %520 = vmax.xlane.f32.xlu0 %v519
        %v521 = vpop.xlane.xlu0 %520
        %v522 = vsub.f32 %v517, %v521
        %v523 = vmul.f32 %v522, 1.442695
        %v524 = vpow.pop %v523
        %v525 = vsel %vm518, %v524, 0.0
        %526 = vadd.xlane.f32.xlu0 %v525
        %v527 = vpop.xlane.xlu0 %526
        %v528 = vrcp.pop %v527
        %v529 = vmul.f32 %v524, %v528
        %v531 = vsel %vm518, %v529, 0
        %533 = vmatpush.msra.mxu0 0.0
        %534 = vmatpush.msra.mxu0 0.0
        %535 = vmatpush.msra.mxu0 0.0
        %536 = vmatpush.msra.mxu0 0.0
        %537 = vmatpush.msra.mxu0 0.0
        %538 = vmatpush.msra.mxu0 0.0
        %539 = vmatpush.msra.mxu0 0.0
        %540 = vmatpush.msra.mxu0 0.0
        %541 = vmatpush.msra.mxu0 0.0
        %542 = vmatpush.msra.mxu0 0.0
        %543 = vmatpush.msra.mxu0 0.0
        %544 = vmatpush.msra.mxu0 0.0
        %545 = vmatpush.msra.mxu0 0.0
        %546 = vmatpush.msra.mxu0 0.0
        %547 = vmatpush.msra.mxu0 0.0
        %548 = vmatpush.msra.mxu0 %v483
        %549 = vmatmul.f32.gmra.mxu0 %v531
        %v550 = vpop.f32.mrf.mxu0
        %v551 = vadd.f32 0.0, %v550
        %552 = vdwg.mxu0
        %553 = vrot.lane.b32.xlu0 %v481, 96
        %v554 = vpop.permute.xlu0 %553
        %555 = vrot.lane.b32.xlu0 %v482, 96
        %v556 = vpop.permute.xlu0 %555
        %v557 = vsel %vm489, %v554, 0
        %v559 = vsel %vm489, %v556, 0
        %561 = vmatpush.xpose.msra.mxu0 0.0
        %562 = vmatpush.xpose.msra.mxu0 0.0
        %563 = vmatpush.xpose.msra.mxu0 0.0
        %564 = vmatpush.xpose.msra.mxu0 0.0
        %565 = vmatpush.xpose.msra.mxu0 0.0
        %566 = vmatpush.xpose.msra.mxu0 0.0
        %567 = vmatpush.xpose.msra.mxu0 0.0
        %568 = vmatpush.xpose.msra.mxu0 0.0
        %569 = vmatpush.xpose.msra.mxu0 0.0
        %570 = vmatpush.xpose.msra.mxu0 0.0
        %571 = vmatpush.xpose.msra.mxu0 0.0
        %572 = vmatpush.xpose.msra.mxu0 0.0
        %573 = vmatpush.xpose.msra.mxu0 0.0
        %574 = vmatpush.xpose.msra.mxu0 0.0
        %575 = vmatpush.xpose.msra.mxu0 0.0
        %576 = vmatpush.xpose.msra.mxu0 %v559
        %577 = vmatmul.f32.gmra.mxu0 %v557
        %v578 = vpop.f32.mrf.mxu0
        %v579 = vadd.f32 0.0, %v578
        %580 = vdwg.mxu0
        %v581 = vmul.f32 %v579, 0.35355338
        %v582 = vsel %vm488, %v581, -1e+30
        %v583 = vsel %vm518, %v582, -inf
        %584 = vmax.xlane.f32.xlu0 %v583
        %v585 = vpop.xlane.xlu0 %584
        %v586 = vsub.f32 %v582, %v585
        %v587 = vmul.f32 %v586, 1.442695
        %v588 = vpow.pop %v587
        %v589 = vsel %vm518, %v588, 0.0
        %590 = vadd.xlane.f32.xlu0 %v589
        %v591 = vpop.xlane.xlu0 %590
        %v592 = vrcp.pop %v591
        %v593 = vmul.f32 %v588, %v592
        %595 = vrot.lane.b32.xlu0 %v483, 96
        %v596 = vpop.permute.xlu0 %595
        %v599 = vsel %vm518, %v593, 0
        %601 = vmatpush.msra.mxu0 0.0
        %602 = vmatpush.msra.mxu0 0.0
        %603 = vmatpush.msra.mxu0 0.0
        %604 = vmatpush.msra.mxu0 0.0
        %605 = vmatpush.msra.mxu0 0.0
        %606 = vmatpush.msra.mxu0 0.0
        %607 = vmatpush.msra.mxu0 0.0
        %608 = vmatpush.msra.mxu0 0.0
        %609 = vmatpush.msra.mxu0 0.0
        %610 = vmatpush.msra.mxu0 0.0
        %611 = vmatpush.msra.mxu0 0.0
        %612 = vmatpush.msra.mxu0 0.0
        %613 = vmatpush.msra.mxu0 0.0
        %614 = vmatpush.msra.mxu0 0.0
        %615 = vmatpush.msra.mxu0 0.0
        %616 = vmatpush.msra.mxu0 %v596
        %617 = vmatmul.f32.gmra.mxu0 %v599
        %v618 = vpop.f32.mrf.mxu0
        %v619 = vadd.f32 0.0, %v618
        %620 = vdwg.mxu0
        %622 = vrot.lane.b32.xlu0 %v619, 32
        %v623 = vpop.permute.xlu0 %622
        %v625 = vsel %vm489, %v551, %v623
        %v626 = vld [vmem:[%s476] sm:$0xff]
        %v627 = vld [vmem:[%s5] sm:$0xff]
        %v628 = vld [vmem:[%s5 + $0x8] sm:$0xff]
        %v629 = vld [vmem:[%s5 + $0x10] sm:$0xff]
        %v630 = vld [vmem:[%s5 + $0x18] sm:$0xff]
        %v631 = vld [vmem:[%s5 + $0x20] sm:$0xff]
        %v632 = vld [vmem:[%s5 + $0x28] sm:$0xff]
        %v633 = vld [vmem:[%s5 + $0x30] sm:$0xff]
        %v634 = vld [vmem:[%s5 + $0x38] sm:$0xff]
        %v635 = vld [vmem:[#allocation2] sm:$0x1]
        %v637 = vperm.slane %v635, 0
        %638 = vset.pattern.permute.xlu0 0
        %639 = vperm.xlu0 %638, %v637
        %v640 = vpop.permute.xlu0 %639
        %v642 = vmul.f32 %v626, %v640
        %vm643 = vcmask 523264
        %v645 = vsel %vm643, %v625, 0
        %647 = vmatpush.msra.mxu0 0.0
        %648 = vmatpush.msra.mxu0 0.0
        %649 = vmatpush.msra.mxu0 0.0
        %650 = vmatpush.msra.mxu0 0.0
        %651 = vmatpush.msra.mxu0 0.0
        %652 = vmatpush.msra.mxu0 0.0
        %653 = vmatpush.msra.mxu0 0.0
        %654 = vmatpush.msra.mxu0 0.0
        %655 = vmatpush.msra.mxu0 %v634
        %656 = vmatpush.msra.mxu0 %v633
        %657 = vmatpush.msra.mxu0 %v632
        %658 = vmatpush.msra.mxu0 %v631
        %659 = vmatpush.msra.mxu0 %v630
        %660 = vmatpush.msra.mxu0 %v629
        %661 = vmatpush.msra.mxu0 %v628
        %662 = vmatpush.msra.mxu0 %v627
        %663 = vmatmul.f32.gmra.mxu0 %v645
        %v664 = vpop.f32.mrf.mxu0
        %v665 = vadd.f32 %v642, %v664
        %666 = vdwg.mxu0
        %v667 = vmul.f32 %v665, %v665
        %v668 = vsel %vm643, %v667, 0.0
        %669 = vadd.xlane.f32.xlu0 %v668
        %v670 = vpop.xlane.xlu0 %669
        %v671 = vrcp.pop 64.0
        %v672 = vmul.f32 64.0, %v671
        %v673 = vsub.f32 1.0, %v672
        %v674 = vmul.f32 %v671, %v673
        %v675 = vadd.f32 %v671, %v674
        %vm676 = vweird.f32 %v671
        %v677 = vsel %vm676, %v671, %v675
        %v678 = vmul.f32 %v670, %v677
        %v679 = vadd.f32 %v678, 1e-06
        %v680 = vrsqrt.pop %v679
        %v681 = vmul.f32 %v680, %v679
        %v682 = vmul.f32 %v681, %v680
        %v683 = vmul.f32 0.5, %v682
        %v684 = vsub.f32 1.5, %v683
        %v685 = vmul.f32 %v680, %v684
        %vm686 = vweird.f32 %v679
        %vm687 = vweird.f32 %v680
        %vm688 = vmor %vm686, %vm687
        %v689 = vsel %vm688, %v680, %v685
        %v690 = vmul.f32 %v665, %v689
        %v691 = vld [vmem:[%s7] sm:$0x1]
        %v693 = vperm.slane %v691, 0
        %v695 = vmul.f32 %v690, %v693
        %v696 = vld [vmem:[%s8] sm:$0xff]
        %v697 = vld [vmem:[%s8 + $0x8] sm:$0xff]
        %v698 = vld [vmem:[%s8 + $0x10] sm:$0xff]
        %v699 = vld [vmem:[%s8 + $0x18] sm:$0xff]
        %v700 = vld [vmem:[%s8 + $0x20] sm:$0xff]
        %v701 = vld [vmem:[%s8 + $0x28] sm:$0xff]
        %v702 = vld [vmem:[%s8 + $0x30] sm:$0xff]
        %v703 = vld [vmem:[%s8 + $0x38] sm:$0xff]
        %v705 = vsel %vm643, %v695, 0
        %707 = vmatpush.msra.mxu0 0.0
        %708 = vmatpush.msra.mxu0 0.0
        %709 = vmatpush.msra.mxu0 0.0
        %710 = vmatpush.msra.mxu0 0.0
        %711 = vmatpush.msra.mxu0 0.0
        %712 = vmatpush.msra.mxu0 0.0
        %713 = vmatpush.msra.mxu0 0.0
        %714 = vmatpush.msra.mxu0 0.0
        %715 = vmatpush.msra.mxu0 %v703
        %716 = vmatpush.msra.mxu0 %v702
        %717 = vmatpush.msra.mxu0 %v701
        %718 = vmatpush.msra.mxu0 %v700
        %719 = vmatpush.msra.mxu0 %v699
        %720 = vmatpush.msra.mxu0 %v698
        %721 = vmatpush.msra.mxu0 %v697
        %722 = vmatpush.msra.mxu0 %v696
        %723 = vmatmul.f32.gmra.mxu0 %v705
        %v724 = vpop.f32.mrf.mxu0
        %v725 = vadd.f32 0.0, %v724
        %726 = vdwg.mxu0
        %v727 = vld [vmem:[%s9] sm:$0xff]
        %v728 = vld [vmem:[%s9 + $0x8] sm:$0xff]
        %v729 = vld [vmem:[%s9 + $0x10] sm:$0xff]
        %v730 = vld [vmem:[%s9 + $0x18] sm:$0xff]
        %v731 = vld [vmem:[%s9 + $0x20] sm:$0xff]
        %v732 = vld [vmem:[%s9 + $0x28] sm:$0xff]
        %v733 = vld [vmem:[%s9 + $0x30] sm:$0xff]
        %v734 = vld [vmem:[%s9 + $0x38] sm:$0xff]
        %735 = vmatpush.msra.mxu0 0.0
        %736 = vmatpush.msra.mxu0 0.0
        %737 = vmatpush.msra.mxu0 0.0
        %738 = vmatpush.msra.mxu0 0.0
        %739 = vmatpush.msra.mxu0 0.0
        %740 = vmatpush.msra.mxu0 0.0
        %741 = vmatpush.msra.mxu0 0.0
        %742 = vmatpush.msra.mxu0 0.0
        %743 = vmatpush.msra.mxu0 %v734
        %744 = vmatpush.msra.mxu0 %v733
        %745 = vmatpush.msra.mxu0 %v732
        %746 = vmatpush.msra.mxu0 %v731
        %747 = vmatpush.msra.mxu0 %v730
        %748 = vmatpush.msra.mxu0 %v729
        %749 = vmatpush.msra.mxu0 %v728
        %750 = vmatpush.msra.mxu0 %v727
        %751 = vmatmul.f32.gmra.mxu0 %v705
        %v752 = vpop.f32.mrf.mxu0
        %v753 = vadd.f32 0.0, %v752
        %754 = vdwg.mxu0
        %v755 = vmul.f32 %v753, 1.442695
        %v756 = vpow.pop %v755
        %v757 = vtanh.pop %v756
        %v758 = vmul.f32 %v757, %v753
        %v759 = vmul.f32 %v725, %v758
        %v760 = vld [vmem:[%s10] sm:$0xff]
        %v761 = vld [vmem:[%s10 + $0x8] sm:$0xff]
        %v762 = vld [vmem:[%s10 + $0x10] sm:$0xff]
        %v763 = vld [vmem:[%s10 + $0x18] sm:$0xff]
        %v764 = vld [vmem:[%s10 + $0x20] sm:$0xff]
        %v765 = vld [vmem:[%s10 + $0x28] sm:$0xff]
        %v766 = vld [vmem:[%s10 + $0x30] sm:$0xff]
        %v767 = vld [vmem:[%s10 + $0x38] sm:$0xff]
        %v768 = vld [vmem:[%s10 + $0x40] sm:$0xff]
        %v769 = vld [vmem:[%s10 + $0x48] sm:$0xff]
        %v770 = vld [vmem:[%s10 + $0x50] sm:$0xff]
        %v771 = vld [vmem:[%s10 + $0x58] sm:$0xff]
        %v772 = vld [vmem:[%s10 + $0x60] sm:$0xff]
        %v773 = vld [vmem:[%s10 + $0x68] sm:$0xff]
        %v774 = vld [vmem:[%s10 + $0x70] sm:$0xff]
        %v775 = vld [vmem:[%s10 + $0x78] sm:$0xff]
        %776 = vmatpush.msra.mxu0 %v775
        %777 = vmatpush.msra.mxu0 %v774
        %778 = vmatpush.msra.mxu0 %v773
        %779 = vmatpush.msra.mxu0 %v772
        %780 = vmatpush.msra.mxu0 %v771
        %781 = vmatpush.msra.mxu0 %v770
        %782 = vmatpush.msra.mxu0 %v769
        %783 = vmatpush.msra.mxu0 %v768
        %784 = vmatpush.msra.mxu0 %v767
        %785 = vmatpush.msra.mxu0 %v766
        %786 = vmatpush.msra.mxu0 %v765
        %787 = vmatpush.msra.mxu0 %v764
        %788 = vmatpush.msra.mxu0 %v763
        %789 = vmatpush.msra.mxu0 %v762
        %790 = vmatpush.msra.mxu0 %v761
        %791 = vmatpush.msra.mxu0 %v760
        %792 = vmatmul.f32.gmra.mxu0 %v759
        %v793 = vpop.f32.mrf.mxu0
        %v794 = vadd.f32 0.0, %v793
        %795 = vdwg.mxu0
        %v796 = vld [vmem:[%s480] sm:$0xff]
        %v797 = vmul.f32 %v794, %v796
        %v798 = vld [vmem:[#allocation3] sm:$0x1]
        %v800 = vperm.slane %v798, 0
        %801 = vset.pattern.permute.xlu0 0
        %802 = vperm.xlu0 %801, %v800
        %v803 = vpop.permute.xlu0 %802
        %v805 = vmul.f32 %v665, %v803
        %v806 = vadd.f32 %v797, %v805
        %807 = vst.msk [vmem:[%s460] sm:$0xff] %vm643, %v806
        %s808 = sand.u32 %s315, 1
        %s809 = scalar_lea.sflag [#allocation5], %s808
        %s810 = sand.u32 %s315, 1
        %s811 = smul.addr %s810, 8
        %s812 = scalar_lea.vmem [#allocation4], %s811
        // Predicated region
        $region69: #{decoder_layer_pallas.3} parent=67 // pred_check
          %p813 = pneg %p325
        $region70: #{decoder_layer_pallas.3} parent=67 // pred_check_branch
          %815 = sbr.rel (%p813) target = $region72
        $region71: #{decoder_layer_pallas.3} parent=67 // pred_region
          %817 = vsyncadd %s809, 0
          %s818 = smul.addr %s30, 8
          %s819 = scalar_lea.hbm %s12, %s818
          %s821 = sshll.u32 %s812, 4
          %s822 = int_to_ptr.vmem [resolvable:$true] %s821
          %s823 = sshll.u32 %s819, 4
          %s824 = int_to_ptr.hbm [resolvable:$true] %s823
          %826 = dma.vmem_to_hbm [thread:$0]  %s822, 128, %s824, %s809
        $region72: #{decoder_layer_pallas.3} parent=67 // pred_fallthru
          _
      $region68: #{decoder_layer_pallas.3} parent=5 // pred_fallthru
        _
      %p827 = scmp.le.s32.totalorder 2, %s25
      // Predicated region
      $region73: #{decoder_layer_pallas.3} parent=5 // pred_check
        %p828 = pneg %p827
      $region74: #{decoder_layer_pallas.3} parent=5 // pred_check_branch
        %830 = sbr.rel (%p828) target = $region76
      $region75: #{decoder_layer_pallas.3} parent=5 // pred_region
        %s831 = ssub.s32 %s25, 2
        // Predicated region
        $region77: #{decoder_layer_pallas.3} parent=75 // pred_check
          %p832 = pneg %p331
        $region78: #{decoder_layer_pallas.3} parent=75 // pred_check_branch
          %834 = sbr.rel (%p832) target = $region80
        $region79: #{decoder_layer_pallas.3} parent=75 // pred_region
          %s835 = sand.u32 %s316, 1
          %s836 = scalar_lea.sflag [#allocation5], %s835
          %s837 = sand.u32 %s316, 1
          %s838 = smul.addr %s837, 8
          %s839 = scalar_lea.vmem [#allocation4], %s838
          %841 = dma.done %s836, 128
        $region80: #{decoder_layer_pallas.3} parent=75 // pred_fallthru
          _
      $region76: #{decoder_layer_pallas.3} parent=5 // pred_fallthru
        _
    $region6: #{decoder_layer_pallas.3} parent=1 // loop_footer
      %s29 = sadd.s32 1, %s25
    $region7: #{decoder_layer_pallas.3} parent=1 // loop_footer_branch
      %24 = sbr.rel target = $region3
    $region8: #{decoder_layer_pallas.3} parent=1 // loop_exit
      _
    %842 = vsyncpa [#allocation5], 1
    %s843 = scalar_lea.sflag [#allocation5], 1
    %844 = vsyncpa %s843, 1

// kernel: decoder_layer_pallas.2
$region0: #{decoder_layer_pallas.2}
  #allocation0 [shape = 'u32[]', space=smem, size = 0x4, offset = 0x4, fixed_abs, tag = 'smem constant byte address 0x4 - core index']
  #allocation1 [shape = 'u32[72,128]{1,0:T(1,128)}', space=vmem, size = 0x9000, scoped, tag = 'internal scratch']
  #allocation2 [shape = 'f32[8,24]{1,0:T(8,128)}', space=vmem, size = 0x1000, scoped, tag = 'scratch operand']
  #allocation3 [shape = 'f32[8,8]{1,0:T(8,128)}', space=vmem, size = 0x1000, scoped, tag = 'scratch operand']
  %s0 = inlined_call_operand.vmem [shape: f32[2,8,64], index: 0, kind: input, shape index: {}]
  %s1 = inlined_call_operand.vmem [shape: f32[2,8,64], index: 1, kind: input, shape index: {}]
  %s2 = inlined_call_operand.vmem [shape: f32[1,64], index: 2, kind: input, shape index: {}]
  %s3 = inlined_call_operand.vmem [shape: f32[64,4], index: 3, kind: input, shape index: {}]
  %s4 = inlined_call_operand.vmem [shape: f32[64,60], index: 4, kind: input, shape index: {}]
  %s5 = inlined_call_operand.vmem [shape: f32[4,24], index: 5, kind: input, shape index: {}]
  %s6 = inlined_call_operand.vmem [shape: f32[8,24], index: 6, kind: input, shape index: {}]
  %s7 = inlined_call_operand.vmem [shape: f32[8,128], index: 7, kind: input, shape index: {}]
  %s8 = inlined_call_operand.vmem [shape: f32[60,128], index: 8, kind: input, shape index: {}]
  %s9 = inlined_call_operand.vmem [shape: f32[2,64], index: 9, kind: input, shape index: {}]
  %s10 = inlined_call_operand.vmem [shape: f32[2,64], index: 10, kind: input, shape index: {}]
  %s11 = inlined_call_operand.vmem [shape: f32[2,8,64], index: 11, kind: output, shape index: {0}]
  %s12 = inlined_call_operand.vmem [shape: f32[2,8,64], index: 12, kind: output, shape index: {1}]
  %s13 = inlined_call_operand.vmem [shape: f32[2,8,64], index: 13, kind: output, shape index: {2}]
  %14 = xla_tuple %s11, %s12, %s13
  %s15 = sld [smem:[#allocation0]]
  $region93: #{decoder_layer_pallas.2} parent=0
    _
  %s17 = ssub.s32 1, %s15
  %s18 = scalar_select 0, %s17, %s15
  loop: start=0, step=1, limit=4
  $region2: #{decoder_layer_pallas.2} parent=0 // loop_pre_header
    _
  $region3: #{decoder_layer_pallas.2} parent=0 // loop_header
    %s20 = sphi 0, %s24
    %p21 = scmp.ge.s32.totalorder %s20, 4
    %s30 = sphi 0, %s32
    %s33 = sphi 0, %s30
    %s34 = sphi 0, %s33
    %s50 = sphi 0, %s34
    %s56 = sphi 0, %s58
    %s59 = sphi 0, %s56
    %s60 = sphi 0, %s59
    %s76 = sphi 0, %s60
    %s80 = sphi 0, %s80
    %s82 = sphi 0, %s80
    %s83 = sphi 0, %s82
    %s97 = sphi 0, %s83
    %s101 = sphi 0, %s101
    %s103 = sphi 0, %s101
    %s104 = sphi 0, %s103
    %s118 = sphi 0, %s104
    %s122 = sphi 0, %s122
    %s124 = sphi 0, %s122
    %s125 = sphi 0, %s124
    %s139 = sphi 0, %s125
    %s143 = sphi 0, %s143
    %s145 = sphi 0, %s143
    %s146 = sphi 0, %s145
    %s160 = sphi 0, %s146
    %s164 = sphi 0, %s164
    %s166 = sphi 0, %s164
    %s167 = sphi 0, %s166
    %s181 = sphi 0, %s167
    %s185 = sphi 0, %s185
    %s187 = sphi 0, %s185
    %s188 = sphi 0, %s187
    %s202 = sphi 0, %s188
    %s206 = sphi 0, %s206
    %s208 = sphi 0, %s206
    %s209 = sphi 0, %s208
    %s223 = sphi 0, %s209
    %s227 = sphi 0, %s227
    %s229 = sphi 0, %s227
    %s230 = sphi 0, %s229
    %s244 = sphi 0, %s230
    %s248 = sphi 0, %s248
    %s250 = sphi 0, %s248
    %s251 = sphi 0, %s250
    %s265 = sphi 0, %s251
    %s271 = sphi 0, %s273
    %s274 = sphi 0, %s271
    %s275 = sphi 0, %s274
    %s291 = sphi 0, %s275
    %s297 = sphi 0, %s299
    %s300 = sphi 0, %s297
    %s301 = sphi 0, %s300
    %s317 = sphi 0, %s301
    %s323 = sphi 0, %s325
    %s326 = sphi 0, %s323
    %s327 = sphi 0, %s326
    %s343 = sphi 0, %s327
  $region4: #{decoder_layer_pallas.2} parent=0 // loop_header_branch
    %23 = sbr.rel (%p21) target = $region8
  $region5: #{decoder_layer_pallas.2} parent=0 // loop_body
    %s25 = ssub.s32 %s20, 1
    %s26 = ssub.s32 %s20, 2
    %s27 = sadd.s32 %s20, 1
    %s28 = ssub.s32 %s20, %s27
    %p29 = scmp.eq.s32.totalorder %s28, 0
    %s31 = sadd.s32 %s30, 1
    %s32 = scalar_select %p29, %s30, %s31
    %p35 = pneg %p29
    %p36 = scmp.eq.s32.totalorder %s20, 1
    %p37 = por %p35, %p36
    %p38 = scmp.ne.s32.totalorder %s30, %s33
    %p39 = scmp.eq.s32.totalorder %s20, 0
    %p40 = por %p38, %p39
    %p41 = scmp.ne.s32.totalorder %s30, %s33
    %p42 = scmp.eq.s32.totalorder %s25, 1
    %p43 = por %p41, %p42
    %p44 = scmp.ne.s32.totalorder %s33, %s34
    %p45 = scmp.eq.s32.totalorder %s25, 0
    %p46 = por %p44, %p45
    %p47 = scmp.ne.s32.totalorder %s33, %s34
    %p48 = scmp.eq.s32.totalorder %s26, 1
    %p49 = por %p47, %p48
    %p51 = scmp.ne.s32.totalorder %s34, %s50
    %p52 = scmp.eq.s32.totalorder %s26, 0
    %p53 = por %p51, %p52
    %s54 = ssub.s32 %s20, %s27
    %p55 = scmp.eq.s32.totalorder %s54, 0
    %s57 = sadd.s32 %s56, 1
    %s58 = scalar_select %p55, %s56, %s57
    %p61 = pneg %p55
    %p62 = scmp.eq.s32.totalorder %s20, 1
    %p63 = por %p61, %p62
    %p64 = scmp.ne.s32.totalorder %s56, %s59
    %p65 = scmp.eq.s32.totalorder %s20, 0
    %p66 = por %p64, %p65
    %p67 = scmp.ne.s32.totalorder %s56, %s59
    %p68 = scmp.eq.s32.totalorder %s25, 1
    %p69 = por %p67, %p68
    %p70 = scmp.ne.s32.totalorder %s59, %s60
    %p71 = scmp.eq.s32.totalorder %s25, 0
    %p72 = por %p70, %p71
    %p73 = scmp.ne.s32.totalorder %s59, %s60
    %p74 = scmp.eq.s32.totalorder %s26, 1
    %p75 = por %p73, %p74
    %p77 = scmp.ne.s32.totalorder %s60, %s76
    %p78 = scmp.eq.s32.totalorder %s26, 0
    %p79 = por %p77, %p78
    %s81 = sadd.s32 %s80, 1
    %p84 = scmp.eq.s32.totalorder %s20, 1
    %p85 = scmp.ne.s32.totalorder %s80, %s82
    %p86 = scmp.eq.s32.totalorder %s20, 0
    %p87 = por %p85, %p86
    %p88 = scmp.ne.s32.totalorder %s80, %s82
    %p89 = scmp.eq.s32.totalorder %s25, 1
    %p90 = por %p88, %p89
    %p91 = scmp.ne.s32.totalorder %s82, %s83
    %p92 = scmp.eq.s32.totalorder %s25, 0
    %p93 = por %p91, %p92
    %p94 = scmp.ne.s32.totalorder %s82, %s83
    %p95 = scmp.eq.s32.totalorder %s26, 1
    %p96 = por %p94, %p95
    %p98 = scmp.ne.s32.totalorder %s83, %s97
    %p99 = scmp.eq.s32.totalorder %s26, 0
    %p100 = por %p98, %p99
    %s102 = sadd.s32 %s101, 1
    %p105 = scmp.eq.s32.totalorder %s20, 1
    %p106 = scmp.ne.s32.totalorder %s101, %s103
    %p107 = scmp.eq.s32.totalorder %s20, 0
    %p108 = por %p106, %p107
    %p109 = scmp.ne.s32.totalorder %s101, %s103
    %p110 = scmp.eq.s32.totalorder %s25, 1
    %p111 = por %p109, %p110
    %p112 = scmp.ne.s32.totalorder %s103, %s104
    %p113 = scmp.eq.s32.totalorder %s25, 0
    %p114 = por %p112, %p113
    %p115 = scmp.ne.s32.totalorder %s103, %s104
    %p116 = scmp.eq.s32.totalorder %s26, 1
    %p117 = por %p115, %p116
    %p119 = scmp.ne.s32.totalorder %s104, %s118
    %p120 = scmp.eq.s32.totalorder %s26, 0
    %p121 = por %p119, %p120
    %s123 = sadd.s32 %s122, 1
    %p126 = scmp.eq.s32.totalorder %s20, 1
    %p127 = scmp.ne.s32.totalorder %s122, %s124
    %p128 = scmp.eq.s32.totalorder %s20, 0
    %p129 = por %p127, %p128
    %p130 = scmp.ne.s32.totalorder %s122, %s124
    %p131 = scmp.eq.s32.totalorder %s25, 1
    %p132 = por %p130, %p131
    %p133 = scmp.ne.s32.totalorder %s124, %s125
    %p134 = scmp.eq.s32.totalorder %s25, 0
    %p135 = por %p133, %p134
    %p136 = scmp.ne.s32.totalorder %s124, %s125
    %p137 = scmp.eq.s32.totalorder %s26, 1
    %p138 = por %p136, %p137
    %p140 = scmp.ne.s32.totalorder %s125, %s139
    %p141 = scmp.eq.s32.totalorder %s26, 0
    %p142 = por %p140, %p141
    %s144 = sadd.s32 %s143, 1
    %p147 = scmp.eq.s32.totalorder %s20, 1
    %p148 = scmp.ne.s32.totalorder %s143, %s145
    %p149 = scmp.eq.s32.totalorder %s20, 0
    %p150 = por %p148, %p149
    %p151 = scmp.ne.s32.totalorder %s143, %s145
    %p152 = scmp.eq.s32.totalorder %s25, 1
    %p153 = por %p151, %p152
    %p154 = scmp.ne.s32.totalorder %s145, %s146
    %p155 = scmp.eq.s32.totalorder %s25, 0
    %p156 = por %p154, %p155
    %p157 = scmp.ne.s32.totalorder %s145, %s146
    %p158 = scmp.eq.s32.totalorder %s26, 1
    %p159 = por %p157, %p158
    %p161 = scmp.ne.s32.totalorder %s146, %s160
    %p162 = scmp.eq.s32.totalorder %s26, 0
    %p163 = por %p161, %p162
    %s165 = sadd.s32 %s164, 1
    %p168 = scmp.eq.s32.totalorder %s20, 1
    %p169 = scmp.ne.s32.totalorder %s164, %s166
    %p170 = scmp.eq.s32.totalorder %s20, 0
    %p171 = por %p169, %p170
    %p172 = scmp.ne.s32.totalorder %s164, %s166
    %p173 = scmp.eq.s32.totalorder %s25, 1
    %p174 = por %p172, %p173
    %p175 = scmp.ne.s32.totalorder %s166, %s167
    %p176 = scmp.eq.s32.totalorder %s25, 0
    %p177 = por %p175, %p176
    %p178 = scmp.ne.s32.totalorder %s166, %s167
    %p179 = scmp.eq.s32.totalorder %s26, 1
    %p180 = por %p178, %p179
    %p182 = scmp.ne.s32.totalorder %s167, %s181
    %p183 = scmp.eq.s32.totalorder %s26, 0
    %p184 = por %p182, %p183
    %s186 = sadd.s32 %s185, 1
    %p189 = scmp.eq.s32.totalorder %s20, 1
    %p190 = scmp.ne.s32.totalorder %s185, %s187
    %p191 = scmp.eq.s32.totalorder %s20, 0
    %p192 = por %p190, %p191
    %p193 = scmp.ne.s32.totalorder %s185, %s187
    %p194 = scmp.eq.s32.totalorder %s25, 1
    %p195 = por %p193, %p194
    %p196 = scmp.ne.s32.totalorder %s187, %s188
    %p197 = scmp.eq.s32.totalorder %s25, 0
    %p198 = por %p196, %p197
    %p199 = scmp.ne.s32.totalorder %s187, %s188
    %p200 = scmp.eq.s32.totalorder %s26, 1
    %p201 = por %p199, %p200
    %p203 = scmp.ne.s32.totalorder %s188, %s202
    %p204 = scmp.eq.s32.totalorder %s26, 0
    %p205 = por %p203, %p204
    %s207 = sadd.s32 %s206, 1
    %p210 = scmp.eq.s32.totalorder %s20, 1
    %p211 = scmp.ne.s32.totalorder %s206, %s208
    %p212 = scmp.eq.s32.totalorder %s20, 0
    %p213 = por %p211, %p212
    %p214 = scmp.ne.s32.totalorder %s206, %s208
    %p215 = scmp.eq.s32.totalorder %s25, 1
    %p216 = por %p214, %p215
    %p217 = scmp.ne.s32.totalorder %s208, %s209
    %p218 = scmp.eq.s32.totalorder %s25, 0
    %p219 = por %p217, %p218
    %p220 = scmp.ne.s32.totalorder %s208, %s209
    %p221 = scmp.eq.s32.totalorder %s26, 1
    %p222 = por %p220, %p221
    %p224 = scmp.ne.s32.totalorder %s209, %s223
    %p225 = scmp.eq.s32.totalorder %s26, 0
    %p226 = por %p224, %p225
    %s228 = sadd.s32 %s227, 1
    %p231 = scmp.eq.s32.totalorder %s20, 1
    %p232 = scmp.ne.s32.totalorder %s227, %s229
    %p233 = scmp.eq.s32.totalorder %s20, 0
    %p234 = por %p232, %p233
    %p235 = scmp.ne.s32.totalorder %s227, %s229
    %p236 = scmp.eq.s32.totalorder %s25, 1
    %p237 = por %p235, %p236
    %p238 = scmp.ne.s32.totalorder %s229, %s230
    %p239 = scmp.eq.s32.totalorder %s25, 0
    %p240 = por %p238, %p239
    %p241 = scmp.ne.s32.totalorder %s229, %s230
    %p242 = scmp.eq.s32.totalorder %s26, 1
    %p243 = por %p241, %p242
    %p245 = scmp.ne.s32.totalorder %s230, %s244
    %p246 = scmp.eq.s32.totalorder %s26, 0
    %p247 = por %p245, %p246
    %s249 = sadd.s32 %s248, 1
    %p252 = scmp.eq.s32.totalorder %s20, 1
    %p253 = scmp.ne.s32.totalorder %s248, %s250
    %p254 = scmp.eq.s32.totalorder %s20, 0
    %p255 = por %p253, %p254
    %p256 = scmp.ne.s32.totalorder %s248, %s250
    %p257 = scmp.eq.s32.totalorder %s25, 1
    %p258 = por %p256, %p257
    %p259 = scmp.ne.s32.totalorder %s250, %s251
    %p260 = scmp.eq.s32.totalorder %s25, 0
    %p261 = por %p259, %p260
    %p262 = scmp.ne.s32.totalorder %s250, %s251
    %p263 = scmp.eq.s32.totalorder %s26, 1
    %p264 = por %p262, %p263
    %p266 = scmp.ne.s32.totalorder %s251, %s265
    %p267 = scmp.eq.s32.totalorder %s26, 0
    %p268 = por %p266, %p267
    %s269 = ssub.s32 %s20, %s27
    %p270 = scmp.eq.s32.totalorder %s269, 0
    %s272 = sadd.s32 %s271, 1
    %s273 = scalar_select %p270, %s271, %s272
    %p276 = pneg %p270
    %p277 = scmp.eq.s32.totalorder %s20, 1
    %p278 = por %p276, %p277
    %p279 = scmp.ne.s32.totalorder %s271, %s274
    %p280 = scmp.eq.s32.totalorder %s20, 0
    %p281 = por %p279, %p280
    %p282 = scmp.ne.s32.totalorder %s271, %s274
    %p283 = scmp.eq.s32.totalorder %s25, 1
    %p284 = por %p282, %p283
    %p285 = scmp.ne.s32.totalorder %s274, %s275
    %p286 = scmp.eq.s32.totalorder %s25, 0
    %p287 = por %p285, %p286
    %p288 = scmp.ne.s32.totalorder %s274, %s275
    %p289 = scmp.eq.s32.totalorder %s26, 1
    %p290 = por %p288, %p289
    %p292 = scmp.ne.s32.totalorder %s275, %s291
    %p293 = scmp.eq.s32.totalorder %s26, 0
    %p294 = por %p292, %p293
    %s295 = ssub.s32 %s20, %s27
    %p296 = scmp.eq.s32.totalorder %s295, 0
    %s298 = sadd.s32 %s297, 1
    %s299 = scalar_select %p296, %s297, %s298
    %p302 = pneg %p296
    %p303 = scmp.eq.s32.totalorder %s20, 1
    %p304 = por %p302, %p303
    %p305 = scmp.ne.s32.totalorder %s297, %s300
    %p306 = scmp.eq.s32.totalorder %s20, 0
    %p307 = por %p305, %p306
    %p308 = scmp.ne.s32.totalorder %s297, %s300
    %p309 = scmp.eq.s32.totalorder %s25, 1
    %p310 = por %p308, %p309
    %p311 = scmp.ne.s32.totalorder %s300, %s301
    %p312 = scmp.eq.s32.totalorder %s25, 0
    %p313 = por %p311, %p312
    %p314 = scmp.ne.s32.totalorder %s300, %s301
    %p315 = scmp.eq.s32.totalorder %s26, 1
    %p316 = por %p314, %p315
    %p318 = scmp.ne.s32.totalorder %s301, %s317
    %p319 = scmp.eq.s32.totalorder %s26, 0
    %p320 = por %p318, %p319
    %s321 = ssub.s32 %s20, %s27
    %p322 = scmp.eq.s32.totalorder %s321, 0
    %s324 = sadd.s32 %s323, 1
    %s325 = scalar_select %p322, %s323, %s324
    %p328 = pneg %p322
    %p329 = scmp.eq.s32.totalorder %s20, 1
    %p330 = por %p328, %p329
    %p331 = scmp.ne.s32.totalorder %s323, %s326
    %p332 = scmp.eq.s32.totalorder %s20, 0
    %p333 = por %p331, %p332
    %p334 = scmp.ne.s32.totalorder %s323, %s326
    %p335 = scmp.eq.s32.totalorder %s25, 1
    %p336 = por %p334, %p335
    %p337 = scmp.ne.s32.totalorder %s326, %s327
    %p338 = scmp.eq.s32.totalorder %s25, 0
    %p339 = por %p337, %p338
    %p340 = scmp.ne.s32.totalorder %s326, %s327
    %p341 = scmp.eq.s32.totalorder %s26, 1
    %p342 = por %p340, %p341
    %p344 = scmp.ne.s32.totalorder %s327, %s343
    %p345 = scmp.eq.s32.totalorder %s26, 0
    %p346 = por %p344, %p345
    %p347 = scmp.le.s32.totalorder 1, %s20
    %p348 = scmp.lt.s32.totalorder %s20, 3
    %p349 = pnand %p347, %p348
    %p350 = pneg %p349
    // Predicated region
    $region9: #{decoder_layer_pallas.2} parent=5 // pred_check
      _
    $region10: #{decoder_layer_pallas.2} parent=5 // pred_check_branch
      %352 = sbr.rel (%p349) target = $region12
    $region11: #{decoder_layer_pallas.2} parent=5 // pred_region
      %s353 = ssub.s32 %s20, 1
      // Predicated region
      $region13: #{decoder_layer_pallas.2} parent=11 // pred_check
        %p354 = pneg %p93
      $region14: #{decoder_layer_pallas.2} parent=11 // pred_check_branch
        %356 = sbr.rel (%p354) target = $region16
      $region15: #{decoder_layer_pallas.2} parent=11 // pred_region
        _
      $region16: #{decoder_layer_pallas.2} parent=11 // pred_fallthru
        _
      // Predicated region
      $region17: #{decoder_layer_pallas.2} parent=11 // pred_check
        %p357 = pneg %p114
      $region18: #{decoder_layer_pallas.2} parent=11 // pred_check_branch
        %359 = sbr.rel (%p357) target = $region20
      $region19: #{decoder_layer_pallas.2} parent=11 // pred_region
        _
      $region20: #{decoder_layer_pallas.2} parent=11 // pred_fallthru
        _
      // Predicated region
      $region21: #{decoder_layer_pallas.2} parent=11 // pred_check
        %p360 = pneg %p135
      $region22: #{decoder_layer_pallas.2} parent=11 // pred_check_branch
        %362 = sbr.rel (%p360) target = $region24
      $region23: #{decoder_layer_pallas.2} parent=11 // pred_region
        _
      $region24: #{decoder_layer_pallas.2} parent=11 // pred_fallthru
        _
      // Predicated region
      $region25: #{decoder_layer_pallas.2} parent=11 // pred_check
        %p363 = pneg %p156
      $region26: #{decoder_layer_pallas.2} parent=11 // pred_check_branch
        %365 = sbr.rel (%p363) target = $region28
      $region27: #{decoder_layer_pallas.2} parent=11 // pred_region
        _
      $region28: #{decoder_layer_pallas.2} parent=11 // pred_fallthru
        _
      // Predicated region
      $region29: #{decoder_layer_pallas.2} parent=11 // pred_check
        %p366 = pneg %p177
      $region30: #{decoder_layer_pallas.2} parent=11 // pred_check_branch
        %368 = sbr.rel (%p366) target = $region32
      $region31: #{decoder_layer_pallas.2} parent=11 // pred_region
        _
      $region32: #{decoder_layer_pallas.2} parent=11 // pred_fallthru
        _
      // Predicated region
      $region33: #{decoder_layer_pallas.2} parent=11 // pred_check
        %p369 = pneg %p198
      $region34: #{decoder_layer_pallas.2} parent=11 // pred_check_branch
        %371 = sbr.rel (%p369) target = $region36
      $region35: #{decoder_layer_pallas.2} parent=11 // pred_region
        _
      $region36: #{decoder_layer_pallas.2} parent=11 // pred_fallthru
        _
      // Predicated region
      $region37: #{decoder_layer_pallas.2} parent=11 // pred_check
        %p372 = pneg %p219
      $region38: #{decoder_layer_pallas.2} parent=11 // pred_check_branch
        %374 = sbr.rel (%p372) target = $region40
      $region39: #{decoder_layer_pallas.2} parent=11 // pred_region
        _
      $region40: #{decoder_layer_pallas.2} parent=11 // pred_fallthru
        _
      // Predicated region
      $region41: #{decoder_layer_pallas.2} parent=11 // pred_check
        %p375 = pneg %p240
      $region42: #{decoder_layer_pallas.2} parent=11 // pred_check_branch
        %377 = sbr.rel (%p375) target = $region44
      $region43: #{decoder_layer_pallas.2} parent=11 // pred_region
        _
      $region44: #{decoder_layer_pallas.2} parent=11 // pred_fallthru
        _
      // Predicated region
      $region45: #{decoder_layer_pallas.2} parent=11 // pred_check
        %p378 = pneg %p261
      $region46: #{decoder_layer_pallas.2} parent=11 // pred_check_branch
        %380 = sbr.rel (%p378) target = $region48
      $region47: #{decoder_layer_pallas.2} parent=11 // pred_region
        _
      $region48: #{decoder_layer_pallas.2} parent=11 // pred_fallthru
        _
    $region12: #{decoder_layer_pallas.2} parent=5 // pred_fallthru
      _
    %p381 = scmp.lt.s32.totalorder %s20, 2
    // Predicated region
    $region49: #{decoder_layer_pallas.2} parent=5 // pred_check
      %p382 = pneg %p381
    $region50: #{decoder_layer_pallas.2} parent=5 // pred_check_branch
      %384 = sbr.rel (%p382) target = $region52
    $region51: #{decoder_layer_pallas.2} parent=5 // pred_region
      // Predicated region
      $region53: #{decoder_layer_pallas.2} parent=51 // pred_check
        %p385 = pneg %p40
      $region54: #{decoder_layer_pallas.2} parent=51 // pred_check_branch
        %387 = sbr.rel (%p385) target = $region56
      $region55: #{decoder_layer_pallas.2} parent=51 // pred_region
        %p388 = scmp.lt.s32.totalorder %s20, 1
        %s389 = scalar_select %p388, %s20, 1
        %s390 = smul.addr %s389, 8
        %s391 = scalar_lea.vmem %s0, %s390
      $region56: #{decoder_layer_pallas.2} parent=51 // pred_fallthru
        _
      // Predicated region
      $region57: #{decoder_layer_pallas.2} parent=51 // pred_check
        %p392 = pneg %p66
      $region58: #{decoder_layer_pallas.2} parent=51 // pred_check_branch
        %394 = sbr.rel (%p392) target = $region60
      $region59: #{decoder_layer_pallas.2} parent=51 // pred_region
        %p395 = scmp.lt.s32.totalorder %s20, 1
        %s396 = scalar_select %p395, %s20, 1
        %s397 = smul.addr %s396, 8
        %s398 = scalar_lea.vmem %s1, %s397
      $region60: #{decoder_layer_pallas.2} parent=51 // pred_fallthru
        _
    $region52: #{decoder_layer_pallas.2} parent=5 // pred_fallthru
      _
    %p399 = scmp.le.s32.totalorder 1, %s20
    %p400 = scmp.lt.s32.totalorder %s20, 3
    %p401 = pnand %p399, %p400
    %p402 = pneg %p401
    // Predicated region
    $region61: #{decoder_layer_pallas.2} parent=5 // pred_check
      _
    $region62: #{decoder_layer_pallas.2} parent=5 // pred_check_branch
      %404 = sbr.rel (%p401) target = $region64
    $region63: #{decoder_layer_pallas.2} parent=5 // pred_region
      %s405 = ssub.s32 %s20, 1
      %p406 = scmp.lt.s32.totalorder %s25, 1
      %s407 = scalar_select %p406, %s25, 1
      %s408 = smul.addr %s407, 8
      %s409 = scalar_lea.vmem %s0, %s408
      %p410 = pneg %p46
      %p411 = pneg %p43
      %p412 = scmp.lt.s32.totalorder %s25, 1
      %s413 = scalar_select %p412, %s25, 1
      %s414 = smul.addr %s413, 8
      %s415 = scalar_lea.vmem %s1, %s414
      %p416 = pneg %p72
      %p417 = pneg %p69
      %p418 = pneg %p93
      %p419 = pneg %p90
      %p420 = pneg %p114
      %p421 = pneg %p111
      %p422 = pneg %p135
      %p423 = pneg %p132
      %p424 = pneg %p156
      %p425 = pneg %p153
      %p426 = pneg %p177
      %p427 = pneg %p174
      %p428 = pneg %p198
      %p429 = pneg %p195
      %p430 = pneg %p219
      %p431 = pneg %p216
      %p432 = pneg %p240
      %p433 = pneg %p237
      %p434 = pneg %p261
      %p435 = pneg %p258
      %p436 = pneg %p287
      %p437 = pneg %p284
      %p438 = scmp.lt.s32.totalorder %s25, 1
      %s439 = scalar_select %p438, %s25, 1
      %s440 = smul.addr %s439, 8
      %s441 = scalar_lea.vmem %s11, %s440
      %p442 = pneg %p313
      %p443 = pneg %p310
      %p444 = scmp.lt.s32.totalorder %s25, 1
      %s445 = scalar_select %p444, %s25, 1
      %s446 = smul.addr %s445, 8
      %s447 = scalar_lea.vmem %s12, %s446
      %p448 = pneg %p339
      %p449 = pneg %p336
      %p450 = scmp.lt.s32.totalorder %s25, 1
      %s451 = scalar_select %p450, %s25, 1
      %s452 = smul.addr %s451, 8
      %s453 = scalar_lea.vmem %s13, %s452
      %p454 = scmp.lt.s32.totalorder %s25, 1
      %s455 = scalar_select %p454, %s25, 1
      %s456 = smul.addr %s455, 8
      %s457 = scalar_lea.vmem %s0, %s456
      %p458 = scmp.lt.s32.totalorder %s25, 1
      %s459 = scalar_select %p458, %s25, 1
      %s460 = smul.addr %s459, 8
      %s461 = scalar_lea.vmem %s1, %s460
      %p462 = scmp.lt.s32.totalorder %s25, 1
      %s463 = scalar_select %p462, %s25, 1
      %s464 = smul.addr %s463, 8
      %s465 = scalar_lea.vmem %s11, %s464
      %p466 = scmp.lt.s32.totalorder %s25, 1
      %s467 = scalar_select %p466, %s25, 1
      %s468 = smul.addr %s467, 8
      %s469 = scalar_lea.vmem %s12, %s468
      %p470 = scmp.lt.s32.totalorder %s25, 1
      %s471 = scalar_select %p470, %s25, 1
      %s472 = smul.addr %s471, 8
      %s473 = scalar_lea.vmem %s13, %s472
      %v474 = vld [vmem:[%s457] sm:$0xff]
      %v475 = vmul.f32 %v474, %v474
      %vm476 = vcmask 523264
      %v477 = vsel %vm476, %v475, 0.0
      %478 = vadd.xlane.f32.xlu0 %v477
      %v479 = vpop.xlane.xlu0 %478
      %v480 = vrcp.pop 64.0
      %v481 = vmul.f32 64.0, %v480
      %v482 = vsub.f32 1.0, %v481
      %v483 = vmul.f32 %v480, %v482
      %v484 = vadd.f32 %v480, %v483
      %vm485 = vweird.f32 %v480
      %v486 = vsel %vm485, %v480, %v484
      %v487 = vmul.f32 %v479, %v486
      %v488 = vadd.f32 %v487, 1e-06
      %v489 = vrsqrt.pop %v488
      %v490 = vmul.f32 %v489, %v488
      %v491 = vmul.f32 %v490, %v489
      %v492 = vmul.f32 0.5, %v491
      %v493 = vsub.f32 1.5, %v492
      %v494 = vmul.f32 %v489, %v493
      %vm495 = vweird.f32 %v488
      %vm496 = vweird.f32 %v489
      %vm497 = vmor %vm495, %vm496
      %v498 = vsel %vm497, %v489, %v494
      %v499 = vmul.f32 %v474, %v498
      %v500 = vld [vmem:[%s2] sm:$0x1]
      %v502 = vperm.slane %v500, 0
      %v504 = vmul.f32 %v499, %v502
      %v505 = vtanh.pop %v504
      %v506 = vld [vmem:[%s461] sm:$0xff]
      %v507 = vmul.f32 %v505, %v506
      %508 = vst.msk [vmem:[%s473] sm:$0xff] %vm476, %v507
      %v509 = vld [vmem:[%s3] sm:$0xff]
      %v510 = vld [vmem:[%s3 + $0x8] sm:$0xff]
      %v511 = vld [vmem:[%s3 + $0x10] sm:$0xff]
      %v512 = vld [vmem:[%s3 + $0x18] sm:$0xff]
      %v513 = vld [vmem:[%s3 + $0x20] sm:$0xff]
      %v514 = vld [vmem:[%s3 + $0x28] sm:$0xff]
      %v515 = vld [vmem:[%s3 + $0x30] sm:$0xff]
      %v516 = vld [vmem:[%s3 + $0x38] sm:$0xff]
      %v518 = vsel %vm476, %v504, 0
      %520 = vmatpush.msra.mxu0 0.0
      %521 = vmatpush.msra.mxu0 0.0
      %522 = vmatpush.msra.mxu0 0.0
      %523 = vmatpush.msra.mxu0 0.0
      %524 = vmatpush.msra.mxu0 0.0
      %525 = vmatpush.msra.mxu0 0.0
      %526 = vmatpush.msra.mxu0 0.0
      %527 = vmatpush.msra.mxu0 0.0
      %528 = vmatpush.msra.mxu0 %v516
      %529 = vmatpush.msra.mxu0 %v515
      %530 = vmatpush.msra.mxu0 %v514
      %531 = vmatpush.msra.mxu0 %v513
      %532 = vmatpush.msra.mxu0 %v512
      %533 = vmatpush.msra.mxu0 %v511
      %534 = vmatpush.msra.mxu0 %v510
      %535 = vmatpush.msra.mxu0 %v509
      %536 = vmatmul.f32.gmra.mxu0 %v518
      %v537 = vpop.f32.mrf.mxu0
      %v538 = vadd.f32 0.0, %v537
      %539 = vdwg.mxu0
      %v540 = vld [vmem:[%s4] sm:$0xff]
      %v541 = vld [vmem:[%s4 + $0x8] sm:$0xff]
      %v542 = vld [vmem:[%s4 + $0x10] sm:$0xff]
      %v543 = vld [vmem:[%s4 + $0x18] sm:$0xff]
      %v544 = vld [vmem:[%s4 + $0x20] sm:$0xff]
      %v545 = vld [vmem:[%s4 + $0x28] sm:$0xff]
      %v546 = vld [vmem:[%s4 + $0x30] sm:$0xff]
      %v547 = vld [vmem:[%s4 + $0x38] sm:$0xff]
      %548 = vmatpush.msra.mxu0 0.0
      %549 = vmatpush.msra.mxu0 0.0
      %550 = vmatpush.msra.mxu0 0.0
      %551 = vmatpush.msra.mxu0 0.0
      %552 = vmatpush.msra.mxu0 0.0
      %553 = vmatpush.msra.mxu0 0.0
      %554 = vmatpush.msra.mxu0 0.0
      %555 = vmatpush.msra.mxu0 0.0
      %556 = vmatpush.msra.mxu0 %v547
      %557 = vmatpush.msra.mxu0 %v546
      %558 = vmatpush.msra.mxu0 %v545
      %559 = vmatpush.msra.mxu0 %v544
      %560 = vmatpush.msra.mxu0 %v543
      %561 = vmatpush.msra.mxu0 %v542
      %562 = vmatpush.msra.mxu0 %v541
      %563 = vmatpush.msra.mxu0 %v540
      %564 = vmatmul.f32.gmra.mxu0 %v518
      %v565 = vpop.f32.mrf.mxu0
      %v566 = vadd.f32 0.0, %v565
      %567 = vdwg.mxu0
      %v568 = vld [vmem:[%s5] sm:$0xf]
      %vm569 = vcmask 31744
      %v571 = vsel %vm569, %v538, 0
      %vm573 = vcmask 1043456
      %v575 = vsel %vm573, %v568, 0
      %577 = vmatpush.msra.mxu0 0.0
      %578 = vmatpush.msra.mxu0 0.0
      %579 = vmatpush.msra.mxu0 0.0
      %580 = vmatpush.msra.mxu0 0.0
      %581 = vmatpush.msra.mxu0 0.0
      %582 = vmatpush.msra.mxu0 0.0
      %583 = vmatpush.msra.mxu0 0.0
      %584 = vmatpush.msra.mxu0 0.0
      %585 = vmatpush.msra.mxu0 0.0
      %586 = vmatpush.msra.mxu0 0.0
      %587 = vmatpush.msra.mxu0 0.0
      %588 = vmatpush.msra.mxu0 0.0
      %589 = vmatpush.msra.mxu0 0.0
      %590 = vmatpush.msra.mxu0 0.0
      %591 = vmatpush.msra.mxu0 0.0
      %592 = vmatpush.msra.mxu0 %v575
      %593 = vmatmul.f32.gmra.mxu0 %v571
      %v594 = vpop.f32.mrf.mxu0
      %v595 = vadd.f32 0.0, %v594
      %596 = vdwg.mxu0
      %vm597 = vcmask 195584
      %598 = vst.msk [vmem:[#allocation2] sm:$0xff] %vm597, %v595
      %v599 = vld [vmem:[%s6] sm:$0xff]
      %vm600 = vcmask 64512
      %v602 = vsel %vm600, 0.0, 0
      %604 = vmatpush.msra.mxu0 0.0
      %605 = vmatpush.msra.mxu0 0.0
      %606 = vmatpush.msra.mxu0 0.0
      %607 = vmatpush.msra.mxu0 0.0
      %608 = vmatpush.msra.mxu0 0.0
      %609 = vmatpush.msra.mxu0 0.0
      %610 = vmatpush.msra.mxu0 0.0
      %611 = vmatpush.msra.mxu0 0.0
      %612 = vmatpush.msra.mxu0 0.0
      %613 = vmatpush.msra.mxu0 0.0
      %614 = vmatpush.msra.mxu0 0.0
      %615 = vmatpush.msra.mxu0 0.0
      %616 = vmatpush.msra.mxu0 0.0
      %617 = vmatpush.msra.mxu0 0.0
      %618 = vmatpush.msra.mxu0 0.0
      %619 = vmatpush.msra.mxu0 %v599
      %620 = vmatmul.f32.gmra.mxu0 %v602
      %v621 = vpop.f32.mrf.mxu0
      %v622 = vadd.f32 0.0, %v621
      %623 = vdwg.mxu0
      %v624 = vld [vmem:[#allocation2] sm:$0x1]
      %v625 = vadd.f32 %v624, %v622
      %v626 = vsub.f32 0.0, %v625
      %v627 = vmul.f32 %v626, 1.442695
      %v628 = vpow.pop %v627
      %v629 = vadd.f32 %v628, 1.0
      %v630 = vrcp.pop %v629
      %v631 = vmul.f32 %v629, %v630
      %v632 = vsub.f32 1.0, %v631
      %v633 = vmul.f32 %v630, %v632
      %v634 = vadd.f32 %v630, %v633
      %vm635 = vweird.f32 %v629
      %vm636 = vweird.f32 %v630
      %vm637 = vmor %vm635, %vm636
      %v638 = vsel %vm637, %v630, %v634
      %v639 = vand.u32 2147483647, %v629
      %vm640 = vcmp.eq.f32.partialorder %v639, 8.507059e+37
      %v641 = vand.u32 %v629, 2147483648
      %v642 = vor.u32 1.1754944e-38, %v641
      %v643 = vsel %vm640, %v642, %v638
      %v644 = vmul.f32 1.0, %v643
      %646 = vrot.lane.b32.xlu0 %v622, 112
      %v647 = vpop.permute.xlu0 %646
      %v649 = vmul.f32 %v644, %v647
      %651 = vrot.lane.b32.xlu0 %v649, 16
      %v652 = vpop.permute.xlu0 %651
      %v654 = vadd.f32 %v624, %v652
      %v655 = vtanh.pop %v654
      %v656 = vsub.f32 1.0, %v644
      %658 = vrot.lane.b32.xlu0 %v655, 120
      %v659 = vpop.permute.xlu0 %658
      %v661 = vmul.f32 %v656, %v659
      %v662 = vmul.f32 %v644, 0.0
      %v663 = vadd.f32 %v661, %v662
      %665 = vrot.lane.b32.xlu0 %v663, 120
      %v666 = vpop.permute.xlu0 %665
      %vm668 = vcmask 57344
      %669 = vst.msk [vmem:[#allocation3] sm:$0x1] %vm668, %v666
      %v670 = vld [vmem:[%s6] sm:$0xff]
      %v671 = vsel %vm600, %v666, 0
      %673 = vmatpush.msra.mxu0 0.0
      %674 = vmatpush.msra.mxu0 0.0
      %675 = vmatpush.msra.mxu0 0.0
      %676 = vmatpush.msra.mxu0 0.0
      %677 = vmatpush.msra.mxu0 0.0
      %678 = vmatpush.msra.mxu0 0.0
      %679 = vmatpush.msra.mxu0 0.0
      %680 = vmatpush.msra.mxu0 0.0
      %681 = vmatpush.msra.mxu0 0.0
      %682 = vmatpush.msra.mxu0 0.0
      %683 = vmatpush.msra.mxu0 0.0
      %684 = vmatpush.msra.mxu0 0.0
      %685 = vmatpush.msra.mxu0 0.0
      %686 = vmatpush.msra.mxu0 0.0
      %687 = vmatpush.msra.mxu0 0.0
      %688 = vmatpush.msra.mxu0 %v670
      %689 = vmatmul.f32.gmra.mxu0 %v671
      %v690 = vpop.f32.mrf.mxu0
      %v691 = vadd.f32 0.0, %v690
      %692 = vdwg.mxu0
      %v693 = vld [vmem:[#allocation2 + $0x1] sm:$0x1]
      %v694 = vadd.f32 %v693, %v691
      %v695 = vsub.f32 0.0, %v694
      %v696 = vmul.f32 %v695, 1.442695
      %v697 = vpow.pop %v696
      %v698 = vadd.f32 %v697, 1.0
      %v699 = vrcp.pop %v698
      %v700 = vmul.f32 %v698, %v699
      %v701 = vsub.f32 1.0, %v700
      %v702 = vmul.f32 %v699, %v701
      %v703 = vadd.f32 %v699, %v702
      %vm704 = vweird.f32 %v698
      %vm705 = vweird.f32 %v699
      %vm706 = vmor %vm704, %vm705
      %v707 = vsel %vm706, %v699, %v703
      %v708 = vand.u32 2147483647, %v698
      %vm709 = vcmp.eq.f32.partialorder %v708, 8.507059e+37
      %v710 = vand.u32 %v698, 2147483648
      %v711 = vor.u32 1.1754944e-38, %v710
      %v712 = vsel %vm709, %v711, %v707
      %v713 = vmul.f32 1.0, %v712
      %715 = vrot.lane.b32.xlu0 %v691, 112
      %v716 = vpop.permute.xlu0 %715
      %v718 = vmul.f32 %v713, %v716
      %720 = vrot.lane.b32.xlu0 %v718, 16
      %v721 = vpop.permute.xlu0 %720
      %v723 = vadd.f32 %v693, %v721
      %v724 = vtanh.pop %v723
      %v725 = vsub.f32 1.0, %v713
      %727 = vrot.lane.b32.xlu0 %v724, 120
      %v728 = vpop.permute.xlu0 %727
      %v730 = vmul.f32 %v725, %v728
      %v731 = vmul.f32 %v713, %v663
      %v732 = vadd.f32 %v730, %v731
      %734 = vrot.lane.b32.xlu0 %v732, 120
      %v735 = vpop.permute.xlu0 %734
      %737 = vst.msk [vmem:[#allocation3 + $0x1] sm:$0x1] %vm668, %v735
      %v738 = vld [vmem:[%s6] sm:$0xff]
      %v739 = vsel %vm600, %v735, 0
      %741 = vmatpush.msra.mxu0 0.0
      %742 = vmatpush.msra.mxu0 0.0
      %743 = vmatpush.msra.mxu0 0.0
      %744 = vmatpush.msra.mxu0 0.0
      %745 = vmatpush.msra.mxu0 0.0
      %746 = vmatpush.msra.mxu0 0.0
      %747 = vmatpush.msra.mxu0 0.0
      %748 = vmatpush.msra.mxu0 0.0
      %749 = vmatpush.msra.mxu0 0.0
      %750 = vmatpush.msra.mxu0 0.0
      %751 = vmatpush.msra.mxu0 0.0
      %752 = vmatpush.msra.mxu0 0.0
      %753 = vmatpush.msra.mxu0 0.0
      %754 = vmatpush.msra.mxu0 0.0
      %755 = vmatpush.msra.mxu0 0.0
      %756 = vmatpush.msra.mxu0 %v738
      %757 = vmatmul.f32.gmra.mxu0 %v739
      %v758 = vpop.f32.mrf.mxu0
      %v759 = vadd.f32 0.0, %v758
      %760 = vdwg.mxu0
      %v761 = vld [vmem:[#allocation2 + $0x2] sm:$0x1]
      %v762 = vadd.f32 %v761, %v759
      %v763 = vsub.f32 0.0, %v762
      %v764 = vmul.f32 %v763, 1.442695
      %v765 = vpow.pop %v764
      %v766 = vadd.f32 %v765, 1.0
      %v767 = vrcp.pop %v766
      %v768 = vmul.f32 %v766, %v767
      %v769 = vsub.f32 1.0, %v768
      %v770 = vmul.f32 %v767, %v769
      %v771 = vadd.f32 %v767, %v770
      %vm772 = vweird.f32 %v766
      %vm773 = vweird.f32 %v767
      %vm774 = vmor %vm772, %vm773
      %v775 = vsel %vm774, %v767, %v771
      %v776 = vand.u32 2147483647, %v766
      %vm777 = vcmp.eq.f32.partialorder %v776, 8.507059e+37
      %v778 = vand.u32 %v766, 2147483648
      %v779 = vor.u32 1.1754944e-38, %v778
      %v780 = vsel %vm777, %v779, %v775
      %v781 = vmul.f32 1.0, %v780
      %783 = vrot.lane.b32.xlu0 %v759, 112
      %v784 = vpop.permute.xlu0 %783
      %v786 = vmul.f32 %v781, %v784
      %788 = vrot.lane.b32.xlu0 %v786, 16
      %v789 = vpop.permute.xlu0 %788
      %v791 = vadd.f32 %v761, %v789
      %v792 = vtanh.pop %v791
      %v793 = vsub.f32 1.0, %v781
      %795 = vrot.lane.b32.xlu0 %v792, 120
      %v796 = vpop.permute.xlu0 %795
      %v798 = vmul.f32 %v793, %v796
      %v799 = vmul.f32 %v781, %v732
      %v800 = vadd.f32 %v798, %v799
      %802 = vrot.lane.b32.xlu0 %v800, 120
      %v803 = vpop.permute.xlu0 %802
      %805 = vst.msk [vmem:[#allocation3 + $0x2] sm:$0x1] %vm668, %v803
      %v806 = vld [vmem:[%s6] sm:$0xff]
      %v807 = vsel %vm600, %v803, 0
      %809 = vmatpush.msra.mxu0 0.0
      %810 = vmatpush.msra.mxu0 0.0
      %811 = vmatpush.msra.mxu0 0.0
      %812 = vmatpush.msra.mxu0 0.0
      %813 = vmatpush.msra.mxu0 0.0
      %814 = vmatpush.msra.mxu0 0.0
      %815 = vmatpush.msra.mxu0 0.0
      %816 = vmatpush.msra.mxu0 0.0
      %817 = vmatpush.msra.mxu0 0.0
      %818 = vmatpush.msra.mxu0 0.0
      %819 = vmatpush.msra.mxu0 0.0
      %820 = vmatpush.msra.mxu0 0.0
      %821 = vmatpush.msra.mxu0 0.0
      %822 = vmatpush.msra.mxu0 0.0
      %823 = vmatpush.msra.mxu0 0.0
      %824 = vmatpush.msra.mxu0 %v806
      %825 = vmatmul.f32.gmra.mxu0 %v807
      %v826 = vpop.f32.mrf.mxu0
      %v827 = vadd.f32 0.0, %v826
      %828 = vdwg.mxu0
      %v829 = vld [vmem:[#allocation2 + $0x3] sm:$0x1]
      %v830 = vadd.f32 %v829, %v827
      %v831 = vsub.f32 0.0, %v830
      %v832 = vmul.f32 %v831, 1.442695
      %v833 = vpow.pop %v832
      %v834 = vadd.f32 %v833, 1.0
      %v835 = vrcp.pop %v834
      %v836 = vmul.f32 %v834, %v835
      %v837 = vsub.f32 1.0, %v836
      %v838 = vmul.f32 %v835, %v837
      %v839 = vadd.f32 %v835, %v838
      %vm840 = vweird.f32 %v834
      %vm841 = vweird.f32 %v835
      %vm842 = vmor %vm840, %vm841
      %v843 = vsel %vm842, %v835, %v839
      %v844 = vand.u32 2147483647, %v834
      %vm845 = vcmp.eq.f32.partialorder %v844, 8.507059e+37
      %v846 = vand.u32 %v834, 2147483648
      %v847 = vor.u32 1.1754944e-38, %v846
      %v848 = vsel %vm845, %v847, %v843
      %v849 = vmul.f32 1.0, %v848
      %851 = vrot.lane.b32.xlu0 %v827, 112
      %v852 = vpop.permute.xlu0 %851
      %v854 = vmul.f32 %v849, %v852
      %856 = vrot.lane.b32.xlu0 %v854, 16
      %v857 = vpop.permute.xlu0 %856
      %v859 = vadd.f32 %v829, %v857
      %v860 = vtanh.pop %v859
      %v861 = vsub.f32 1.0, %v849
      %863 = vrot.lane.b32.xlu0 %v860, 120
      %v864 = vpop.permute.xlu0 %863
      %v866 = vmul.f32 %v861, %v864
      %v867 = vmul.f32 %v849, %v800
      %v868 = vadd.f32 %v866, %v867
      %870 = vrot.lane.b32.xlu0 %v868, 120
      %v871 = vpop.permute.xlu0 %870
      %873 = vst.msk [vmem:[#allocation3 + $0x3] sm:$0x1] %vm668, %v871
      %v874 = vld [vmem:[%s6] sm:$0xff]
      %v875 = vsel %vm600, %v871, 0
      %877 = vmatpush.msra.mxu0 0.0
      %878 = vmatpush.msra.mxu0 0.0
      %879 = vmatpush.msra.mxu0 0.0
      %880 = vmatpush.msra.mxu0 0.0
      %881 = vmatpush.msra.mxu0 0.0
      %882 = vmatpush.msra.mxu0 0.0
      %883 = vmatpush.msra.mxu0 0.0
      %884 = vmatpush.msra.mxu0 0.0
      %885 = vmatpush.msra.mxu0 0.0
      %886 = vmatpush.msra.mxu0 0.0
      %887 = vmatpush.msra.mxu0 0.0
      %888 = vmatpush.msra.mxu0 0.0
      %889 = vmatpush.msra.mxu0 0.0
      %890 = vmatpush.msra.mxu0 0.0
      %891 = vmatpush.msra.mxu0 0.0
      %892 = vmatpush.msra.mxu0 %v874
      %893 = vmatmul.f32.gmra.mxu0 %v875
      %v894 = vpop.f32.mrf.mxu0
      %v895 = vadd.f32 0.0, %v894
      %896 = vdwg.mxu0
      %v897 = vld [vmem:[#allocation2 + $0x4] sm:$0x1]
      %v898 = vadd.f32 %v897, %v895
      %v899 = vsub.f32 0.0, %v898
      %v900 = vmul.f32 %v899, 1.442695
      %v901 = vpow.pop %v900
      %v902 = vadd.f32 %v901, 1.0
      %v903 = vrcp.pop %v902
      %v904 = vmul.f32 %v902, %v903
      %v905 = vsub.f32 1.0, %v904
      %v906 = vmul.f32 %v903, %v905
      %v907 = vadd.f32 %v903, %v906
      %vm908 = vweird.f32 %v902
      %vm909 = vweird.f32 %v903
      %vm910 = vmor %vm908, %vm909
      %v911 = vsel %vm910, %v903, %v907
      %v912 = vand.u32 2147483647, %v902
      %vm913 = vcmp.eq.f32.partialorder %v912, 8.507059e+37
      %v914 = vand.u32 %v902, 2147483648
      %v915 = vor.u32 1.1754944e-38, %v914
      %v916 = vsel %vm913, %v915, %v911
      %v917 = vmul.f32 1.0, %v916
      %919 = vrot.lane.b32.xlu0 %v895, 112
      %v920 = vpop.permute.xlu0 %919
      %v922 = vmul.f32 %v917, %v920
      %924 = vrot.lane.b32.xlu0 %v922, 16
      %v925 = vpop.permute.xlu0 %924
      %v927 = vadd.f32 %v897, %v925
      %v928 = vtanh.pop %v927
      %v929 = vsub.f32 1.0, %v917
      %931 = vrot.lane.b32.xlu0 %v928, 120
      %v932 = vpop.permute.xlu0 %931
      %v934 = vmul.f32 %v929, %v932
      %v935 = vmul.f32 %v917, %v868
      %v936 = vadd.f32 %v934, %v935
      %938 = vrot.lane.b32.xlu0 %v936, 120
      %v939 = vpop.permute.xlu0 %938
      %941 = vst.msk [vmem:[#allocation3 + $0x4] sm:$0x1] %vm668, %v939
      %v942 = vld [vmem:[%s6] sm:$0xff]
      %v943 = vsel %vm600, %v939, 0
      %945 = vmatpush.msra.mxu0 0.0
      %946 = vmatpush.msra.mxu0 0.0
      %947 = vmatpush.msra.mxu0 0.0
      %948 = vmatpush.msra.mxu0 0.0
      %949 = vmatpush.msra.mxu0 0.0
      %950 = vmatpush.msra.mxu0 0.0
      %951 = vmatpush.msra.mxu0 0.0
      %952 = vmatpush.msra.mxu0 0.0
      %953 = vmatpush.msra.mxu0 0.0
      %954 = vmatpush.msra.mxu0 0.0
      %955 = vmatpush.msra.mxu0 0.0
      %956 = vmatpush.msra.mxu0 0.0
      %957 = vmatpush.msra.mxu0 0.0
      %958 = vmatpush.msra.mxu0 0.0
      %959 = vmatpush.msra.mxu0 0.0
      %960 = vmatpush.msra.mxu0 %v942
      %961 = vmatmul.f32.gmra.mxu0 %v943
      %v962 = vpop.f32.mrf.mxu0
      %v963 = vadd.f32 0.0, %v962
      %964 = vdwg.mxu0
      %v965 = vld [vmem:[#allocation2 + $0x5] sm:$0x1]
      %v966 = vadd.f32 %v965, %v963
      %v967 = vsub.f32 0.0, %v966
      %v968 = vmul.f32 %v967, 1.442695
      %v969 = vpow.pop %v968
      %v970 = vadd.f32 %v969, 1.0
      %v971 = vrcp.pop %v970
      %v972 = vmul.f32 %v970, %v971
      %v973 = vsub.f32 1.0, %v972
      %v974 = vmul.f32 %v971, %v973
      %v975 = vadd.f32 %v971, %v974
      %vm976 = vweird.f32 %v970
      %vm977 = vweird.f32 %v971
      %vm978 = vmor %vm976, %vm977
      %v979 = vsel %vm978, %v971, %v975
      %v980 = vand.u32 2147483647, %v970
      %vm981 = vcmp.eq.f32.partialorder %v980, 8.507059e+37
      %v982 = vand.u32 %v970, 2147483648
      %v983 = vor.u32 1.1754944e-38, %v982
      %v984 = vsel %vm981, %v983, %v979
      %v985 = vmul.f32 1.0, %v984
      %987 = vrot.lane.b32.xlu0 %v963, 112
      %v988 = vpop.permute.xlu0 %987
      %v990 = vmul.f32 %v985, %v988
      %992 = vrot.lane.b32.xlu0 %v990, 16
      %v993 = vpop.permute.xlu0 %992
      %v995 = vadd.f32 %v965, %v993
      %v996 = vtanh.pop %v995
      %v997 = vsub.f32 1.0, %v985
      %999 = vrot.lane.b32.xlu0 %v996, 120
      %v1000 = vpop.permute.xlu0 %999
      %v1002 = vmul.f32 %v997, %v1000
      %v1003 = vmul.f32 %v985, %v936
      %v1004 = vadd.f32 %v1002, %v1003
      %1006 = vrot.lane.b32.xlu0 %v1004, 120
      %v1007 = vpop.permute.xlu0 %1006
      %1009 = vst.msk [vmem:[#allocation3 + $0x5] sm:$0x1] %vm668, %v1007
      %v1010 = vld [vmem:[%s6] sm:$0xff]
      %v1011 = vsel %vm600, %v1007, 0
      %1013 = vmatpush.msra.mxu0 0.0
      %1014 = vmatpush.msra.mxu0 0.0
      %1015 = vmatpush.msra.mxu0 0.0
      %1016 = vmatpush.msra.mxu0 0.0
      %1017 = vmatpush.msra.mxu0 0.0
      %1018 = vmatpush.msra.mxu0 0.0
      %1019 = vmatpush.msra.mxu0 0.0
      %1020 = vmatpush.msra.mxu0 0.0
      %1021 = vmatpush.msra.mxu0 0.0
      %1022 = vmatpush.msra.mxu0 0.0
      %1023 = vmatpush.msra.mxu0 0.0
      %1024 = vmatpush.msra.mxu0 0.0
      %1025 = vmatpush.msra.mxu0 0.0
      %1026 = vmatpush.msra.mxu0 0.0
      %1027 = vmatpush.msra.mxu0 0.0
      %1028 = vmatpush.msra.mxu0 %v1010
      %1029 = vmatmul.f32.gmra.mxu0 %v1011
      %v1030 = vpop.f32.mrf.mxu0
      %v1031 = vadd.f32 0.0, %v1030
      %1032 = vdwg.mxu0
      %v1033 = vld [vmem:[#allocation2 + $0x6] sm:$0x1]
      %v1034 = vadd.f32 %v1033, %v1031
      %v1035 = vsub.f32 0.0, %v1034
      %v1036 = vmul.f32 %v1035, 1.442695
      %v1037 = vpow.pop %v1036
      %v1038 = vadd.f32 %v1037, 1.0
      %v1039 = vrcp.pop %v1038
      %v1040 = vmul.f32 %v1038, %v1039
      %v1041 = vsub.f32 1.0, %v1040
      %v1042 = vmul.f32 %v1039, %v1041
      %v1043 = vadd.f32 %v1039, %v1042
      %vm1044 = vweird.f32 %v1038
      %vm1045 = vweird.f32 %v1039
      %vm1046 = vmor %vm1044, %vm1045
      %v1047 = vsel %vm1046, %v1039, %v1043
      %v1048 = vand.u32 2147483647, %v1038
      %vm1049 = vcmp.eq.f32.partialorder %v1048, 8.507059e+37
      %v1050 = vand.u32 %v1038, 2147483648
      %v1051 = vor.u32 1.1754944e-38, %v1050
      %v1052 = vsel %vm1049, %v1051, %v1047
      %v1053 = vmul.f32 1.0, %v1052
      %1055 = vrot.lane.b32.xlu0 %v1031, 112
      %v1056 = vpop.permute.xlu0 %1055
      %v1058 = vmul.f32 %v1053, %v1056
      %1060 = vrot.lane.b32.xlu0 %v1058, 16
      %v1061 = vpop.permute.xlu0 %1060
      %v1063 = vadd.f32 %v1033, %v1061
      %v1064 = vtanh.pop %v1063
      %v1065 = vsub.f32 1.0, %v1053
      %1067 = vrot.lane.b32.xlu0 %v1064, 120
      %v1068 = vpop.permute.xlu0 %1067
      %v1070 = vmul.f32 %v1065, %v1068
      %v1071 = vmul.f32 %v1053, %v1004
      %v1072 = vadd.f32 %v1070, %v1071
      %1074 = vrot.lane.b32.xlu0 %v1072, 120
      %v1075 = vpop.permute.xlu0 %1074
      %1077 = vst.msk [vmem:[#allocation3 + $0x6] sm:$0x1] %vm668, %v1075
      %v1078 = vld [vmem:[%s6] sm:$0xff]
      %v1079 = vsel %vm600, %v1075, 0
      %1081 = vmatpush.msra.mxu0 0.0
      %1082 = vmatpush.msra.mxu0 0.0
      %1083 = vmatpush.msra.mxu0 0.0
      %1084 = vmatpush.msra.mxu0 0.0
      %1085 = vmatpush.msra.mxu0 0.0
      %1086 = vmatpush.msra.mxu0 0.0
      %1087 = vmatpush.msra.mxu0 0.0
      %1088 = vmatpush.msra.mxu0 0.0
      %1089 = vmatpush.msra.mxu0 0.0
      %1090 = vmatpush.msra.mxu0 0.0
      %1091 = vmatpush.msra.mxu0 0.0
      %1092 = vmatpush.msra.mxu0 0.0
      %1093 = vmatpush.msra.mxu0 0.0
      %1094 = vmatpush.msra.mxu0 0.0
      %1095 = vmatpush.msra.mxu0 0.0
      %1096 = vmatpush.msra.mxu0 %v1078
      %1097 = vmatmul.f32.gmra.mxu0 %v1079
      %v1098 = vpop.f32.mrf.mxu0
      %v1099 = vadd.f32 0.0, %v1098
      %1100 = vdwg.mxu0
      %v1101 = vld [vmem:[#allocation2 + $0x7] sm:$0x1]
      %v1102 = vadd.f32 %v1101, %v1099
      %v1103 = vsub.f32 0.0, %v1102
      %v1104 = vmul.f32 %v1103, 1.442695
      %v1105 = vpow.pop %v1104
      %v1106 = vadd.f32 %v1105, 1.0
      %v1107 = vrcp.pop %v1106
      %v1108 = vmul.f32 %v1106, %v1107
      %v1109 = vsub.f32 1.0, %v1108
      %v1110 = vmul.f32 %v1107, %v1109
      %v1111 = vadd.f32 %v1107, %v1110
      %vm1112 = vweird.f32 %v1106
      %vm1113 = vweird.f32 %v1107
      %vm1114 = vmor %vm1112, %vm1113
      %v1115 = vsel %vm1114, %v1107, %v1111
      %v1116 = vand.u32 2147483647, %v1106
      %vm1117 = vcmp.eq.f32.partialorder %v1116, 8.507059e+37
      %v1118 = vand.u32 %v1106, 2147483648
      %v1119 = vor.u32 1.1754944e-38, %v1118
      %v1120 = vsel %vm1117, %v1119, %v1115
      %v1121 = vmul.f32 1.0, %v1120
      %1123 = vrot.lane.b32.xlu0 %v1099, 112
      %v1124 = vpop.permute.xlu0 %1123
      %v1126 = vmul.f32 %v1121, %v1124
      %1128 = vrot.lane.b32.xlu0 %v1126, 16
      %v1129 = vpop.permute.xlu0 %1128
      %v1131 = vadd.f32 %v1101, %v1129
      %v1132 = vtanh.pop %v1131
      %v1133 = vsub.f32 1.0, %v1121
      %1135 = vrot.lane.b32.xlu0 %v1132, 120
      %v1136 = vpop.permute.xlu0 %1135
      %v1138 = vmul.f32 %v1133, %v1136
      %v1139 = vmul.f32 %v1121, %v1072
      %v1140 = vadd.f32 %v1138, %v1139
      %1142 = vrot.lane.b32.xlu0 %v1140, 120
      %v1143 = vpop.permute.xlu0 %1142
      %1145 = vst.msk [vmem:[#allocation3 + $0x7] sm:$0x1] %vm668, %v1143
      %v1146 = vld [vmem:[#allocation3] sm:$0xff]
      %v1147 = vld [vmem:[%s7] sm:$0xff]
      %v1148 = vld [vmem:[%s8] sm:$0xff]
      %v1149 = vld [vmem:[%s8 + $0x8] sm:$0xff]
      %v1150 = vld [vmem:[%s8 + $0x10] sm:$0xff]
      %v1151 = vld [vmem:[%s8 + $0x18] sm:$0xff]
      %v1152 = vld [vmem:[%s8 + $0x20] sm:$0xff]
      %v1153 = vld [vmem:[%s8 + $0x28] sm:$0xff]
      %v1154 = vld [vmem:[%s8 + $0x30] sm:$0xff]
      %v1155 = vld [vmem:[%s8 + $0x38] sm:$0xf]
      %vm1156 = vcmask 490496
      %v1158 = vsel %vm1156, %v566, 0
      %v1161 = vsel %vm573, %v1155, 0
      %1163 = vmatpush.msra.mxu0 0.0
      %1164 = vmatpush.msra.mxu0 0.0
      %1165 = vmatpush.msra.mxu0 0.0
      %1166 = vmatpush.msra.mxu0 0.0
      %1167 = vmatpush.msra.mxu0 0.0
      %1168 = vmatpush.msra.mxu0 0.0
      %1169 = vmatpush.msra.mxu0 0.0
      %1170 = vmatpush.msra.mxu0 0.0
      %1171 = vmatpush.msra.mxu0 %v1161
      %1172 = vmatpush.msra.mxu0 %v1154
      %1173 = vmatpush.msra.mxu0 %v1153
      %1174 = vmatpush.msra.mxu0 %v1152
      %1175 = vmatpush.msra.mxu0 %v1151
      %1176 = vmatpush.msra.mxu0 %v1150
      %1177 = vmatpush.msra.mxu0 %v1149
      %1178 = vmatpush.msra.mxu0 %v1148
      %1179 = vmatmul.f32.gmra.mxu0 %v1158
      %v1180 = vpop.f32.mrf.mxu0
      %v1181 = vadd.f32 0.0, %v1180
      %1182 = vdwg.mxu0
      %v1184 = vsel %vm600, %v1146, 0
      %1186 = vmatpush.msra.mxu0 0.0
      %1187 = vmatpush.msra.mxu0 0.0
      %1188 = vmatpush.msra.mxu0 0.0
      %1189 = vmatpush.msra.mxu0 0.0
      %1190 = vmatpush.msra.mxu0 0.0
      %1191 = vmatpush.msra.mxu0 0.0
      %1192 = vmatpush.msra.mxu0 0.0
      %1193 = vmatpush.msra.mxu0 0.0
      %1194 = vmatpush.msra.mxu0 0.0
      %1195 = vmatpush.msra.mxu0 0.0
      %1196 = vmatpush.msra.mxu0 0.0
      %1197 = vmatpush.msra.mxu0 0.0
      %1198 = vmatpush.msra.mxu0 0.0
      %1199 = vmatpush.msra.mxu0 0.0
      %1200 = vmatpush.msra.mxu0 0.0
      %1201 = vmatpush.msra.mxu0 %v1147
      %1202 = vmatmul.f32.gmra.mxu0 %v1184
      %v1203 = vpop.f32.mrf.mxu0
      %v1204 = vadd.f32 %v1181, %v1203
      %1205 = vdwg.mxu0
      %v1206 = vadd.f32 %v1204, %v504
      %v1207 = vld [vmem:[%s9] sm:$0x1]
      %v1208 = vld [vmem:[%s10] sm:$0x1]
      %v1209 = vsel %vm476, %v1206, 0.0
      %1210 = vadd.xlane.f32.xlu0 %v1209
      %v1211 = vpop.xlane.xlu0 %1210
      %v1212 = vmul.f32 %v1211, %v486
      %v1213 = vsub.f32 %v1206, %v1212
      %v1214 = vmul.f32 %v1213, %v1213
      %v1215 = vsel %vm476, %v1214, 0.0
      %1216 = vadd.xlane.f32.xlu0 %v1215
      %v1217 = vpop.xlane.xlu0 %1216
      %v1218 = vmul.f32 %v1217, %v486
      %v1219 = vadd.f32 %v1218, 1e-05
      %v1220 = vrsqrt.pop %v1219
      %v1221 = vmul.f32 %v1220, %v1219
      %v1222 = vmul.f32 %v1221, %v1220
      %v1223 = vmul.f32 0.5, %v1222
      %v1224 = vsub.f32 1.5, %v1223
      %v1225 = vmul.f32 %v1220, %v1224
      %vm1226 = vweird.f32 %v1219
      %vm1227 = vweird.f32 %v1220
      %vm1228 = vmor %vm1226, %vm1227
      %v1229 = vsel %vm1228, %v1220, %v1225
      %v1230 = vmul.f32 %v1213, %v1229
      %v1231 = vperm.slane %v1207, 0
      %v1232 = vmul.f32 %v1230, %v1231
      %v1233 = vperm.slane %v1208, 0
      %v1234 = vadd.f32 %v1232, %v1233
      %1235 = vst.msk [vmem:[%s465] sm:$0xff] %vm476, %v1234
      %1236 = vrot.lane.b32.xlu0 %v504, 64
      %v1237 = vpop.permute.xlu0 %1236
      %v1239 = vadd.f32 %v1204, %v1237
      %v1240 = vld [vmem:[%s9 + $0x1] sm:$0x1]
      %v1241 = vld [vmem:[%s10 + $0x1] sm:$0x1]
      %1243 = vrot.lane.b32.xlu0 %v1239, 64
      %v1244 = vpop.permute.xlu0 %1243
      %v1246 = vsel %vm476, %v1244, 0.0
      %1247 = vadd.xlane.f32.xlu0 %v1246
      %v1248 = vpop.xlane.xlu0 %1247
      %v1249 = vmul.f32 %v1248, %v486
      %v1250 = vsub.f32 %v1239, %v1249
      %v1251 = vmul.f32 %v1250, %v1250
      %1253 = vrot.lane.b32.xlu0 %v1251, 64
      %v1254 = vpop.permute.xlu0 %1253
      %v1256 = vsel %vm476, %v1254, 0.0
      %1257 = vadd.xlane.f32.xlu0 %v1256
      %v1258 = vpop.xlane.xlu0 %1257
      %v1259 = vmul.f32 %v1258, %v486
      %v1260 = vadd.f32 %v1259, 1e-05
      %v1261 = vrsqrt.pop %v1260
      %v1262 = vmul.f32 %v1261, %v1260
      %v1263 = vmul.f32 %v1262, %v1261
      %v1264 = vmul.f32 0.5, %v1263
      %v1265 = vsub.f32 1.5, %v1264
      %v1266 = vmul.f32 %v1261, %v1265
      %vm1267 = vweird.f32 %v1260
      %vm1268 = vweird.f32 %v1261
      %vm1269 = vmor %vm1267, %vm1268
      %v1270 = vsel %vm1269, %v1261, %v1266
      %v1271 = vmul.f32 %v1250, %v1270
      %v1272 = vperm.slane %v1240, 0
      %1274 = vrot.lane.b32.xlu0 %v1272, 64
      %v1275 = vpop.permute.xlu0 %1274
      %v1277 = vmul.f32 %v1271, %v1275
      %v1278 = vperm.slane %v1241, 0
      %1280 = vrot.lane.b32.xlu0 %v1278, 64
      %v1281 = vpop.permute.xlu0 %1280
      %v1283 = vadd.f32 %v1277, %v1281
      %1285 = vrot.lane.b32.xlu0 %v1283, 64
      %v1286 = vpop.permute.xlu0 %1285
      %1288 = vst.msk [vmem:[%s469] sm:$0xff] %vm476, %v1286
      %p1289 = scmp.lt.s32.totalorder %s25, 1
      %s1290 = scalar_select %p1289, %s25, 1
      %s1291 = smul.addr %s1290, 8
      %s1292 = scalar_lea.vmem %s11, %s1291
      %p1293 = scmp.lt.s32.totalorder %s25, 1
      %s1294 = scalar_select %p1293, %s25, 1
      %s1295 = smul.addr %s1294, 8
      %s1296 = scalar_lea.vmem %s12, %s1295
      %p1297 = scmp.lt.s32.totalorder %s25, 1
      %s1298 = scalar_select %p1297, %s25, 1
      %s1299 = smul.addr %s1298, 8
      %s1300 = scalar_lea.vmem %s13, %s1299
      // Predicated region
      $region65: #{decoder_layer_pallas.2} parent=63 // pred_check
        %p1301 = pneg %p284
      $region66: #{decoder_layer_pallas.2} parent=63 // pred_check_branch
        %1303 = sbr.rel (%p1301) target = $region68
      $region67: #{decoder_layer_pallas.2} parent=63 // pred_region
        _
      $region68: #{decoder_layer_pallas.2} parent=63 // pred_fallthru
        _
      // Predicated region
      $region69: #{decoder_layer_pallas.2} parent=63 // pred_check
        %p1304 = pneg %p310
      $region70: #{decoder_layer_pallas.2} parent=63 // pred_check_branch
        %1306 = sbr.rel (%p1304) target = $region72
      $region71: #{decoder_layer_pallas.2} parent=63 // pred_region
        _
      $region72: #{decoder_layer_pallas.2} parent=63 // pred_fallthru
        _
      // Predicated region
      $region73: #{decoder_layer_pallas.2} parent=63 // pred_check
        %p1307 = pneg %p336
      $region74: #{decoder_layer_pallas.2} parent=63 // pred_check_branch
        %1309 = sbr.rel (%p1307) target = $region76
      $region75: #{decoder_layer_pallas.2} parent=63 // pred_region
        _
      $region76: #{decoder_layer_pallas.2} parent=63 // pred_fallthru
        _
    $region64: #{decoder_layer_pallas.2} parent=5 // pred_fallthru
      _
    %p1310 = scmp.le.s32.totalorder 2, %s20
    // Predicated region
    $region77: #{decoder_layer_pallas.2} parent=5 // pred_check
      %p1311 = pneg %p1310
    $region78: #{decoder_layer_pallas.2} parent=5 // pred_check_branch
      %1313 = sbr.rel (%p1311) target = $region80
    $region79: #{decoder_layer_pallas.2} parent=5 // pred_region
      %s1314 = ssub.s32 %s20, 2
      // Predicated region
      $region81: #{decoder_layer_pallas.2} parent=79 // pred_check
        %p1315 = pneg %p290
      $region82: #{decoder_layer_pallas.2} parent=79 // pred_check_branch
        %1317 = sbr.rel (%p1315) target = $region84
      $region83: #{decoder_layer_pallas.2} parent=79 // pred_region
        %p1318 = scmp.lt.s32.totalorder %s26, 1
        %s1319 = scalar_select %p1318, %s26, 1
        %s1320 = smul.addr %s1319, 8
        %s1321 = scalar_lea.vmem %s11, %s1320
      $region84: #{decoder_layer_pallas.2} parent=79 // pred_fallthru
        _
      // Predicated region
      $region85: #{decoder_layer_pallas.2} parent=79 // pred_check
        %p1322 = pneg %p316
      $region86: #{decoder_layer_pallas.2} parent=79 // pred_check_branch
        %1324 = sbr.rel (%p1322) target = $region88
      $region87: #{decoder_layer_pallas.2} parent=79 // pred_region
        %p1325 = scmp.lt.s32.totalorder %s26, 1
        %s1326 = scalar_select %p1325, %s26, 1
        %s1327 = smul.addr %s1326, 8
        %s1328 = scalar_lea.vmem %s12, %s1327
      $region88: #{decoder_layer_pallas.2} parent=79 // pred_fallthru
        _
      // Predicated region
      $region89: #{decoder_layer_pallas.2} parent=79 // pred_check
        %p1329 = pneg %p342
      $region90: #{decoder_layer_pallas.2} parent=79 // pred_check_branch
        %1331 = sbr.rel (%p1329) target = $region92
      $region91: #{decoder_layer_pallas.2} parent=79 // pred_region
        %p1332 = scmp.lt.s32.totalorder %s26, 1
        %s1333 = scalar_select %p1332, %s26, 1
        %s1334 = smul.addr %s1333, 8
        %s1335 = scalar_lea.vmem %s13, %s1334
      $region92: #{decoder_layer_pallas.2} parent=79 // pred_fallthru
        _
    $region80: #{decoder_layer_pallas.2} parent=5 // pred_fallthru
      _
  $region6: #{decoder_layer_pallas.2} parent=0 // loop_footer
    %s24 = sadd.s32 1, %s20
  $region7: #{decoder_layer_pallas.2} parent=0 // loop_footer_branch
    %19 = sbr.rel target = $region3
  $region8: #{decoder_layer_pallas.2} parent=0 // loop_exit
    _

</llo_original>
